<compile_context>
chip_gen: v7x
topology: tpu7x:2x2x1
jax: 0.10.0
libtpu: 0.0.40
codegen_flags: <defaults>
</compile_context>

<pallas_src>
import functools

import jax
import jax.numpy as jnp
from jax.experimental import pallas as pl
from jax.experimental.pallas import tpu as pltpu

START_TAG = "<START>"
STOP_TAG = "<STOP>"
tag_to_ix = {"B": 0, "I": 1, "O": 2, START_TAG: 3, STOP_TAG: 4}


# --------------------------------------------------------------------------
# Fused kernel: BiLSTM + hidden2tag + CRF Viterbi decode + backtracking
# --------------------------------------------------------------------------
def fused_bilstm_crf_kernel(xx_ref, wih_ref, whh_ref, bias_ref,
                            wtag_ref, btag_ref,
                            trans_ref, start_ref, stop_ref,
                            score_ref, tagseq_ref,
                            gin, hid, em_buf, bp_buf):
    B, S = tagseq_ref.shape                 # B is the padded batch
    Hd = whh_ref.shape[0] // 2              # per-direction hidden (lstm_hidden // 2)
    T = trans_ref.shape[0]                  # tagset size

    # ---------------- hoisted input projection ----------------
    # One MXU matmul for all time steps and both directions; biases folded in.
    # Gate columns grouped by gate type: [i_f,i_b | f_f,f_b | o_f,o_b | g_f,g_b];
    # rows of wih map x[t] into forward columns and x[S-1-t] into backward columns.
    gin[...] = (jnp.dot(xx_ref[...], wih_ref[...],
                        preferred_element_type=jnp.float32) + bias_ref[...])

    # ---------------- fused bidirectional LSTM recurrence ----------------
    whh = whh_ref[...]                      # (2Hd, 8Hd) block-diag weight, hoisted

    def lstm_step(t, carry):
        h, c = carry                        # (B, 2Hd) = [h_fwd | h_bwd], register carry
        r_f = pl.multiple_of(t * B, B)
        pre = gin[pl.ds(r_f, B), :]         # (B, 8Hd) lane-dense slab read
        gates = pre + jnp.dot(h, whh, preferred_element_type=jnp.float32)
        sig = jax.nn.sigmoid(gates[:, 0:6 * Hd])     # one sigmoid: i,f,o of both dirs
        g = jnp.tanh(gates[:, 6 * Hd:8 * Hd])        # one tanh: g of both dirs
        i_g = sig[:, 0:2 * Hd]
        f_g = sig[:, 2 * Hd:4 * Hd]
        o_g = sig[:, 4 * Hd:6 * Hd]
        c_new = f_g * c + i_g * g
        h_new = o_g * jnp.tanh(c_new)
        # forward half belongs to position t, backward half to position S-1-t
        r_b = pl.multiple_of((S - 1 - t) * B, B)
        hid[pl.ds(r_f, B), pl.ds(0, Hd)] = h_new[:, 0:Hd]
        hid[pl.ds(r_b, B), pl.ds(Hd, Hd)] = h_new[:, Hd:2 * Hd]
        return h_new, c_new

    zeros = jnp.zeros((B, 2 * Hd), jnp.float32)
    jax.lax.fori_loop(0, S, lstm_step, (zeros, zeros), unroll=True)

    # ---------------- hidden2tag: one batched matmul ----------------
    em_buf[...] = (jnp.dot(hid[...], wtag_ref[...],
                           preferred_element_type=jnp.float32) + btag_ref[...])

    # ---------------- CRF Viterbi recursion ----------------
    # Matches the reference _viterbi_decode: recursion adds transitions[prev, cur]
    # (torch `self.transitions[:, tag]`); start/stop use trans[:,START] / trans[STOP,:].
    trans_b = jnp.broadcast_to(trans_ref[...][None, :, :], (B, T, T))   # hoisted
    prev_iota = jax.lax.broadcasted_iota(jnp.int32, (B, T, T), 1)       # hoisted
    tag_iota = jax.lax.broadcasted_iota(jnp.int32, (B, T), 1)           # hoisted

    alpha0 = start_ref[...] + em_buf[pl.ds(0, B), :]                    # (B, T)

    def viterbi_step(i, alpha):
        r = pl.multiple_of(i * B, B)
        cand = alpha[:, :, None] + trans_b                              # (B, prev, cur)
        best_val = jnp.max(cand, axis=1)                                # (B, cur)
        hit = cand == best_val[:, None, :]
        best_idx = jnp.min(jnp.where(hit, prev_iota, T), axis=1)        # first-max prev
        bp_buf[pl.ds(r, B), :] = best_idx.astype(jnp.int32)
        return em_buf[pl.ds(r, B), :] + best_val

    alpha = jax.lax.fori_loop(1, S, viterbi_step, alpha0, unroll=True)

    # termination: end_scores = alphas + transitions[STOP, :]
    end = alpha + stop_ref[...]                                         # (B, T)
    best_val = jnp.max(end, axis=1, keepdims=True)                      # (B, 1)
    best_tag = jnp.min(jnp.where(end == best_val, tag_iota, T),
                       axis=1, keepdims=True).astype(jnp.int32)         # (B, 1)
    score_ref[...] = best_val

    # ---------------- in-kernel backtracking (register carry, one store) --------
    col_iota = jax.lax.broadcasted_iota(jnp.int32, (B, S), 1)

    def back_step(k, carry):
        cur, seq = carry
        i = S - 1 - k                                                   # i: S-1 .. 1
        r = pl.multiple_of(i * B, B)
        bp_i = bp_buf[pl.ds(r, B), :]                                   # (B, T)
        prev = jnp.sum(jnp.where(tag_iota == cur, bp_i, 0),
                       axis=1, keepdims=True).astype(jnp.int32)         # one-hot gather
        seq = jnp.where(col_iota == (i - 1), prev, seq)
        return prev, seq

    seq0 = jnp.where(col_iota == (S - 1), best_tag, jnp.zeros((B, S), jnp.int32))
    _, seq = jax.lax.fori_loop(0, S - 1, back_step, (best_tag, seq0), unroll=True)
    tagseq_ref[...] = seq


# --------------------------------------------------------------------------
# Parameter construction (deterministic, shapes from the module's __init__)
# --------------------------------------------------------------------------
def make_params(key, vocab, H, lstm_hidden, T, start_idx, stop_idx):
    Hd = lstm_hidden // 2
    ks = jax.random.split(key, 12)

    def rnd(k, shape, scale=0.1):
        return jax.random.normal(k, shape, dtype=jnp.float32) * scale

    params = {
        "emb": rnd(ks[0], (vocab, H), 1.0),          # synthetic BERT embedding table
        "wih_f": rnd(ks[1], (4 * Hd, H)),
        "whh_f": rnd(ks[2], (4 * Hd, Hd)),
        "bih_f": rnd(ks[3], (4 * Hd,)),
        "bhh_f": rnd(ks[4], (4 * Hd,)),
        "wih_b": rnd(ks[5], (4 * Hd, H)),
        "whh_b": rnd(ks[6], (4 * Hd, Hd)),
        "bih_b": rnd(ks[7], (4 * Hd,)),
        "bhh_b": rnd(ks[8], (4 * Hd,)),
        "wtag": rnd(ks[9], (T, lstm_hidden)),
        "btag": rnd(ks[10], (T,)),
    }
    trans = jax.random.normal(ks[11], (T, T), dtype=jnp.float32)
    trans = trans.at[start_idx, :].set(-10000.0)
    trans = trans.at[:, stop_idx].set(-10000.0)
    params["transitions"] = trans
    return params


# --------------------------------------------------------------------------
# Wrapper-side weight layout plumbing (free: runs once in XLA outside the kernel)
# --------------------------------------------------------------------------
def _fuse_direction(wih, whh, b_ih, b_hh, dcol):
    """Place one direction's LSTM weights into the fused gate-grouped layout.

    Target column layout (8*Hd wide): [i_f,i_b | f_f,f_b | o_f,o_b | g_f,g_b],
    so the kernel runs ONE sigmoid over the first 6*Hd columns and ONE tanh over
    the last 2*Hd.  `dcol` = 0 selects the fwd half of each gate block, Hd the bwd half.
    PyTorch row order inside each weight is (i, f, g, o).
    """
    Hd4, H = wih.shape
    Hd = Hd4 // 4
    col_of = {"i": 0, "f": 2 * Hd, "o": 4 * Hd, "g": 6 * Hd}
    row_of = {"i": 0, "f": Hd, "g": 2 * Hd, "o": 3 * Hd}
    wih_out = jnp.zeros((H, 8 * Hd), jnp.float32)
    whh_out = jnp.zeros((Hd, 8 * Hd), jnp.float32)
    b_out = jnp.zeros((8 * Hd,), jnp.float32)
    bias = b_ih + b_hh
    for gate in ("i", "f", "o", "g"):
        r = row_of[gate]
        c = col_of[gate] + dcol
        wih_out = wih_out.at[:, c:c + Hd].set(wih[r:r + Hd, :].T)
        whh_out = whh_out.at[:, c:c + Hd].set(whh[r:r + Hd, :].T)
        b_out = b_out.at[c:c + Hd].set(bias[r:r + Hd])
    return wih_out, whh_out, b_out


# --------------------------------------------------------------------------
# Forward wrapper (weight prep + one fused pallas_call)
# --------------------------------------------------------------------------
def bert_bilstm_crf_forward(params, sentence, start_idx, stop_idx):
    B, S = sentence.shape
    H = params["emb"].shape[1]
    Hd = params["whh_f"].shape[1]
    T = params["wtag"].shape[0]

    # Pad batch to a multiple of 8 sublanes so vregs are full (B=2 -> 8).
    Bp = ((B + 7) // 8) * 8
    sent_p = jnp.pad(sentence, ((0, Bp - B), (0, 0)))

    # Synthetic BERT encoder: deterministic token-embedding lookup.
    # TODO(synk): pretrained BERT transformer stack approximated by embedding lookup.
    embs = params["emb"][sent_p]                   # (Bp, S, H)
    x_tm = jnp.transpose(embs, (1, 0, 2))          # (S, Bp, H) time-major
    x_rev = x_tm[::-1]                             # time-reversed for backward direction
    xx = jnp.concatenate([x_tm, x_rev], axis=-1).reshape(S * Bp, 2 * H)  # (S*Bp, 2H)

    # Fused, gate-permuted weights (both directions in one block-structured matrix).
    wih_f, whh_f, b_f = _fuse_direction(params["wih_f"], params["whh_f"],
                                        params["bih_f"], params["bhh_f"], 0)
    wih_b, whh_b, b_b = _fuse_direction(params["wih_b"], params["whh_b"],
                                        params["bih_b"], params["bhh_b"], Hd)
    wih_fused = jnp.concatenate([wih_f, wih_b], axis=0)    # (2H, 8Hd)
    whh_fused = jnp.concatenate([whh_f, whh_b], axis=0)    # (2Hd, 8Hd) block-diag
    bias_fused = (b_f + b_b)[None, :]                      # (1, 8Hd)

    wtag_t = params["wtag"].T                      # (2Hd, T): single hidden2tag dot
    btag = params["btag"][None, :]                 # (1, T)

    trans = params["transitions"]
    start_vec = trans[:, start_idx][None, :]       # transitions[:, START]  (1, T)
    stop_vec = trans[stop_idx, :][None, :]         # transitions[STOP, :]   (1, T)

    vmem = pl.BlockSpec(memory_space=pltpu.MemorySpace.VMEM)

    # TODO(synk): at real BERT sizes add a parallel batch grid axis (BlockSpec over Bp,
    # dimension_semantics=("parallel",)) and bf16 operands for the two bulk matmuls so
    # the design fits v7x's 64 MiB VMEM and uses both TensorCores.
    score, tag_seq = pl.pallas_call(
        fused_bilstm_crf_kernel,
        out_shape=(
            jax.ShapeDtypeStruct((Bp, 1), jnp.float32),   # best Viterbi score per row
            jax.ShapeDtypeStruct((Bp, S), jnp.int32),     # best tag sequence per row
        ),
        in_specs=[vmem] * 9,
        out_specs=(vmem, vmem),
        scratch_shapes=[
            pltpu.VMEM((S * Bp, 8 * Hd), jnp.float32),    # gin: pre-staged gate inputs
            pltpu.VMEM((S * Bp, 2 * Hd), jnp.float32),    # hid: [h_fwd | h_bwd] per position
            pltpu.VMEM((S * Bp, T), jnp.float32),         # emissions (stay on-chip)
            pltpu.VMEM((S * Bp, T), jnp.int32),           # backpointers (stay on-chip)
        ],
    )(xx, wih_fused, whh_fused, bias_fused, wtag_t, btag, trans, start_vec, stop_vec)

    return score[:B, 0], tag_seq[:B]


if __name__ == "__main__":
    key = jax.random.PRNGKey(0)
    B, S, vocab, H, lstm_hidden = 2, 8, 50, 32, 32
    start_idx = tag_to_ix[START_TAG]
    stop_idx = tag_to_ix[STOP_TAG]
    T = len(tag_to_ix)

    k_params, k_sent = jax.random.split(key)
    params = make_params(k_params, vocab, H, lstm_hidden, T, start_idx, stop_idx)
    sentence = jax.random.randint(k_sent, (B, S), 0, vocab, dtype=jnp.int32)

    fwd = jax.jit(functools.partial(bert_bilstm_crf_forward,
                                    start_idx=start_idx, stop_idx=stop_idx))
    score, tag_seq = fwd(params, sentence)
    jax.block_until_ready((score, tag_seq))
    print("KERNEL_OK")
</pallas_src>

<mosaic_0001>
module attributes {stable_mosaic.version = 11 : i64} {
  func.func @fused_bilstm_crf_kernel(%arg0: memref<64x64xf32, #tpu.memory_space<vmem>>, %arg1: memref<64x128xf32, #tpu.memory_space<vmem>>, %arg2: memref<32x128xf32, #tpu.memory_space<vmem>>, %arg3: memref<1x128xf32, #tpu.memory_space<vmem>>, %arg4: memref<32x5xf32, #tpu.memory_space<vmem>>, %arg5: memref<1x5xf32, #tpu.memory_space<vmem>>, %arg6: memref<5x5xf32, #tpu.memory_space<vmem>>, %arg7: memref<1x5xf32, #tpu.memory_space<vmem>>, %arg8: memref<1x5xf32, #tpu.memory_space<vmem>>, %arg9: memref<8x1xf32, #tpu.memory_space<vmem>>, %arg10: memref<8x8xi32, #tpu.memory_space<vmem>>, %arg11: memref<64x128xf32, #tpu.memory_space<vmem>>, %arg12: memref<64x32xf32, #tpu.memory_space<vmem>>, %arg13: memref<64x5xf32, #tpu.memory_space<vmem>>, %arg14: memref<64x5xi32, #tpu.memory_space<vmem>>) attributes {dimension_semantics = [], scalar_prefetch = 0 : i64, scratch_operands = 4 : i64, tpu.core_type = #tpu.core_type<tc>} {
    %c0 = arith.constant 0 : index
    %c0_0 = arith.constant 0 : index
    %0 = vector.load %arg0[%c0, %c0_0] : memref<64x64xf32, #tpu.memory_space<vmem>>, vector<64x64xf32>
    %c0_1 = arith.constant 0 : index
    %c0_2 = arith.constant 0 : index
    %1 = vector.load %arg1[%c0_1, %c0_2] : memref<64x128xf32, #tpu.memory_space<vmem>>, vector<64x128xf32>
    %cst = arith.constant dense<0.000000e+00> : vector<64x128xf32>
    %2 = tpu.matmul %0, %1, %cst {dimension_numbers = #tpu.dot_dimension_numbers<[1], [0], [0], [1], [0, 0, 1, 1], [], []>} : vector<64x64xf32>, vector<64x128xf32>, vector<64x128xf32> -> vector<64x128xf32>
    %c0_3 = arith.constant 0 : index
    %c0_4 = arith.constant 0 : index
    %3 = vector.load %arg3[%c0_3, %c0_4] : memref<1x128xf32, #tpu.memory_space<vmem>>, vector<1x128xf32>
    %4 = vector.broadcast %3 : vector<1x128xf32> to vector<64x128xf32>
    %5 = arith.addf %2, %4 : vector<64x128xf32>
    %c0_5 = arith.constant 0 : index
    %c0_6 = arith.constant 0 : index
    %6 = vector.load %arg11[%c0_5, %c0_6] : memref<64x128xf32, #tpu.memory_space<vmem>>, vector<64x128xf32>
    tpu.vector_store %arg11[%c0_5, %c0_6], %5 {strides = array<i32>} : memref<64x128xf32, #tpu.memory_space<vmem>>, vector<64x128xf32>,
    %c0_7 = arith.constant 0 : index
    %c0_8 = arith.constant 0 : index
    %7 = vector.load %arg2[%c0_7, %c0_8] : memref<32x128xf32, #tpu.memory_space<vmem>>, vector<32x128xf32>
    %cst_9 = arith.constant 0.000000e+00 : f32
    %8 = vector.broadcast %cst_9 : f32 to vector<8x32xf32>
    %c0_i32 = arith.constant 0 : i32
    %c8_i32 = arith.constant 8 : i32
    %9 = arith.muli %c0_i32, %c8_i32 : i32
    %10 = tpu.assume_multiple %9, 8 : i32
    %11 = arith.index_cast %10 : i32 to index
    %c0_10 = arith.constant 0 : index
    %12 = vector.load %arg11[%11, %c0_10] : memref<64x128xf32, #tpu.memory_space<vmem>>, vector<8x128xf32>
    %cst_11 = arith.constant dense<0.000000e+00> : vector<8x128xf32>
    %13 = tpu.matmul %8, %7, %cst_11 {dimension_numbers = #tpu.dot_dimension_numbers<[1], [0], [0], [1], [0, 0, 1, 1], [], []>} : vector<8x32xf32>, vector<32x128xf32>, vector<8x128xf32> -> vector<8x128xf32>
    %14 = arith.addf %12, %13 : vector<8x128xf32>
    %15 = vector.extract_strided_slice %14 {offsets = [0, 0], sizes = [8, 96], strides = [1, 1]} : vector<8x128xf32> to vector<8x96xf32>
    %16 = arith.negf %15 : vector<8x96xf32>
    %17 = math.exp %16 : vector<8x96xf32>
    %cst_12 = arith.constant 1.000000e+00 : f32
    %18 = vector.broadcast %cst_12 : f32 to vector<8x96xf32>
    %19 = arith.addf %18, %17 : vector<8x96xf32>
    %20 = arith.divf %18, %19 : vector<8x96xf32>
    %21 = vector.extract_strided_slice %14 {offsets = [0, 96], sizes = [8, 32], strides = [1, 1]} : vector<8x128xf32> to vector<8x32xf32>
    %22 = math.tanh %21 : vector<8x32xf32>
    %23 = vector.extract_strided_slice %20 {offsets = [0, 0], sizes = [8, 32], strides = [1, 1]} : vector<8x96xf32> to vector<8x32xf32>
    %24 = vector.extract_strided_slice %20 {offsets = [0, 32], sizes = [8, 32], strides = [1, 1]} : vector<8x96xf32> to vector<8x32xf32>
    %25 = vector.extract_strided_slice %20 {offsets = [0, 64], sizes = [8, 32], strides = [1, 1]} : vector<8x96xf32> to vector<8x32xf32>
    %26 = arith.mulf %24, %8 : vector<8x32xf32>
    %27 = arith.mulf %23, %22 : vector<8x32xf32>
    %28 = arith.addf %26, %27 : vector<8x32xf32>
    %29 = math.tanh %28 : vector<8x32xf32>
    %30 = arith.mulf %25, %29 : vector<8x32xf32>
    %c7_i32 = arith.constant 7 : i32
    %31 = arith.subi %c7_i32, %c0_i32 : i32
    %c8_i32_13 = arith.constant 8 : i32
    %32 = arith.muli %31, %c8_i32_13 : i32
    %33 = tpu.assume_multiple %32, 8 : i32
    %34 = vector.extract_strided_slice %30 {offsets = [0, 0], sizes = [8, 16], strides = [1, 1]} : vector<8x32xf32> to vector<8x16xf32>
    %35 = arith.index_cast %10 : i32 to index
    %c0_14 = arith.constant 0 : index
    %36 = vector.load %arg12[%35, %c0_14] : memref<64x32xf32, #tpu.memory_space<vmem>>, vector<8x16xf32>
    tpu.vector_store %arg12[%35, %c0_14], %34 {strides = array<i32>} : memref<64x32xf32, #tpu.memory_space<vmem>>, vector<8x16xf32>,
    %37 = vector.extract_strided_slice %30 {offsets = [0, 16], sizes = [8, 16], strides = [1, 1]} : vector<8x32xf32> to vector<8x16xf32>
    %38 = arith.index_cast %33 : i32 to index
    %c16 = arith.constant 16 : index
    %39 = vector.load %arg12[%38, %c16] : memref<64x32xf32, #tpu.memory_space<vmem>>, vector<8x16xf32>
    tpu.vector_store %arg12[%38, %c16], %37 {strides = array<i32>} : memref<64x32xf32, #tpu.memory_space<vmem>>, vector<8x16xf32>,
    %c1_i32 = arith.constant 1 : i32
    %c8_i32_15 = arith.constant 8 : i32
    %40 = arith.muli %c1_i32, %c8_i32_15 : i32
    %41 = tpu.assume_multiple %40, 8 : i32
    %42 = arith.index_cast %41 : i32 to index
    %c0_16 = arith.constant 0 : index
    %43 = vector.load %arg11[%42, %c0_16] : memref<64x128xf32, #tpu.memory_space<vmem>>, vector<8x128xf32>
    %cst_17 = arith.constant dense<0.000000e+00> : vector<8x128xf32>
    %44 = tpu.matmul %30, %7, %cst_17 {dimension_numbers = #tpu.dot_dimension_numbers<[1], [0], [0], [1], [0, 0, 1, 1], [], []>} : vector<8x32xf32>, vector<32x128xf32>, vector<8x128xf32> -> vector<8x128xf32>
    %45 = arith.addf %43, %44 : vector<8x128xf32>
    %46 = vector.extract_strided_slice %45 {offsets = [0, 0], sizes = [8, 96], strides = [1, 1]} : vector<8x128xf32> to vector<8x96xf32>
    %47 = arith.negf %46 : vector<8x96xf32>
    %48 = math.exp %47 : vector<8x96xf32>
    %cst_18 = arith.constant 1.000000e+00 : f32
    %49 = vector.broadcast %cst_18 : f32 to vector<8x96xf32>
    %50 = arith.addf %49, %48 : vector<8x96xf32>
    %51 = arith.divf %49, %50 : vector<8x96xf32>
    %52 = vector.extract_strided_slice %45 {offsets = [0, 96], sizes = [8, 32], strides = [1, 1]} : vector<8x128xf32> to vector<8x32xf32>
    %53 = math.tanh %52 : vector<8x32xf32>
    %54 = vector.extract_strided_slice %51 {offsets = [0, 0], sizes = [8, 32], strides = [1, 1]} : vector<8x96xf32> to vector<8x32xf32>
    %55 = vector.extract_strided_slice %51 {offsets = [0, 32], sizes = [8, 32], strides = [1, 1]} : vector<8x96xf32> to vector<8x32xf32>
    %56 = vector.extract_strided_slice %51 {offsets = [0, 64], sizes = [8, 32], strides = [1, 1]} : vector<8x96xf32> to vector<8x32xf32>
    %57 = arith.mulf %55, %28 : vector<8x32xf32>
    %58 = arith.mulf %54, %53 : vector<8x32xf32>
    %59 = arith.addf %57, %58 : vector<8x32xf32>
    %60 = math.tanh %59 : vector<8x32xf32>
    %61 = arith.mulf %56, %60 : vector<8x32xf32>
    %c7_i32_19 = arith.constant 7 : i32
    %62 = arith.subi %c7_i32_19, %c1_i32 : i32
    %c8_i32_20 = arith.constant 8 : i32
    %63 = arith.muli %62, %c8_i32_20 : i32
    %64 = tpu.assume_multiple %63, 8 : i32
    %65 = vector.extract_strided_slice %61 {offsets = [0, 0], sizes = [8, 16], strides = [1, 1]} : vector<8x32xf32> to vector<8x16xf32>
    %66 = arith.index_cast %41 : i32 to index
    %c0_21 = arith.constant 0 : index
    %67 = vector.load %arg12[%66, %c0_21] : memref<64x32xf32, #tpu.memory_space<vmem>>, vector<8x16xf32>
    tpu.vector_store %arg12[%66, %c0_21], %65 {strides = array<i32>} : memref<64x32xf32, #tpu.memory_space<vmem>>, vector<8x16xf32>,
    %68 = vector.extract_strided_slice %61 {offsets = [0, 16], sizes = [8, 16], strides = [1, 1]} : vector<8x32xf32> to vector<8x16xf32>
    %69 = arith.index_cast %64 : i32 to index
    %c16_22 = arith.constant 16 : index
    %70 = vector.load %arg12[%69, %c16_22] : memref<64x32xf32, #tpu.memory_space<vmem>>, vector<8x16xf32>
    tpu.vector_store %arg12[%69, %c16_22], %68 {strides = array<i32>} : memref<64x32xf32, #tpu.memory_space<vmem>>, vector<8x16xf32>,
    %c2_i32 = arith.constant 2 : i32
    %c8_i32_23 = arith.constant 8 : i32
    %71 = arith.muli %c2_i32, %c8_i32_23 : i32
    %72 = tpu.assume_multiple %71, 8 : i32
    %73 = arith.index_cast %72 : i32 to index
    %c0_24 = arith.constant 0 : index
    %74 = vector.load %arg11[%73, %c0_24] : memref<64x128xf32, #tpu.memory_space<vmem>>, vector<8x128xf32>
    %cst_25 = arith.constant dense<0.000000e+00> : vector<8x128xf32>
    %75 = tpu.matmul %61, %7, %cst_25 {dimension_numbers = #tpu.dot_dimension_numbers<[1], [0], [0], [1], [0, 0, 1, 1], [], []>} : vector<8x32xf32>, vector<32x128xf32>, vector<8x128xf32> -> vector<8x128xf32>
    %76 = arith.addf %74, %75 : vector<8x128xf32>
    %77 = vector.extract_strided_slice %76 {offsets = [0, 0], sizes = [8, 96], strides = [1, 1]} : vector<8x128xf32> to vector<8x96xf32>
    %78 = arith.negf %77 : vector<8x96xf32>
    %79 = math.exp %78 : vector<8x96xf32>
    %cst_26 = arith.constant 1.000000e+00 : f32
    %80 = vector.broadcast %cst_26 : f32 to vector<8x96xf32>
    %81 = arith.addf %80, %79 : vector<8x96xf32>
    %82 = arith.divf %80, %81 : vector<8x96xf32>
    %83 = vector.extract_strided_slice %76 {offsets = [0, 96], sizes = [8, 32], strides = [1, 1]} : vector<8x128xf32> to vector<8x32xf32>
    %84 = math.tanh %83 : vector<8x32xf32>
    %85 = vector.extract_strided_slice %82 {offsets = [0, 0], sizes = [8, 32], strides = [1, 1]} : vector<8x96xf32> to vector<8x32xf32>
    %86 = vector.extract_strided_slice %82 {offsets = [0, 32], sizes = [8, 32], strides = [1, 1]} : vector<8x96xf32> to vector<8x32xf32>
    %87 = vector.extract_strided_slice %82 {offsets = [0, 64], sizes = [8, 32], strides = [1, 1]} : vector<8x96xf32> to vector<8x32xf32>
    %88 = arith.mulf %86, %59 : vector<8x32xf32>
    %89 = arith.mulf %85, %84 : vector<8x32xf32>
    %90 = arith.addf %88, %89 : vector<8x32xf32>
    %91 = math.tanh %90 : vector<8x32xf32>
    %92 = arith.mulf %87, %91 : vector<8x32xf32>
    %c7_i32_27 = arith.constant 7 : i32
    %93 = arith.subi %c7_i32_27, %c2_i32 : i32
    %c8_i32_28 = arith.constant 8 : i32
    %94 = arith.muli %93, %c8_i32_28 : i32
    %95 = tpu.assume_multiple %94, 8 : i32
    %96 = vector.extract_strided_slice %92 {offsets = [0, 0], sizes = [8, 16], strides = [1, 1]} : vector<8x32xf32> to vector<8x16xf32>
    %97 = arith.index_cast %72 : i32 to index
    %c0_29 = arith.constant 0 : index
    %98 = vector.load %arg12[%97, %c0_29] : memref<64x32xf32, #tpu.memory_space<vmem>>, vector<8x16xf32>
    tpu.vector_store %arg12[%97, %c0_29], %96 {strides = array<i32>} : memref<64x32xf32, #tpu.memory_space<vmem>>, vector<8x16xf32>,
    %99 = vector.extract_strided_slice %92 {offsets = [0, 16], sizes = [8, 16], strides = [1, 1]} : vector<8x32xf32> to vector<8x16xf32>
    %100 = arith.index_cast %95 : i32 to index
    %c16_30 = arith.constant 16 : index
    %101 = vector.load %arg12[%100, %c16_30] : memref<64x32xf32, #tpu.memory_space<vmem>>, vector<8x16xf32>
    tpu.vector_store %arg12[%100, %c16_30], %99 {strides = array<i32>} : memref<64x32xf32, #tpu.memory_space<vmem>>, vector<8x16xf32>,
    %c3_i32 = arith.constant 3 : i32
    %c8_i32_31 = arith.constant 8 : i32
    %102 = arith.muli %c3_i32, %c8_i32_31 : i32
    %103 = tpu.assume_multiple %102, 8 : i32
    %104 = arith.index_cast %103 : i32 to index
    %c0_32 = arith.constant 0 : index
    %105 = vector.load %arg11[%104, %c0_32] : memref<64x128xf32, #tpu.memory_space<vmem>>, vector<8x128xf32>
    %cst_33 = arith.constant dense<0.000000e+00> : vector<8x128xf32>
    %106 = tpu.matmul %92, %7, %cst_33 {dimension_numbers = #tpu.dot_dimension_numbers<[1], [0], [0], [1], [0, 0, 1, 1], [], []>} : vector<8x32xf32>, vector<32x128xf32>, vector<8x128xf32> -> vector<8x128xf32>
    %107 = arith.addf %105, %106 : vector<8x128xf32>
    %108 = vector.extract_strided_slice %107 {offsets = [0, 0], sizes = [8, 96], strides = [1, 1]} : vector<8x128xf32> to vector<8x96xf32>
    %109 = arith.negf %108 : vector<8x96xf32>
    %110 = math.exp %109 : vector<8x96xf32>
    %cst_34 = arith.constant 1.000000e+00 : f32
    %111 = vector.broadcast %cst_34 : f32 to vector<8x96xf32>
    %112 = arith.addf %111, %110 : vector<8x96xf32>
    %113 = arith.divf %111, %112 : vector<8x96xf32>
    %114 = vector.extract_strided_slice %107 {offsets = [0, 96], sizes = [8, 32], strides = [1, 1]} : vector<8x128xf32> to vector<8x32xf32>
    %115 = math.tanh %114 : vector<8x32xf32>
    %116 = vector.extract_strided_slice %113 {offsets = [0, 0], sizes = [8, 32], strides = [1, 1]} : vector<8x96xf32> to vector<8x32xf32>
    %117 = vector.extract_strided_slice %113 {offsets = [0, 32], sizes = [8, 32], strides = [1, 1]} : vector<8x96xf32> to vector<8x32xf32>
    %118 = vector.extract_strided_slice %113 {offsets = [0, 64], sizes = [8, 32], strides = [1, 1]} : vector<8x96xf32> to vector<8x32xf32>
    %119 = arith.mulf %117, %90 : vector<8x32xf32>
    %120 = arith.mulf %116, %115 : vector<8x32xf32>
    %121 = arith.addf %119, %120 : vector<8x32xf32>
    %122 = math.tanh %121 : vector<8x32xf32>
    %123 = arith.mulf %118, %122 : vector<8x32xf32>
    %c7_i32_35 = arith.constant 7 : i32
    %124 = arith.subi %c7_i32_35, %c3_i32 : i32
    %c8_i32_36 = arith.constant 8 : i32
    %125 = arith.muli %124, %c8_i32_36 : i32
    %126 = tpu.assume_multiple %125, 8 : i32
    %127 = vector.extract_strided_slice %123 {offsets = [0, 0], sizes = [8, 16], strides = [1, 1]} : vector<8x32xf32> to vector<8x16xf32>
    %128 = arith.index_cast %103 : i32 to index
    %c0_37 = arith.constant 0 : index
    %129 = vector.load %arg12[%128, %c0_37] : memref<64x32xf32, #tpu.memory_space<vmem>>, vector<8x16xf32>
    tpu.vector_store %arg12[%128, %c0_37], %127 {strides = array<i32>} : memref<64x32xf32, #tpu.memory_space<vmem>>, vector<8x16xf32>,
    %130 = vector.extract_strided_slice %123 {offsets = [0, 16], sizes = [8, 16], strides = [1, 1]} : vector<8x32xf32> to vector<8x16xf32>
    %131 = arith.index_cast %126 : i32 to index
    %c16_38 = arith.constant 16 : index
    %132 = vector.load %arg12[%131, %c16_38] : memref<64x32xf32, #tpu.memory_space<vmem>>, vector<8x16xf32>
    tpu.vector_store %arg12[%131, %c16_38], %130 {strides = array<i32>} : memref<64x32xf32, #tpu.memory_space<vmem>>, vector<8x16xf32>,
    %c4_i32 = arith.constant 4 : i32
    %c8_i32_39 = arith.constant 8 : i32
    %133 = arith.muli %c4_i32, %c8_i32_39 : i32
    %134 = tpu.assume_multiple %133, 8 : i32
    %135 = arith.index_cast %134 : i32 to index
    %c0_40 = arith.constant 0 : index
    %136 = vector.load %arg11[%135, %c0_40] : memref<64x128xf32, #tpu.memory_space<vmem>>, vector<8x128xf32>
    %cst_41 = arith.constant dense<0.000000e+00> : vector<8x128xf32>
    %137 = tpu.matmul %123, %7, %cst_41 {dimension_numbers = #tpu.dot_dimension_numbers<[1], [0], [0], [1], [0, 0, 1, 1], [], []>} : vector<8x32xf32>, vector<32x128xf32>, vector<8x128xf32> -> vector<8x128xf32>
    %138 = arith.addf %136, %137 : vector<8x128xf32>
    %139 = vector.extract_strided_slice %138 {offsets = [0, 0], sizes = [8, 96], strides = [1, 1]} : vector<8x128xf32> to vector<8x96xf32>
    %140 = arith.negf %139 : vector<8x96xf32>
    %141 = math.exp %140 : vector<8x96xf32>
    %cst_42 = arith.constant 1.000000e+00 : f32
    %142 = vector.broadcast %cst_42 : f32 to vector<8x96xf32>
    %143 = arith.addf %142, %141 : vector<8x96xf32>
    %144 = arith.divf %142, %143 : vector<8x96xf32>
    %145 = vector.extract_strided_slice %138 {offsets = [0, 96], sizes = [8, 32], strides = [1, 1]} : vector<8x128xf32> to vector<8x32xf32>
    %146 = math.tanh %145 : vector<8x32xf32>
    %147 = vector.extract_strided_slice %144 {offsets = [0, 0], sizes = [8, 32], strides = [1, 1]} : vector<8x96xf32> to vector<8x32xf32>
    %148 = vector.extract_strided_slice %144 {offsets = [0, 32], sizes = [8, 32], strides = [1, 1]} : vector<8x96xf32> to vector<8x32xf32>
    %149 = vector.extract_strided_slice %144 {offsets = [0, 64], sizes = [8, 32], strides = [1, 1]} : vector<8x96xf32> to vector<8x32xf32>
    %150 = arith.mulf %148, %121 : vector<8x32xf32>
    %151 = arith.mulf %147, %146 : vector<8x32xf32>
    %152 = arith.addf %150, %151 : vector<8x32xf32>
    %153 = math.tanh %152 : vector<8x32xf32>
    %154 = arith.mulf %149, %153 : vector<8x32xf32>
    %c7_i32_43 = arith.constant 7 : i32
    %155 = arith.subi %c7_i32_43, %c4_i32 : i32
    %c8_i32_44 = arith.constant 8 : i32
    %156 = arith.muli %155, %c8_i32_44 : i32
    %157 = tpu.assume_multiple %156, 8 : i32
    %158 = vector.extract_strided_slice %154 {offsets = [0, 0], sizes = [8, 16], strides = [1, 1]} : vector<8x32xf32> to vector<8x16xf32>
    %159 = arith.index_cast %134 : i32 to index
    %c0_45 = arith.constant 0 : index
    %160 = vector.load %arg12[%159, %c0_45] : memref<64x32xf32, #tpu.memory_space<vmem>>, vector<8x16xf32>
    tpu.vector_store %arg12[%159, %c0_45], %158 {strides = array<i32>} : memref<64x32xf32, #tpu.memory_space<vmem>>, vector<8x16xf32>,
    %161 = vector.extract_strided_slice %154 {offsets = [0, 16], sizes = [8, 16], strides = [1, 1]} : vector<8x32xf32> to vector<8x16xf32>
    %162 = arith.index_cast %157 : i32 to index
    %c16_46 = arith.constant 16 : index
    %163 = vector.load %arg12[%162, %c16_46] : memref<64x32xf32, #tpu.memory_space<vmem>>, vector<8x16xf32>
    tpu.vector_store %arg12[%162, %c16_46], %161 {strides = array<i32>} : memref<64x32xf32, #tpu.memory_space<vmem>>, vector<8x16xf32>,
    %c5_i32 = arith.constant 5 : i32
    %c8_i32_47 = arith.constant 8 : i32
    %164 = arith.muli %c5_i32, %c8_i32_47 : i32
    %165 = tpu.assume_multiple %164, 8 : i32
    %166 = arith.index_cast %165 : i32 to index
    %c0_48 = arith.constant 0 : index
    %167 = vector.load %arg11[%166, %c0_48] : memref<64x128xf32, #tpu.memory_space<vmem>>, vector<8x128xf32>
    %cst_49 = arith.constant dense<0.000000e+00> : vector<8x128xf32>
    %168 = tpu.matmul %154, %7, %cst_49 {dimension_numbers = #tpu.dot_dimension_numbers<[1], [0], [0], [1], [0, 0, 1, 1], [], []>} : vector<8x32xf32>, vector<32x128xf32>, vector<8x128xf32> -> vector<8x128xf32>
    %169 = arith.addf %167, %168 : vector<8x128xf32>
    %170 = vector.extract_strided_slice %169 {offsets = [0, 0], sizes = [8, 96], strides = [1, 1]} : vector<8x128xf32> to vector<8x96xf32>
    %171 = arith.negf %170 : vector<8x96xf32>
    %172 = math.exp %171 : vector<8x96xf32>
    %cst_50 = arith.constant 1.000000e+00 : f32
    %173 = vector.broadcast %cst_50 : f32 to vector<8x96xf32>
    %174 = arith.addf %173, %172 : vector<8x96xf32>
    %175 = arith.divf %173, %174 : vector<8x96xf32>
    %176 = vector.extract_strided_slice %169 {offsets = [0, 96], sizes = [8, 32], strides = [1, 1]} : vector<8x128xf32> to vector<8x32xf32>
    %177 = math.tanh %176 : vector<8x32xf32>
    %178 = vector.extract_strided_slice %175 {offsets = [0, 0], sizes = [8, 32], strides = [1, 1]} : vector<8x96xf32> to vector<8x32xf32>
    %179 = vector.extract_strided_slice %175 {offsets = [0, 32], sizes = [8, 32], strides = [1, 1]} : vector<8x96xf32> to vector<8x32xf32>
    %180 = vector.extract_strided_slice %175 {offsets = [0, 64], sizes = [8, 32], strides = [1, 1]} : vector<8x96xf32> to vector<8x32xf32>
    %181 = arith.mulf %179, %152 : vector<8x32xf32>
    %182 = arith.mulf %178, %177 : vector<8x32xf32>
    %183 = arith.addf %181, %182 : vector<8x32xf32>
    %184 = math.tanh %183 : vector<8x32xf32>
    %185 = arith.mulf %180, %184 : vector<8x32xf32>
    %c7_i32_51 = arith.constant 7 : i32
    %186 = arith.subi %c7_i32_51, %c5_i32 : i32
    %c8_i32_52 = arith.constant 8 : i32
    %187 = arith.muli %186, %c8_i32_52 : i32
    %188 = tpu.assume_multiple %187, 8 : i32
    %189 = vector.extract_strided_slice %185 {offsets = [0, 0], sizes = [8, 16], strides = [1, 1]} : vector<8x32xf32> to vector<8x16xf32>
    %190 = arith.index_cast %165 : i32 to index
    %c0_53 = arith.constant 0 : index
    %191 = vector.load %arg12[%190, %c0_53] : memref<64x32xf32, #tpu.memory_space<vmem>>, vector<8x16xf32>
    tpu.vector_store %arg12[%190, %c0_53], %189 {strides = array<i32>} : memref<64x32xf32, #tpu.memory_space<vmem>>, vector<8x16xf32>,
    %192 = vector.extract_strided_slice %185 {offsets = [0, 16], sizes = [8, 16], strides = [1, 1]} : vector<8x32xf32> to vector<8x16xf32>
    %193 = arith.index_cast %188 : i32 to index
    %c16_54 = arith.constant 16 : index
    %194 = vector.load %arg12[%193, %c16_54] : memref<64x32xf32, #tpu.memory_space<vmem>>, vector<8x16xf32>
    tpu.vector_store %arg12[%193, %c16_54], %192 {strides = array<i32>} : memref<64x32xf32, #tpu.memory_space<vmem>>, vector<8x16xf32>,
    %c6_i32 = arith.constant 6 : i32
    %c8_i32_55 = arith.constant 8 : i32
    %195 = arith.muli %c6_i32, %c8_i32_55 : i32
    %196 = tpu.assume_multiple %195, 8 : i32
    %197 = arith.index_cast %196 : i32 to index
    %c0_56 = arith.constant 0 : index
    %198 = vector.load %arg11[%197, %c0_56] : memref<64x128xf32, #tpu.memory_space<vmem>>, vector<8x128xf32>
    %cst_57 = arith.constant dense<0.000000e+00> : vector<8x128xf32>
    %199 = tpu.matmul %185, %7, %cst_57 {dimension_numbers = #tpu.dot_dimension_numbers<[1], [0], [0], [1], [0, 0, 1, 1], [], []>} : vector<8x32xf32>, vector<32x128xf32>, vector<8x128xf32> -> vector<8x128xf32>
    %200 = arith.addf %198, %199 : vector<8x128xf32>
    %201 = vector.extract_strided_slice %200 {offsets = [0, 0], sizes = [8, 96], strides = [1, 1]} : vector<8x128xf32> to vector<8x96xf32>
    %202 = arith.negf %201 : vector<8x96xf32>
    %203 = math.exp %202 : vector<8x96xf32>
    %cst_58 = arith.constant 1.000000e+00 : f32
    %204 = vector.broadcast %cst_58 : f32 to vector<8x96xf32>
    %205 = arith.addf %204, %203 : vector<8x96xf32>
    %206 = arith.divf %204, %205 : vector<8x96xf32>
    %207 = vector.extract_strided_slice %200 {offsets = [0, 96], sizes = [8, 32], strides = [1, 1]} : vector<8x128xf32> to vector<8x32xf32>
    %208 = math.tanh %207 : vector<8x32xf32>
    %209 = vector.extract_strided_slice %206 {offsets = [0, 0], sizes = [8, 32], strides = [1, 1]} : vector<8x96xf32> to vector<8x32xf32>
    %210 = vector.extract_strided_slice %206 {offsets = [0, 32], sizes = [8, 32], strides = [1, 1]} : vector<8x96xf32> to vector<8x32xf32>
    %211 = vector.extract_strided_slice %206 {offsets = [0, 64], sizes = [8, 32], strides = [1, 1]} : vector<8x96xf32> to vector<8x32xf32>
    %212 = arith.mulf %210, %183 : vector<8x32xf32>
    %213 = arith.mulf %209, %208 : vector<8x32xf32>
    %214 = arith.addf %212, %213 : vector<8x32xf32>
    %215 = math.tanh %214 : vector<8x32xf32>
    %216 = arith.mulf %211, %215 : vector<8x32xf32>
    %c7_i32_59 = arith.constant 7 : i32
    %217 = arith.subi %c7_i32_59, %c6_i32 : i32
    %c8_i32_60 = arith.constant 8 : i32
    %218 = arith.muli %217, %c8_i32_60 : i32
    %219 = tpu.assume_multiple %218, 8 : i32
    %220 = vector.extract_strided_slice %216 {offsets = [0, 0], sizes = [8, 16], strides = [1, 1]} : vector<8x32xf32> to vector<8x16xf32>
    %221 = arith.index_cast %196 : i32 to index
    %c0_61 = arith.constant 0 : index
    %222 = vector.load %arg12[%221, %c0_61] : memref<64x32xf32, #tpu.memory_space<vmem>>, vector<8x16xf32>
    tpu.vector_store %arg12[%221, %c0_61], %220 {strides = array<i32>} : memref<64x32xf32, #tpu.memory_space<vmem>>, vector<8x16xf32>,
    %223 = vector.extract_strided_slice %216 {offsets = [0, 16], sizes = [8, 16], strides = [1, 1]} : vector<8x32xf32> to vector<8x16xf32>
    %224 = arith.index_cast %219 : i32 to index
    %c16_62 = arith.constant 16 : index
    %225 = vector.load %arg12[%224, %c16_62] : memref<64x32xf32, #tpu.memory_space<vmem>>, vector<8x16xf32>
    tpu.vector_store %arg12[%224, %c16_62], %223 {strides = array<i32>} : memref<64x32xf32, #tpu.memory_space<vmem>>, vector<8x16xf32>,
    %c7_i32_63 = arith.constant 7 : i32
    %c8_i32_64 = arith.constant 8 : i32
    %226 = arith.muli %c7_i32_63, %c8_i32_64 : i32
    %227 = tpu.assume_multiple %226, 8 : i32
    %228 = arith.index_cast %227 : i32 to index
    %c0_65 = arith.constant 0 : index
    %229 = vector.load %arg11[%228, %c0_65] : memref<64x128xf32, #tpu.memory_space<vmem>>, vector<8x128xf32>
    %cst_66 = arith.constant dense<0.000000e+00> : vector<8x128xf32>
    %230 = tpu.matmul %216, %7, %cst_66 {dimension_numbers = #tpu.dot_dimension_numbers<[1], [0], [0], [1], [0, 0, 1, 1], [], []>} : vector<8x32xf32>, vector<32x128xf32>, vector<8x128xf32> -> vector<8x128xf32>
    %231 = arith.addf %229, %230 : vector<8x128xf32>
    %232 = vector.extract_strided_slice %231 {offsets = [0, 0], sizes = [8, 96], strides = [1, 1]} : vector<8x128xf32> to vector<8x96xf32>
    %233 = arith.negf %232 : vector<8x96xf32>
    %234 = math.exp %233 : vector<8x96xf32>
    %cst_67 = arith.constant 1.000000e+00 : f32
    %235 = vector.broadcast %cst_67 : f32 to vector<8x96xf32>
    %236 = arith.addf %235, %234 : vector<8x96xf32>
    %237 = arith.divf %235, %236 : vector<8x96xf32>
    %238 = vector.extract_strided_slice %231 {offsets = [0, 96], sizes = [8, 32], strides = [1, 1]} : vector<8x128xf32> to vector<8x32xf32>
    %239 = math.tanh %238 : vector<8x32xf32>
    %240 = vector.extract_strided_slice %237 {offsets = [0, 0], sizes = [8, 32], strides = [1, 1]} : vector<8x96xf32> to vector<8x32xf32>
    %241 = vector.extract_strided_slice %237 {offsets = [0, 32], sizes = [8, 32], strides = [1, 1]} : vector<8x96xf32> to vector<8x32xf32>
    %242 = vector.extract_strided_slice %237 {offsets = [0, 64], sizes = [8, 32], strides = [1, 1]} : vector<8x96xf32> to vector<8x32xf32>
    %243 = arith.mulf %241, %214 : vector<8x32xf32>
    %244 = arith.mulf %240, %239 : vector<8x32xf32>
    %245 = arith.addf %243, %244 : vector<8x32xf32>
    %246 = math.tanh %245 : vector<8x32xf32>
    %247 = arith.mulf %242, %246 : vector<8x32xf32>
    %c7_i32_68 = arith.constant 7 : i32
    %248 = arith.subi %c7_i32_68, %c7_i32_63 : i32
    %c8_i32_69 = arith.constant 8 : i32
    %249 = arith.muli %248, %c8_i32_69 : i32
    %250 = tpu.assume_multiple %249, 8 : i32
    %251 = vector.extract_strided_slice %247 {offsets = [0, 0], sizes = [8, 16], strides = [1, 1]} : vector<8x32xf32> to vector<8x16xf32>
    %252 = arith.index_cast %227 : i32 to index
    %c0_70 = arith.constant 0 : index
    %253 = vector.load %arg12[%252, %c0_70] : memref<64x32xf32, #tpu.memory_space<vmem>>, vector<8x16xf32>
    tpu.vector_store %arg12[%252, %c0_70], %251 {strides = array<i32>} : memref<64x32xf32, #tpu.memory_space<vmem>>, vector<8x16xf32>,
    %254 = vector.extract_strided_slice %247 {offsets = [0, 16], sizes = [8, 16], strides = [1, 1]} : vector<8x32xf32> to vector<8x16xf32>
    %255 = arith.index_cast %250 : i32 to index
    %c16_71 = arith.constant 16 : index
    %256 = vector.load %arg12[%255, %c16_71] : memref<64x32xf32, #tpu.memory_space<vmem>>, vector<8x16xf32>
    tpu.vector_store %arg12[%255, %c16_71], %254 {strides = array<i32>} : memref<64x32xf32, #tpu.memory_space<vmem>>, vector<8x16xf32>,
    %c8_i32_72 = arith.constant 8 : i32
    %c0_73 = arith.constant 0 : index
    %c0_74 = arith.constant 0 : index
    %257 = vector.load %arg12[%c0_73, %c0_74] : memref<64x32xf32, #tpu.memory_space<vmem>>, vector<64x32xf32>
    %c0_75 = arith.constant 0 : index
    %c0_76 = arith.constant 0 : index
    %258 = vector.load %arg4[%c0_75, %c0_76] : memref<32x5xf32, #tpu.memory_space<vmem>>, vector<32x5xf32>
    %cst_77 = arith.constant dense<0.000000e+00> : vector<64x5xf32>
    %259 = tpu.matmul %257, %258, %cst_77 {dimension_numbers = #tpu.dot_dimension_numbers<[1], [0], [0], [1], [0, 0, 1, 1], [], []>} : vector<64x32xf32>, vector<32x5xf32>, vector<64x5xf32> -> vector<64x5xf32>
    %c0_78 = arith.constant 0 : index
    %c0_79 = arith.constant 0 : index
    %260 = vector.load %arg5[%c0_78, %c0_79] : memref<1x5xf32, #tpu.memory_space<vmem>>, vector<1x5xf32>
    %261 = vector.broadcast %260 : vector<1x5xf32> to vector<64x5xf32>
    %262 = arith.addf %259, %261 : vector<64x5xf32>
    %c0_80 = arith.constant 0 : index
    %c0_81 = arith.constant 0 : index
    %263 = vector.load %arg13[%c0_80, %c0_81] : memref<64x5xf32, #tpu.memory_space<vmem>>, vector<64x5xf32>
    tpu.vector_store %arg13[%c0_80, %c0_81], %262 {strides = array<i32>} : memref<64x5xf32, #tpu.memory_space<vmem>>, vector<64x5xf32>,
    %c0_82 = arith.constant 0 : index
    %c0_83 = arith.constant 0 : index
    %264 = vector.load %arg6[%c0_82, %c0_83] : memref<5x5xf32, #tpu.memory_space<vmem>>, vector<5x5xf32>
    %265 = vector.shape_cast %264 : vector<5x5xf32> to vector<1x5x5xf32>
    %266 = vector.shape_cast %265 : vector<1x5x5xf32> to vector<1x5x5xf32>
    %267 = vector.broadcast %266 : vector<1x5x5xf32> to vector<8x5x5xf32>
    %268 = tpu.iota {dimensions = array<i32: 1>} : vector<8x5x5xi32>
    %269 = tpu.iota {dimensions = array<i32: 1>} : vector<8x5xi32>
    %c0_84 = arith.constant 0 : index
    %c0_85 = arith.constant 0 : index
    %270 = vector.load %arg7[%c0_84, %c0_85] : memref<1x5xf32, #tpu.memory_space<vmem>>, vector<1x5xf32>
    %c0_86 = arith.constant 0 : index
    %c0_87 = arith.constant 0 : index
    %271 = vector.load %arg13[%c0_86, %c0_87] : memref<64x5xf32, #tpu.memory_space<vmem>>, vector<8x5xf32>
    %272 = vector.broadcast %270 : vector<1x5xf32> to vector<8x5xf32>
    %273 = arith.addf %272, %271 : vector<8x5xf32>
    %c1_i32_88 = arith.constant 1 : i32
    %c8_i32_89 = arith.constant 8 : i32
    %274 = arith.muli %c1_i32_88, %c8_i32_89 : i32
    %275 = tpu.assume_multiple %274, 8 : i32
    %276 = vector.shape_cast %273 : vector<8x5xf32> to vector<8x5x1xf32>
    %277 = vector.broadcast %276 : vector<8x5x1xf32> to vector<8x5x5xf32>
    %278 = arith.addf %277, %267 : vector<8x5x5xf32>
    %cst_90 = arith.constant dense<0xFF800000> : vector<8x5xf32>
    %279 = vector.multi_reduction <maximumf>, %278, %cst_90 [1] : vector<8x5x5xf32> to vector<8x5xf32>
    %280 = vector.shape_cast %279 : vector<8x5xf32> to vector<8x1x5xf32>
    %281 = vector.broadcast %280 : vector<8x1x5xf32> to vector<8x5x5xf32>
    %282 = arith.cmpf oeq, %278, %281 : vector<8x5x5xf32>
    %c5_i32_91 = arith.constant 5 : i32
    %283 = vector.broadcast %c5_i32_91 : i32 to vector<8x5x5xi32>
    %284 = arith.select %282, %268, %283 : vector<8x5x5xi1>, vector<8x5x5xi32>
    %cst_92 = arith.constant dense<2147483647> : vector<8x5xi32>
    %285 = vector.multi_reduction <minsi>, %284, %cst_92 [1] : vector<8x5x5xi32> to vector<8x5xi32>
    %286 = arith.index_cast %275 : i32 to index
    %c0_93 = arith.constant 0 : index
    %287 = vector.load %arg14[%286, %c0_93] : memref<64x5xi32, #tpu.memory_space<vmem>>, vector<8x5xi32>
    tpu.vector_store %arg14[%286, %c0_93], %285 {strides = array<i32>} : memref<64x5xi32, #tpu.memory_space<vmem>>, vector<8x5xi32>,
    %288 = arith.index_cast %275 : i32 to index
    %c0_94 = arith.constant 0 : index
    %289 = vector.load %arg13[%288, %c0_94] : memref<64x5xf32, #tpu.memory_space<vmem>>, vector<8x5xf32>
    %290 = arith.addf %289, %279 : vector<8x5xf32>
    %c2_i32_95 = arith.constant 2 : i32
    %c8_i32_96 = arith.constant 8 : i32
    %291 = arith.muli %c2_i32_95, %c8_i32_96 : i32
    %292 = tpu.assume_multiple %291, 8 : i32
    %293 = vector.shape_cast %290 : vector<8x5xf32> to vector<8x5x1xf32>
    %294 = vector.broadcast %293 : vector<8x5x1xf32> to vector<8x5x5xf32>
    %295 = arith.addf %294, %267 : vector<8x5x5xf32>
    %cst_97 = arith.constant dense<0xFF800000> : vector<8x5xf32>
    %296 = vector.multi_reduction <maximumf>, %295, %cst_97 [1] : vector<8x5x5xf32> to vector<8x5xf32>
    %297 = vector.shape_cast %296 : vector<8x5xf32> to vector<8x1x5xf32>
    %298 = vector.broadcast %297 : vector<8x1x5xf32> to vector<8x5x5xf32>
    %299 = arith.cmpf oeq, %295, %298 : vector<8x5x5xf32>
    %c5_i32_98 = arith.constant 5 : i32
    %300 = vector.broadcast %c5_i32_98 : i32 to vector<8x5x5xi32>
    %301 = arith.select %299, %268, %300 : vector<8x5x5xi1>, vector<8x5x5xi32>
    %cst_99 = arith.constant dense<2147483647> : vector<8x5xi32>
    %302 = vector.multi_reduction <minsi>, %301, %cst_99 [1] : vector<8x5x5xi32> to vector<8x5xi32>
    %303 = arith.index_cast %292 : i32 to index
    %c0_100 = arith.constant 0 : index
    %304 = vector.load %arg14[%303, %c0_100] : memref<64x5xi32, #tpu.memory_space<vmem>>, vector<8x5xi32>
    tpu.vector_store %arg14[%303, %c0_100], %302 {strides = array<i32>} : memref<64x5xi32, #tpu.memory_space<vmem>>, vector<8x5xi32>,
    %305 = arith.index_cast %292 : i32 to index
    %c0_101 = arith.constant 0 : index
    %306 = vector.load %arg13[%305, %c0_101] : memref<64x5xf32, #tpu.memory_space<vmem>>, vector<8x5xf32>
    %307 = arith.addf %306, %296 : vector<8x5xf32>
    %c3_i32_102 = arith.constant 3 : i32
    %c8_i32_103 = arith.constant 8 : i32
    %308 = arith.muli %c3_i32_102, %c8_i32_103 : i32
    %309 = tpu.assume_multiple %308, 8 : i32
    %310 = vector.shape_cast %307 : vector<8x5xf32> to vector<8x5x1xf32>
    %311 = vector.broadcast %310 : vector<8x5x1xf32> to vector<8x5x5xf32>
    %312 = arith.addf %311, %267 : vector<8x5x5xf32>
    %cst_104 = arith.constant dense<0xFF800000> : vector<8x5xf32>
    %313 = vector.multi_reduction <maximumf>, %312, %cst_104 [1] : vector<8x5x5xf32> to vector<8x5xf32>
    %314 = vector.shape_cast %313 : vector<8x5xf32> to vector<8x1x5xf32>
    %315 = vector.broadcast %314 : vector<8x1x5xf32> to vector<8x5x5xf32>
    %316 = arith.cmpf oeq, %312, %315 : vector<8x5x5xf32>
    %c5_i32_105 = arith.constant 5 : i32
    %317 = vector.broadcast %c5_i32_105 : i32 to vector<8x5x5xi32>
    %318 = arith.select %316, %268, %317 : vector<8x5x5xi1>, vector<8x5x5xi32>
    %cst_106 = arith.constant dense<2147483647> : vector<8x5xi32>
    %319 = vector.multi_reduction <minsi>, %318, %cst_106 [1] : vector<8x5x5xi32> to vector<8x5xi32>
    %320 = arith.index_cast %309 : i32 to index
    %c0_107 = arith.constant 0 : index
    %321 = vector.load %arg14[%320, %c0_107] : memref<64x5xi32, #tpu.memory_space<vmem>>, vector<8x5xi32>
    tpu.vector_store %arg14[%320, %c0_107], %319 {strides = array<i32>} : memref<64x5xi32, #tpu.memory_space<vmem>>, vector<8x5xi32>,
    %322 = arith.index_cast %309 : i32 to index
    %c0_108 = arith.constant 0 : index
    %323 = vector.load %arg13[%322, %c0_108] : memref<64x5xf32, #tpu.memory_space<vmem>>, vector<8x5xf32>
    %324 = arith.addf %323, %313 : vector<8x5xf32>
    %c4_i32_109 = arith.constant 4 : i32
    %c8_i32_110 = arith.constant 8 : i32
    %325 = arith.muli %c4_i32_109, %c8_i32_110 : i32
    %326 = tpu.assume_multiple %325, 8 : i32
    %327 = vector.shape_cast %324 : vector<8x5xf32> to vector<8x5x1xf32>
    %328 = vector.broadcast %327 : vector<8x5x1xf32> to vector<8x5x5xf32>
    %329 = arith.addf %328, %267 : vector<8x5x5xf32>
    %cst_111 = arith.constant dense<0xFF800000> : vector<8x5xf32>
    %330 = vector.multi_reduction <maximumf>, %329, %cst_111 [1] : vector<8x5x5xf32> to vector<8x5xf32>
    %331 = vector.shape_cast %330 : vector<8x5xf32> to vector<8x1x5xf32>
    %332 = vector.broadcast %331 : vector<8x1x5xf32> to vector<8x5x5xf32>
    %333 = arith.cmpf oeq, %329, %332 : vector<8x5x5xf32>
    %c5_i32_112 = arith.constant 5 : i32
    %334 = vector.broadcast %c5_i32_112 : i32 to vector<8x5x5xi32>
    %335 = arith.select %333, %268, %334 : vector<8x5x5xi1>, vector<8x5x5xi32>
    %cst_113 = arith.constant dense<2147483647> : vector<8x5xi32>
    %336 = vector.multi_reduction <minsi>, %335, %cst_113 [1] : vector<8x5x5xi32> to vector<8x5xi32>
    %337 = arith.index_cast %326 : i32 to index
    %c0_114 = arith.constant 0 : index
    %338 = vector.load %arg14[%337, %c0_114] : memref<64x5xi32, #tpu.memory_space<vmem>>, vector<8x5xi32>
    tpu.vector_store %arg14[%337, %c0_114], %336 {strides = array<i32>} : memref<64x5xi32, #tpu.memory_space<vmem>>, vector<8x5xi32>,
    %339 = arith.index_cast %326 : i32 to index
    %c0_115 = arith.constant 0 : index
    %340 = vector.load %arg13[%339, %c0_115] : memref<64x5xf32, #tpu.memory_space<vmem>>, vector<8x5xf32>
    %341 = arith.addf %340, %330 : vector<8x5xf32>
    %c5_i32_116 = arith.constant 5 : i32
    %c8_i32_117 = arith.constant 8 : i32
    %342 = arith.muli %c5_i32_116, %c8_i32_117 : i32
    %343 = tpu.assume_multiple %342, 8 : i32
    %344 = vector.shape_cast %341 : vector<8x5xf32> to vector<8x5x1xf32>
    %345 = vector.broadcast %344 : vector<8x5x1xf32> to vector<8x5x5xf32>
    %346 = arith.addf %345, %267 : vector<8x5x5xf32>
    %cst_118 = arith.constant dense<0xFF800000> : vector<8x5xf32>
    %347 = vector.multi_reduction <maximumf>, %346, %cst_118 [1] : vector<8x5x5xf32> to vector<8x5xf32>
    %348 = vector.shape_cast %347 : vector<8x5xf32> to vector<8x1x5xf32>
    %349 = vector.broadcast %348 : vector<8x1x5xf32> to vector<8x5x5xf32>
    %350 = arith.cmpf oeq, %346, %349 : vector<8x5x5xf32>
    %c5_i32_119 = arith.constant 5 : i32
    %351 = vector.broadcast %c5_i32_119 : i32 to vector<8x5x5xi32>
    %352 = arith.select %350, %268, %351 : vector<8x5x5xi1>, vector<8x5x5xi32>
    %cst_120 = arith.constant dense<2147483647> : vector<8x5xi32>
    %353 = vector.multi_reduction <minsi>, %352, %cst_120 [1] : vector<8x5x5xi32> to vector<8x5xi32>
    %354 = arith.index_cast %343 : i32 to index
    %c0_121 = arith.constant 0 : index
    %355 = vector.load %arg14[%354, %c0_121] : memref<64x5xi32, #tpu.memory_space<vmem>>, vector<8x5xi32>
    tpu.vector_store %arg14[%354, %c0_121], %353 {strides = array<i32>} : memref<64x5xi32, #tpu.memory_space<vmem>>, vector<8x5xi32>,
    %356 = arith.index_cast %343 : i32 to index
    %c0_122 = arith.constant 0 : index
    %357 = vector.load %arg13[%356, %c0_122] : memref<64x5xf32, #tpu.memory_space<vmem>>, vector<8x5xf32>
    %358 = arith.addf %357, %347 : vector<8x5xf32>
    %c6_i32_123 = arith.constant 6 : i32
    %c8_i32_124 = arith.constant 8 : i32
    %359 = arith.muli %c6_i32_123, %c8_i32_124 : i32
    %360 = tpu.assume_multiple %359, 8 : i32
    %361 = vector.shape_cast %358 : vector<8x5xf32> to vector<8x5x1xf32>
    %362 = vector.broadcast %361 : vector<8x5x1xf32> to vector<8x5x5xf32>
    %363 = arith.addf %362, %267 : vector<8x5x5xf32>
    %cst_125 = arith.constant dense<0xFF800000> : vector<8x5xf32>
    %364 = vector.multi_reduction <maximumf>, %363, %cst_125 [1] : vector<8x5x5xf32> to vector<8x5xf32>
    %365 = vector.shape_cast %364 : vector<8x5xf32> to vector<8x1x5xf32>
    %366 = vector.broadcast %365 : vector<8x1x5xf32> to vector<8x5x5xf32>
    %367 = arith.cmpf oeq, %363, %366 : vector<8x5x5xf32>
    %c5_i32_126 = arith.constant 5 : i32
    %368 = vector.broadcast %c5_i32_126 : i32 to vector<8x5x5xi32>
    %369 = arith.select %367, %268, %368 : vector<8x5x5xi1>, vector<8x5x5xi32>
    %cst_127 = arith.constant dense<2147483647> : vector<8x5xi32>
    %370 = vector.multi_reduction <minsi>, %369, %cst_127 [1] : vector<8x5x5xi32> to vector<8x5xi32>
    %371 = arith.index_cast %360 : i32 to index
    %c0_128 = arith.constant 0 : index
    %372 = vector.load %arg14[%371, %c0_128] : memref<64x5xi32, #tpu.memory_space<vmem>>, vector<8x5xi32>
    tpu.vector_store %arg14[%371, %c0_128], %370 {strides = array<i32>} : memref<64x5xi32, #tpu.memory_space<vmem>>, vector<8x5xi32>,
    %373 = arith.index_cast %360 : i32 to index
    %c0_129 = arith.constant 0 : index
    %374 = vector.load %arg13[%373, %c0_129] : memref<64x5xf32, #tpu.memory_space<vmem>>, vector<8x5xf32>
    %375 = arith.addf %374, %364 : vector<8x5xf32>
    %c7_i32_130 = arith.constant 7 : i32
    %c8_i32_131 = arith.constant 8 : i32
    %376 = arith.muli %c7_i32_130, %c8_i32_131 : i32
    %377 = tpu.assume_multiple %376, 8 : i32
    %378 = vector.shape_cast %375 : vector<8x5xf32> to vector<8x5x1xf32>
    %379 = vector.broadcast %378 : vector<8x5x1xf32> to vector<8x5x5xf32>
    %380 = arith.addf %379, %267 : vector<8x5x5xf32>
    %cst_132 = arith.constant dense<0xFF800000> : vector<8x5xf32>
    %381 = vector.multi_reduction <maximumf>, %380, %cst_132 [1] : vector<8x5x5xf32> to vector<8x5xf32>
    %382 = vector.shape_cast %381 : vector<8x5xf32> to vector<8x1x5xf32>
    %383 = vector.broadcast %382 : vector<8x1x5xf32> to vector<8x5x5xf32>
    %384 = arith.cmpf oeq, %380, %383 : vector<8x5x5xf32>
    %c5_i32_133 = arith.constant 5 : i32
    %385 = vector.broadcast %c5_i32_133 : i32 to vector<8x5x5xi32>
    %386 = arith.select %384, %268, %385 : vector<8x5x5xi1>, vector<8x5x5xi32>
    %cst_134 = arith.constant dense<2147483647> : vector<8x5xi32>
    %387 = vector.multi_reduction <minsi>, %386, %cst_134 [1] : vector<8x5x5xi32> to vector<8x5xi32>
    %388 = arith.index_cast %377 : i32 to index
    %c0_135 = arith.constant 0 : index
    %389 = vector.load %arg14[%388, %c0_135] : memref<64x5xi32, #tpu.memory_space<vmem>>, vector<8x5xi32>
    tpu.vector_store %arg14[%388, %c0_135], %387 {strides = array<i32>} : memref<64x5xi32, #tpu.memory_space<vmem>>, vector<8x5xi32>,
    %390 = arith.index_cast %377 : i32 to index
    %c0_136 = arith.constant 0 : index
    %391 = vector.load %arg13[%390, %c0_136] : memref<64x5xf32, #tpu.memory_space<vmem>>, vector<8x5xf32>
    %392 = arith.addf %391, %381 : vector<8x5xf32>
    %c7_i32_137 = arith.constant 7 : i32
    %c0_138 = arith.constant 0 : index
    %c0_139 = arith.constant 0 : index
    %393 = vector.load %arg8[%c0_138, %c0_139] : memref<1x5xf32, #tpu.memory_space<vmem>>, vector<1x5xf32>
    %394 = vector.broadcast %393 : vector<1x5xf32> to vector<8x5xf32>
    %395 = arith.addf %392, %394 : vector<8x5xf32>
    %cst_140 = arith.constant dense<0xFF800000> : vector<8xf32>
    %396 = vector.multi_reduction <maximumf>, %395, %cst_140 [1] : vector<8x5xf32> to vector<8xf32>
    %397 = vector.shape_cast %396 : vector<8xf32> to vector<8x1xf32>
    %398 = vector.broadcast %397 : vector<8x1xf32> to vector<8x5xf32>
    %399 = arith.cmpf oeq, %395, %398 : vector<8x5xf32>
    %c5_i32_141 = arith.constant 5 : i32
    %400 = vector.broadcast %c5_i32_141 : i32 to vector<8x5xi32>
    %401 = arith.select %399, %269, %400 : vector<8x5xi1>, vector<8x5xi32>
    %cst_142 = arith.constant dense<2147483647> : vector<8xi32>
    %402 = vector.multi_reduction <minsi>, %401, %cst_142 [1] : vector<8x5xi32> to vector<8xi32>
    %403 = vector.shape_cast %402 : vector<8xi32> to vector<8x1xi32>
    %c0_143 = arith.constant 0 : index
    %c0_144 = arith.constant 0 : index
    %404 = vector.load %arg9[%c0_143, %c0_144] : memref<8x1xf32, #tpu.memory_space<vmem>>, vector<8x1xf32>
    tpu.vector_store %arg9[%c0_143, %c0_144], %397 {strides = array<i32>} : memref<8x1xf32, #tpu.memory_space<vmem>>, vector<8x1xf32>,
    %405 = tpu.iota {dimensions = array<i32: 1>} : vector<8x8xi32>
    %c7_i32_145 = arith.constant 7 : i32
    %406 = vector.broadcast %c7_i32_145 : i32 to vector<8x8xi32>
    %407 = arith.cmpi eq, %405, %406 : vector<8x8xi32>
    %c0_i32_146 = arith.constant 0 : i32
    %408 = vector.broadcast %c0_i32_146 : i32 to vector<8x8xi32>
    %409 = vector.shape_cast %403 : vector<8x1xi32> to vector<8x1xi32>
    %410 = vector.broadcast %409 : vector<8x1xi32> to vector<8x8xi32>
    %411 = arith.select %407, %410, %408 : vector<8x8xi1>, vector<8x8xi32>
    %c0_i32_147 = arith.constant 0 : i32
    %c7_i32_148 = arith.constant 7 : i32
    %412 = arith.subi %c7_i32_148, %c0_i32_147 : i32
    %c8_i32_149 = arith.constant 8 : i32
    %413 = arith.muli %412, %c8_i32_149 : i32
    %414 = tpu.assume_multiple %413, 8 : i32
    %415 = arith.index_cast %414 : i32 to index
    %c0_150 = arith.constant 0 : index
    %416 = vector.load %arg14[%415, %c0_150] : memref<64x5xi32, #tpu.memory_space<vmem>>, vector<8x5xi32>
    %417 = vector.broadcast %403 : vector<8x1xi32> to vector<8x5xi32>
    %418 = arith.cmpi eq, %269, %417 : vector<8x5xi32>
    %c0_i32_151 = arith.constant 0 : i32
    %419 = vector.broadcast %c0_i32_151 : i32 to vector<8x5xi32>
    %420 = arith.select %418, %416, %419 : vector<8x5xi1>, vector<8x5xi32>
    %cst_152 = arith.constant dense<0> : vector<8xi32>
    %421 = vector.multi_reduction <add>, %420, %cst_152 [1] : vector<8x5xi32> to vector<8xi32>
    %422 = vector.shape_cast %421 : vector<8xi32> to vector<8x1xi32>
    %c1_i32_153 = arith.constant 1 : i32
    %423 = arith.subi %412, %c1_i32_153 : i32
    %424 = vector.broadcast %423 : i32 to vector<8x8xi32>
    %425 = arith.cmpi eq, %405, %424 : vector<8x8xi32>
    %426 = vector.shape_cast %422 : vector<8x1xi32> to vector<8x1xi32>
    %427 = vector.broadcast %426 : vector<8x1xi32> to vector<8x8xi32>
    %428 = arith.select %425, %427, %411 : vector<8x8xi1>, vector<8x8xi32>
    %c1_i32_154 = arith.constant 1 : i32
    %c7_i32_155 = arith.constant 7 : i32
    %429 = arith.subi %c7_i32_155, %c1_i32_154 : i32
    %c8_i32_156 = arith.constant 8 : i32
    %430 = arith.muli %429, %c8_i32_156 : i32
    %431 = tpu.assume_multiple %430, 8 : i32
    %432 = arith.index_cast %431 : i32 to index
    %c0_157 = arith.constant 0 : index
    %433 = vector.load %arg14[%432, %c0_157] : memref<64x5xi32, #tpu.memory_space<vmem>>, vector<8x5xi32>
    %434 = vector.broadcast %422 : vector<8x1xi32> to vector<8x5xi32>
    %435 = arith.cmpi eq, %269, %434 : vector<8x5xi32>
    %c0_i32_158 = arith.constant 0 : i32
    %436 = vector.broadcast %c0_i32_158 : i32 to vector<8x5xi32>
    %437 = arith.select %435, %433, %436 : vector<8x5xi1>, vector<8x5xi32>
    %cst_159 = arith.constant dense<0> : vector<8xi32>
    %438 = vector.multi_reduction <add>, %437, %cst_159 [1] : vector<8x5xi32> to vector<8xi32>
    %439 = vector.shape_cast %438 : vector<8xi32> to vector<8x1xi32>
    %c1_i32_160 = arith.constant 1 : i32
    %440 = arith.subi %429, %c1_i32_160 : i32
    %441 = vector.broadcast %440 : i32 to vector<8x8xi32>
    %442 = arith.cmpi eq, %405, %441 : vector<8x8xi32>
    %443 = vector.shape_cast %439 : vector<8x1xi32> to vector<8x1xi32>
    %444 = vector.broadcast %443 : vector<8x1xi32> to vector<8x8xi32>
    %445 = arith.select %442, %444, %428 : vector<8x8xi1>, vector<8x8xi32>
    %c2_i32_161 = arith.constant 2 : i32
    %c7_i32_162 = arith.constant 7 : i32
    %446 = arith.subi %c7_i32_162, %c2_i32_161 : i32
    %c8_i32_163 = arith.constant 8 : i32
    %447 = arith.muli %446, %c8_i32_163 : i32
    %448 = tpu.assume_multiple %447, 8 : i32
    %449 = arith.index_cast %448 : i32 to index
    %c0_164 = arith.constant 0 : index
    %450 = vector.load %arg14[%449, %c0_164] : memref<64x5xi32, #tpu.memory_space<vmem>>, vector<8x5xi32>
    %451 = vector.broadcast %439 : vector<8x1xi32> to vector<8x5xi32>
    %452 = arith.cmpi eq, %269, %451 : vector<8x5xi32>
    %c0_i32_165 = arith.constant 0 : i32
    %453 = vector.broadcast %c0_i32_165 : i32 to vector<8x5xi32>
    %454 = arith.select %452, %450, %453 : vector<8x5xi1>, vector<8x5xi32>
    %cst_166 = arith.constant dense<0> : vector<8xi32>
    %455 = vector.multi_reduction <add>, %454, %cst_166 [1] : vector<8x5xi32> to vector<8xi32>
    %456 = vector.shape_cast %455 : vector<8xi32> to vector<8x1xi32>
    %c1_i32_167 = arith.constant 1 : i32
    %457 = arith.subi %446, %c1_i32_167 : i32
    %458 = vector.broadcast %457 : i32 to vector<8x8xi32>
    %459 = arith.cmpi eq, %405, %458 : vector<8x8xi32>
    %460 = vector.shape_cast %456 : vector<8x1xi32> to vector<8x1xi32>
    %461 = vector.broadcast %460 : vector<8x1xi32> to vector<8x8xi32>
    %462 = arith.select %459, %461, %445 : vector<8x8xi1>, vector<8x8xi32>
    %c3_i32_168 = arith.constant 3 : i32
    %c7_i32_169 = arith.constant 7 : i32
    %463 = arith.subi %c7_i32_169, %c3_i32_168 : i32
    %c8_i32_170 = arith.constant 8 : i32
    %464 = arith.muli %463, %c8_i32_170 : i32
    %465 = tpu.assume_multiple %464, 8 : i32
    %466 = arith.index_cast %465 : i32 to index
    %c0_171 = arith.constant 0 : index
    %467 = vector.load %arg14[%466, %c0_171] : memref<64x5xi32, #tpu.memory_space<vmem>>, vector<8x5xi32>
    %468 = vector.broadcast %456 : vector<8x1xi32> to vector<8x5xi32>
    %469 = arith.cmpi eq, %269, %468 : vector<8x5xi32>
    %c0_i32_172 = arith.constant 0 : i32
    %470 = vector.broadcast %c0_i32_172 : i32 to vector<8x5xi32>
    %471 = arith.select %469, %467, %470 : vector<8x5xi1>, vector<8x5xi32>
    %cst_173 = arith.constant dense<0> : vector<8xi32>
    %472 = vector.multi_reduction <add>, %471, %cst_173 [1] : vector<8x5xi32> to vector<8xi32>
    %473 = vector.shape_cast %472 : vector<8xi32> to vector<8x1xi32>
    %c1_i32_174 = arith.constant 1 : i32
    %474 = arith.subi %463, %c1_i32_174 : i32
    %475 = vector.broadcast %474 : i32 to vector<8x8xi32>
    %476 = arith.cmpi eq, %405, %475 : vector<8x8xi32>
    %477 = vector.shape_cast %473 : vector<8x1xi32> to vector<8x1xi32>
    %478 = vector.broadcast %477 : vector<8x1xi32> to vector<8x8xi32>
    %479 = arith.select %476, %478, %462 : vector<8x8xi1>, vector<8x8xi32>
    %c4_i32_175 = arith.constant 4 : i32
    %c7_i32_176 = arith.constant 7 : i32
    %480 = arith.subi %c7_i32_176, %c4_i32_175 : i32
    %c8_i32_177 = arith.constant 8 : i32
    %481 = arith.muli %480, %c8_i32_177 : i32
    %482 = tpu.assume_multiple %481, 8 : i32
    %483 = arith.index_cast %482 : i32 to index
    %c0_178 = arith.constant 0 : index
    %484 = vector.load %arg14[%483, %c0_178] : memref<64x5xi32, #tpu.memory_space<vmem>>, vector<8x5xi32>
    %485 = vector.broadcast %473 : vector<8x1xi32> to vector<8x5xi32>
    %486 = arith.cmpi eq, %269, %485 : vector<8x5xi32>
    %c0_i32_179 = arith.constant 0 : i32
    %487 = vector.broadcast %c0_i32_179 : i32 to vector<8x5xi32>
    %488 = arith.select %486, %484, %487 : vector<8x5xi1>, vector<8x5xi32>
    %cst_180 = arith.constant dense<0> : vector<8xi32>
    %489 = vector.multi_reduction <add>, %488, %cst_180 [1] : vector<8x5xi32> to vector<8xi32>
    %490 = vector.shape_cast %489 : vector<8xi32> to vector<8x1xi32>
    %c1_i32_181 = arith.constant 1 : i32
    %491 = arith.subi %480, %c1_i32_181 : i32
    %492 = vector.broadcast %491 : i32 to vector<8x8xi32>
    %493 = arith.cmpi eq, %405, %492 : vector<8x8xi32>
    %494 = vector.shape_cast %490 : vector<8x1xi32> to vector<8x1xi32>
    %495 = vector.broadcast %494 : vector<8x1xi32> to vector<8x8xi32>
    %496 = arith.select %493, %495, %479 : vector<8x8xi1>, vector<8x8xi32>
    %c5_i32_182 = arith.constant 5 : i32
    %c7_i32_183 = arith.constant 7 : i32
    %497 = arith.subi %c7_i32_183, %c5_i32_182 : i32
    %c8_i32_184 = arith.constant 8 : i32
    %498 = arith.muli %497, %c8_i32_184 : i32
    %499 = tpu.assume_multiple %498, 8 : i32
    %500 = arith.index_cast %499 : i32 to index
    %c0_185 = arith.constant 0 : index
    %501 = vector.load %arg14[%500, %c0_185] : memref<64x5xi32, #tpu.memory_space<vmem>>, vector<8x5xi32>
    %502 = vector.broadcast %490 : vector<8x1xi32> to vector<8x5xi32>
    %503 = arith.cmpi eq, %269, %502 : vector<8x5xi32>
    %c0_i32_186 = arith.constant 0 : i32
    %504 = vector.broadcast %c0_i32_186 : i32 to vector<8x5xi32>
    %505 = arith.select %503, %501, %504 : vector<8x5xi1>, vector<8x5xi32>
    %cst_187 = arith.constant dense<0> : vector<8xi32>
    %506 = vector.multi_reduction <add>, %505, %cst_187 [1] : vector<8x5xi32> to vector<8xi32>
    %507 = vector.shape_cast %506 : vector<8xi32> to vector<8x1xi32>
    %c1_i32_188 = arith.constant 1 : i32
    %508 = arith.subi %497, %c1_i32_188 : i32
    %509 = vector.broadcast %508 : i32 to vector<8x8xi32>
    %510 = arith.cmpi eq, %405, %509 : vector<8x8xi32>
    %511 = vector.shape_cast %507 : vector<8x1xi32> to vector<8x1xi32>
    %512 = vector.broadcast %511 : vector<8x1xi32> to vector<8x8xi32>
    %513 = arith.select %510, %512, %496 : vector<8x8xi1>, vector<8x8xi32>
    %c6_i32_189 = arith.constant 6 : i32
    %c7_i32_190 = arith.constant 7 : i32
    %514 = arith.subi %c7_i32_190, %c6_i32_189 : i32
    %c8_i32_191 = arith.constant 8 : i32
    %515 = arith.muli %514, %c8_i32_191 : i32
    %516 = tpu.assume_multiple %515, 8 : i32
    %517 = arith.index_cast %516 : i32 to index
    %c0_192 = arith.constant 0 : index
    %518 = vector.load %arg14[%517, %c0_192] : memref<64x5xi32, #tpu.memory_space<vmem>>, vector<8x5xi32>
    %519 = vector.broadcast %507 : vector<8x1xi32> to vector<8x5xi32>
    %520 = arith.cmpi eq, %269, %519 : vector<8x5xi32>
    %c0_i32_193 = arith.constant 0 : i32
    %521 = vector.broadcast %c0_i32_193 : i32 to vector<8x5xi32>
    %522 = arith.select %520, %518, %521 : vector<8x5xi1>, vector<8x5xi32>
    %cst_194 = arith.constant dense<0> : vector<8xi32>
    %523 = vector.multi_reduction <add>, %522, %cst_194 [1] : vector<8x5xi32> to vector<8xi32>
    %524 = vector.shape_cast %523 : vector<8xi32> to vector<8x1xi32>
    %c1_i32_195 = arith.constant 1 : i32
    %525 = arith.subi %514, %c1_i32_195 : i32
    %526 = vector.broadcast %525 : i32 to vector<8x8xi32>
    %527 = arith.cmpi eq, %405, %526 : vector<8x8xi32>
    %528 = vector.shape_cast %524 : vector<8x1xi32> to vector<8x1xi32>
    %529 = vector.broadcast %528 : vector<8x1xi32> to vector<8x8xi32>
    %530 = arith.select %527, %529, %513 : vector<8x8xi1>, vector<8x8xi32>
    %c7_i32_196 = arith.constant 7 : i32
    %c0_197 = arith.constant 0 : index
    %c0_198 = arith.constant 0 : index
    %531 = vector.load %arg10[%c0_197, %c0_198] : memref<8x8xi32, #tpu.memory_space<vmem>>, vector<8x8xi32>
    tpu.vector_store %arg10[%c0_197, %c0_198], %530 {strides = array<i32>} : memref<8x8xi32, #tpu.memory_space<vmem>>, vector<8x8xi32>,
    return
  }
}

</mosaic_0001>

<llo_original>
// kernel: bert_bilstm_crf_forward.1
$region0: #{bert_bilstm_crf_forward.1}
  #allocation0 [shape = 'u32[]', space=smem, size = 0x4, offset = 0x4, fixed_abs, tag = 'smem constant byte address 0x4 - core index']
  #allocation1 [shape = 'u32[144,128]{1,0:T(1,128)}', space=vmem, size = 0x12000, scoped, tag = 'internal scratch']
  #allocation2 [shape = 'f32[64,128]{1,0:T(8,128)}', space=vmem, size = 0x8000, scoped, tag = 'scratch operand']
  #allocation3 [shape = 'f32[64,32]{1,0:T(8,128)}', space=vmem, size = 0x8000, scoped, tag = 'scratch operand']
  #allocation4 [shape = 'f32[64,5]{1,0:T(8,128)}', space=vmem, size = 0x8000, scoped, tag = 'scratch operand']
  #allocation5 [shape = 's32[64,5]{1,0:T(8,128)}', space=vmem, size = 0x8000, scoped, tag = 'scratch operand']
  %s0 = inlined_call_operand.vmem [shape: f32[64,64], index: 0, kind: input, shape index: {}]
  %s1 = inlined_call_operand.vmem [shape: f32[64,128], index: 1, kind: input, shape index: {}]
  %s2 = inlined_call_operand.vmem [shape: f32[32,128], index: 2, kind: input, shape index: {}]
  %s3 = inlined_call_operand.vmem [shape: f32[1,128], index: 3, kind: input, shape index: {}]
  %s4 = inlined_call_operand.vmem [shape: f32[32,5], index: 4, kind: input, shape index: {}]
  %s5 = inlined_call_operand.vmem [shape: f32[1,5], index: 5, kind: input, shape index: {}]
  %s6 = inlined_call_operand.vmem [shape: f32[5,5], index: 6, kind: input, shape index: {}]
  %s7 = inlined_call_operand.vmem [shape: f32[1,5], index: 7, kind: input, shape index: {}]
  %s8 = inlined_call_operand.vmem [shape: f32[1,5], index: 8, kind: input, shape index: {}]
  %s9 = inlined_call_operand.vmem [shape: f32[8,1], index: 9, kind: output, shape index: {0}]
  %s10 = inlined_call_operand.vmem [shape: s32[8,8], index: 10, kind: output, shape index: {1}]
  %11 = xla_tuple %s9, %s10
  %s12 = sld [smem:[#allocation0]]
  $region54: #{bert_bilstm_crf_forward.1} parent=0
    _
  %s14 = ssub.s32 1, %s12
  %s15 = scalar_select 0, %s14, %s12
  // Predicated region
  $region2: #{bert_bilstm_crf_forward.1} parent=0 // pred_check
    _
  $region3: #{bert_bilstm_crf_forward.1} parent=0 // pred_check_branch
    %17 = sbr.rel (0) target = $region5
  $region4: #{bert_bilstm_crf_forward.1} parent=0 // pred_region
    _
  $region5: #{bert_bilstm_crf_forward.1} parent=0 // pred_fallthru
    _
  // Predicated region
  $region6: #{bert_bilstm_crf_forward.1} parent=0 // pred_check
    _
  $region7: #{bert_bilstm_crf_forward.1} parent=0 // pred_check_branch
    %19 = sbr.rel (0) target = $region9
  $region8: #{bert_bilstm_crf_forward.1} parent=0 // pred_region
    _
  $region9: #{bert_bilstm_crf_forward.1} parent=0 // pred_fallthru
    _
  // Predicated region
  $region10: #{bert_bilstm_crf_forward.1} parent=0 // pred_check
    _
  $region11: #{bert_bilstm_crf_forward.1} parent=0 // pred_check_branch
    %21 = sbr.rel (0) target = $region13
  $region12: #{bert_bilstm_crf_forward.1} parent=0 // pred_region
    _
  $region13: #{bert_bilstm_crf_forward.1} parent=0 // pred_fallthru
    _
  // Predicated region
  $region14: #{bert_bilstm_crf_forward.1} parent=0 // pred_check
    _
  $region15: #{bert_bilstm_crf_forward.1} parent=0 // pred_check_branch
    %23 = sbr.rel (0) target = $region17
  $region16: #{bert_bilstm_crf_forward.1} parent=0 // pred_region
    _
  $region17: #{bert_bilstm_crf_forward.1} parent=0 // pred_fallthru
    _
  // Predicated region
  $region18: #{bert_bilstm_crf_forward.1} parent=0 // pred_check
    _
  $region19: #{bert_bilstm_crf_forward.1} parent=0 // pred_check_branch
    %25 = sbr.rel (0) target = $region21
  $region20: #{bert_bilstm_crf_forward.1} parent=0 // pred_region
    _
  $region21: #{bert_bilstm_crf_forward.1} parent=0 // pred_fallthru
    _
  // Predicated region
  $region22: #{bert_bilstm_crf_forward.1} parent=0 // pred_check
    _
  $region23: #{bert_bilstm_crf_forward.1} parent=0 // pred_check_branch
    %27 = sbr.rel (0) target = $region25
  $region24: #{bert_bilstm_crf_forward.1} parent=0 // pred_region
    _
  $region25: #{bert_bilstm_crf_forward.1} parent=0 // pred_fallthru
    _
  // Predicated region
  $region26: #{bert_bilstm_crf_forward.1} parent=0 // pred_check
    _
  $region27: #{bert_bilstm_crf_forward.1} parent=0 // pred_check_branch
    %29 = sbr.rel (0) target = $region29
  $region28: #{bert_bilstm_crf_forward.1} parent=0 // pred_region
    _
  $region29: #{bert_bilstm_crf_forward.1} parent=0 // pred_fallthru
    _
  // Predicated region
  $region30: #{bert_bilstm_crf_forward.1} parent=0 // pred_check
    _
  $region31: #{bert_bilstm_crf_forward.1} parent=0 // pred_check_branch
    %31 = sbr.rel (0) target = $region33
  $region32: #{bert_bilstm_crf_forward.1} parent=0 // pred_region
    _
  $region33: #{bert_bilstm_crf_forward.1} parent=0 // pred_fallthru
    _
  // Predicated region
  $region34: #{bert_bilstm_crf_forward.1} parent=0 // pred_check
    _
  $region35: #{bert_bilstm_crf_forward.1} parent=0 // pred_check_branch
    %33 = sbr.rel (0) target = $region37
  $region36: #{bert_bilstm_crf_forward.1} parent=0 // pred_region
    _
  $region37: #{bert_bilstm_crf_forward.1} parent=0 // pred_fallthru
    _
  %v34 = vld [vmem:[%s0] sm:$0xff]
  %v35 = vld [vmem:[%s0 + $0x8] sm:$0xff]
  %v36 = vld [vmem:[%s0 + $0x10] sm:$0xff]
  %v37 = vld [vmem:[%s0 + $0x18] sm:$0xff]
  %v38 = vld [vmem:[%s0 + $0x20] sm:$0xff]
  %v39 = vld [vmem:[%s0 + $0x28] sm:$0xff]
  %v40 = vld [vmem:[%s0 + $0x30] sm:$0xff]
  %v41 = vld [vmem:[%s0 + $0x38] sm:$0xff]
  %v42 = vld [vmem:[%s1] sm:$0xff]
  %v43 = vld [vmem:[%s1 + $0x8] sm:$0xff]
  %v44 = vld [vmem:[%s1 + $0x10] sm:$0xff]
  %v45 = vld [vmem:[%s1 + $0x18] sm:$0xff]
  %v46 = vld [vmem:[%s1 + $0x20] sm:$0xff]
  %v47 = vld [vmem:[%s1 + $0x28] sm:$0xff]
  %v48 = vld [vmem:[%s1 + $0x30] sm:$0xff]
  %v49 = vld [vmem:[%s1 + $0x38] sm:$0xff]
  %v50 = vld [vmem:[%s3] sm:$0x1]
  %v52 = vlaneseq
  %v53 = vshrl.u32 %v52, 7
  %v54 = vsub.s32 0, %v53
  %v55 = vrot.slane %v50, %v54
  %vm57 = vcmask 523264
  %v59 = vsel %vm57, %v34, 0
  %v62 = vsel %vm57, %v35, 0
  %v65 = vsel %vm57, %v36, 0
  %v68 = vsel %vm57, %v37, 0
  %v71 = vsel %vm57, %v38, 0
  %v74 = vsel %vm57, %v39, 0
  %v77 = vsel %vm57, %v40, 0
  %v80 = vsel %vm57, %v41, 0
  %82 = vmatprep.subr.mxu0 0.0
  %83 = vmatpush1.msra.mxu0 %v42
  %84 = vmatprep.subr.mxu0 0.0
  %85 = vmatpush1.msra.mxu0 %v43
  %86 = vmatprep.subr.mxu0 0.0
  %87 = vmatpush1.msra.mxu0 %v44
  %88 = vmatprep.subr.mxu0 0.0
  %89 = vmatpush1.msra.mxu0 %v45
  %90 = vmatprep.subr.mxu0 0.0
  %91 = vmatpush1.msra.mxu0 %v46
  %92 = vmatprep.subr.mxu0 0.0
  %93 = vmatpush1.msra.mxu0 %v47
  %94 = vmatprep.subr.mxu0 0.0
  %95 = vmatpush1.msra.mxu0 %v48
  %96 = vmatprep.subr.mxu0 0.0
  %97 = vmatpush1.msra.mxu0 %v49
  %98 = vmatprep.subr.mxu0 0.0
  %99 = vmatpush1.msra.mxu0 0.0
  %100 = vmatprep.subr.mxu0 0.0
  %101 = vmatpush1.msra.mxu0 0.0
  %102 = vmatprep.subr.mxu0 0.0
  %103 = vmatpush1.msra.mxu0 0.0
  %104 = vmatprep.subr.mxu0 0.0
  %105 = vmatpush1.msra.mxu0 0.0
  %106 = vmatprep.subr.mxu0 0.0
  %107 = vmatpush1.msra.mxu0 0.0
  %108 = vmatprep.subr.mxu0 0.0
  %109 = vmatpush1.msra.mxu0 0.0
  %110 = vmatprep.subr.mxu0 0.0
  %111 = vmatpush1.msra.mxu0 0.0
  %112 = vmatprep.subr.mxu0 0.0
  %113 = vmatpush1.msra.mxu0 0.0
  %114 = vmatprep.subr.mxu0 0.0
  %115 = vmatpush1.msra.mxu0 0.0
  %116 = vmatprep.subr.mxu0 0.0
  %117 = vmatpush1.msra.mxu0 0.0
  %118 = vmatprep.subr.mxu0 0.0
  %119 = vmatpush1.msra.mxu0 0.0
  %120 = vmatprep.subr.mxu0 0.0
  %121 = vmatpush1.msra.mxu0 0.0
  %122 = vmatprep.subr.mxu0 0.0
  %123 = vmatpush1.msra.mxu0 0.0
  %124 = vmatprep.subr.mxu0 0.0
  %125 = vmatpush1.msra.mxu0 0.0
  %126 = vmatprep.subr.mxu0 0.0
  %127 = vmatpush1.msra.mxu0 0.0
  %128 = vmatprep.subr.mxu0 0.0
  %129 = vmatpush1.msra.mxu0 0.0
  %130 = vmatprep.subr.mxu0 0.0
  %131 = vmatpush1.msra.mxu0 0.0
  %132 = vmatprep.subr.mxu0 0.0
  %133 = vmatpush1.msra.mxu0 0.0
  %134 = vmatprep.subr.mxu0 0.0
  %135 = vmatpush1.msra.mxu0 0.0
  %136 = vmatprep.subr.mxu0 0.0
  %137 = vmatpush1.msra.mxu0 0.0
  %138 = vmatprep.subr.mxu0 0.0
  %139 = vmatpush1.msra.mxu0 0.0
  %140 = vmatprep.subr.mxu0 0.0
  %141 = vmatpush1.msra.mxu0 0.0
  %142 = vmatprep.subr.mxu0 0.0
  %143 = vmatpush1.msra.mxu0 0.0
  %144 = vmatprep.subr.mxu0 0.0
  %145 = vmatpush1.msra.mxu0 0.0
  %146 = vmatprep.mubr.f32.mxu0 0.0
  %147 = vmatmul.mubr.f32.gmra.mrb[0].mxu0 %v59
  %v148 = vpop.f32.mrb[0].mxu0
  %v149 = vadd.f32 %v55, %v148
  %v150 = vpop.f32.mrb[0].mxu0
  %151 = vmatprep.mubr.f32.mxu0 0.0
  %152 = vmatmul.mubr.f32.gmra.mrb[0].mxu0 %v62
  %v153 = vpop.f32.mrb[0].mxu0
  %v154 = vadd.f32 %v55, %v153
  %v155 = vpop.f32.mrb[0].mxu0
  %156 = vmatprep.mubr.f32.mxu0 0.0
  %157 = vmatmul.mubr.f32.gmra.mrb[0].mxu0 %v65
  %v158 = vpop.f32.mrb[0].mxu0
  %v159 = vadd.f32 %v55, %v158
  %v160 = vpop.f32.mrb[0].mxu0
  %161 = vmatprep.mubr.f32.mxu0 0.0
  %162 = vmatmul.mubr.f32.gmra.mrb[0].mxu0 %v68
  %v163 = vpop.f32.mrb[0].mxu0
  %v164 = vadd.f32 %v55, %v163
  %v165 = vpop.f32.mrb[0].mxu0
  %166 = vmatprep.mubr.f32.mxu0 0.0
  %167 = vmatmul.mubr.f32.gmra.mrb[0].mxu0 %v71
  %v168 = vpop.f32.mrb[0].mxu0
  %v169 = vadd.f32 %v55, %v168
  %v170 = vpop.f32.mrb[0].mxu0
  %171 = vmatprep.mubr.f32.mxu0 0.0
  %172 = vmatmul.mubr.f32.gmra.mrb[0].mxu0 %v74
  %v173 = vpop.f32.mrb[0].mxu0
  %v174 = vadd.f32 %v55, %v173
  %v175 = vpop.f32.mrb[0].mxu0
  %176 = vmatprep.mubr.f32.mxu0 0.0
  %177 = vmatmul.mubr.f32.gmra.mrb[0].mxu0 %v77
  %v178 = vpop.f32.mrb[0].mxu0
  %v179 = vadd.f32 %v55, %v178
  %v180 = vpop.f32.mrb[0].mxu0
  %181 = vmatprep.mubr.f32.mxu0 0.0
  %182 = vmatmul.mubr.f32.gmra.mrb[0].mxu0 %v80
  %v183 = vpop.f32.mrb[0].mxu0
  %v184 = vadd.f32 %v55, %v183
  %v185 = vpop.f32.mrb[0].mxu0
  %186 = vdwg.mxu0
  %187 = vst [vmem:[#allocation2] sm:$0xff] %v149
  %188 = vst [vmem:[#allocation2 + $0x8] sm:$0xff] %v154
  %189 = vst [vmem:[#allocation2 + $0x10] sm:$0xff] %v159
  %190 = vst [vmem:[#allocation2 + $0x18] sm:$0xff] %v164
  %191 = vst [vmem:[#allocation2 + $0x20] sm:$0xff] %v169
  %192 = vst [vmem:[#allocation2 + $0x28] sm:$0xff] %v174
  %193 = vst [vmem:[#allocation2 + $0x30] sm:$0xff] %v179
  %194 = vst [vmem:[#allocation2 + $0x38] sm:$0xff] %v184
  %v195 = vld [vmem:[%s2] sm:$0xff]
  %v196 = vld [vmem:[%s2 + $0x8] sm:$0xff]
  %v197 = vld [vmem:[%s2 + $0x10] sm:$0xff]
  %v198 = vld [vmem:[%s2 + $0x18] sm:$0xff]
  %v199 = vld [vmem:[#allocation2] sm:$0xff]
  %vm200 = vcmask 261120
  %v202 = vsel %vm200, 0.0, 0
  %204 = vmatprep.subr.mxu0 0.0
  %205 = vmatpush1.msra.mxu0 %v195
  %206 = vmatprep.subr.mxu0 0.0
  %207 = vmatpush1.msra.mxu0 %v196
  %208 = vmatprep.subr.mxu0 0.0
  %209 = vmatpush1.msra.mxu0 %v197
  %210 = vmatprep.subr.mxu0 0.0
  %211 = vmatpush1.msra.mxu0 %v198
  %212 = vmatprep.subr.mxu0 0.0
  %213 = vmatpush1.msra.mxu0 0.0
  %214 = vmatprep.subr.mxu0 0.0
  %215 = vmatpush1.msra.mxu0 0.0
  %216 = vmatprep.subr.mxu0 0.0
  %217 = vmatpush1.msra.mxu0 0.0
  %218 = vmatprep.subr.mxu0 0.0
  %219 = vmatpush1.msra.mxu0 0.0
  %220 = vmatprep.subr.mxu0 0.0
  %221 = vmatpush1.msra.mxu0 0.0
  %222 = vmatprep.subr.mxu0 0.0
  %223 = vmatpush1.msra.mxu0 0.0
  %224 = vmatprep.subr.mxu0 0.0
  %225 = vmatpush1.msra.mxu0 0.0
  %226 = vmatprep.subr.mxu0 0.0
  %227 = vmatpush1.msra.mxu0 0.0
  %228 = vmatprep.subr.mxu0 0.0
  %229 = vmatpush1.msra.mxu0 0.0
  %230 = vmatprep.subr.mxu0 0.0
  %231 = vmatpush1.msra.mxu0 0.0
  %232 = vmatprep.subr.mxu0 0.0
  %233 = vmatpush1.msra.mxu0 0.0
  %234 = vmatprep.subr.mxu0 0.0
  %235 = vmatpush1.msra.mxu0 0.0
  %236 = vmatprep.subr.mxu0 0.0
  %237 = vmatpush1.msra.mxu0 0.0
  %238 = vmatprep.subr.mxu0 0.0
  %239 = vmatpush1.msra.mxu0 0.0
  %240 = vmatprep.subr.mxu0 0.0
  %241 = vmatpush1.msra.mxu0 0.0
  %242 = vmatprep.subr.mxu0 0.0
  %243 = vmatpush1.msra.mxu0 0.0
  %244 = vmatprep.subr.mxu0 0.0
  %245 = vmatpush1.msra.mxu0 0.0
  %246 = vmatprep.subr.mxu0 0.0
  %247 = vmatpush1.msra.mxu0 0.0
  %248 = vmatprep.subr.mxu0 0.0
  %249 = vmatpush1.msra.mxu0 0.0
  %250 = vmatprep.subr.mxu0 0.0
  %251 = vmatpush1.msra.mxu0 0.0
  %252 = vmatprep.subr.mxu0 0.0
  %253 = vmatpush1.msra.mxu0 0.0
  %254 = vmatprep.subr.mxu0 0.0
  %255 = vmatpush1.msra.mxu0 0.0
  %256 = vmatprep.subr.mxu0 0.0
  %257 = vmatpush1.msra.mxu0 0.0
  %258 = vmatprep.subr.mxu0 0.0
  %259 = vmatpush1.msra.mxu0 0.0
  %260 = vmatprep.subr.mxu0 0.0
  %261 = vmatpush1.msra.mxu0 0.0
  %262 = vmatprep.subr.mxu0 0.0
  %263 = vmatpush1.msra.mxu0 0.0
  %264 = vmatprep.subr.mxu0 0.0
  %265 = vmatpush1.msra.mxu0 0.0
  %266 = vmatprep.subr.mxu0 0.0
  %267 = vmatpush1.msra.mxu0 0.0
  %268 = vmatprep.mubr.f32.mxu0 0.0
  %269 = vmatmul.mubr.f32.gmra.mrb[0].mxu0 %v202
  %v270 = vpop.f32.mrb[0].mxu0
  %v271 = vadd.f32 0.0, %v270
  %v272 = vpop.f32.mrb[0].mxu0
  %273 = vdwg.mxu0
  %v274 = vadd.f32 %v199, %v271
  %v275 = vxor.u32 %v274, 2147483648
  %v276 = vmul.f32 %v275, 1.442695
  %v277 = vpow.pop %v276
  %v278 = vadd.f32 %v277, 1.0
  %v279 = vrcp.pop %v278
  %v280 = vmul.f32 1.0, %v279
  %v281 = vtanh.pop %v274
  %v282 = vmul.f32 %v280, 0.0
  %284 = vrot.lane.b32.xlu0 %v281, 32
  %v285 = vpop.permute.xlu0 %284
  %v287 = vmul.f32 %v280, %v285
  %289 = vrot.lane.b32.xlu0 %v287, 32
  %v290 = vpop.permute.xlu0 %289
  %v292 = vadd.f32 %v282, %v290
  %v293 = vtanh.pop %v292
  %295 = vrot.lane.b32.xlu0 %v293, 32
  %v296 = vpop.permute.xlu0 %295
  %v298 = vmul.f32 %v280, %v296
  %300 = vrot.lane.b32.xlu0 %v298, 64
  %v301 = vpop.permute.xlu0 %300
  %vm303 = vcmask 130048
  %304 = vst.msk [vmem:[#allocation3] sm:$0xff] %vm303, %v301
  %s305 = scalar_lea.vmem [#allocation3], 56
  %vm306 = vcmask 261248
  %307 = vst.msk [vmem:[%s305] sm:$0xff] %vm306, %v301
  %s308 = scalar_lea.vmem [#allocation2], 8
  %v309 = vld [vmem:[%s308] sm:$0xff]
  %v310 = vsel %vm200, %v301, 0
  %312 = vmatprep.subr.mxu0 0.0
  %313 = vmatpush1.msra.mxu0 %v195
  %314 = vmatprep.subr.mxu0 0.0
  %315 = vmatpush1.msra.mxu0 %v196
  %316 = vmatprep.subr.mxu0 0.0
  %317 = vmatpush1.msra.mxu0 %v197
  %318 = vmatprep.subr.mxu0 0.0
  %319 = vmatpush1.msra.mxu0 %v198
  %320 = vmatprep.subr.mxu0 0.0
  %321 = vmatpush1.msra.mxu0 0.0
  %322 = vmatprep.subr.mxu0 0.0
  %323 = vmatpush1.msra.mxu0 0.0
  %324 = vmatprep.subr.mxu0 0.0
  %325 = vmatpush1.msra.mxu0 0.0
  %326 = vmatprep.subr.mxu0 0.0
  %327 = vmatpush1.msra.mxu0 0.0
  %328 = vmatprep.subr.mxu0 0.0
  %329 = vmatpush1.msra.mxu0 0.0
  %330 = vmatprep.subr.mxu0 0.0
  %331 = vmatpush1.msra.mxu0 0.0
  %332 = vmatprep.subr.mxu0 0.0
  %333 = vmatpush1.msra.mxu0 0.0
  %334 = vmatprep.subr.mxu0 0.0
  %335 = vmatpush1.msra.mxu0 0.0
  %336 = vmatprep.subr.mxu0 0.0
  %337 = vmatpush1.msra.mxu0 0.0
  %338 = vmatprep.subr.mxu0 0.0
  %339 = vmatpush1.msra.mxu0 0.0
  %340 = vmatprep.subr.mxu0 0.0
  %341 = vmatpush1.msra.mxu0 0.0
  %342 = vmatprep.subr.mxu0 0.0
  %343 = vmatpush1.msra.mxu0 0.0
  %344 = vmatprep.subr.mxu0 0.0
  %345 = vmatpush1.msra.mxu0 0.0
  %346 = vmatprep.subr.mxu0 0.0
  %347 = vmatpush1.msra.mxu0 0.0
  %348 = vmatprep.subr.mxu0 0.0
  %349 = vmatpush1.msra.mxu0 0.0
  %350 = vmatprep.subr.mxu0 0.0
  %351 = vmatpush1.msra.mxu0 0.0
  %352 = vmatprep.subr.mxu0 0.0
  %353 = vmatpush1.msra.mxu0 0.0
  %354 = vmatprep.subr.mxu0 0.0
  %355 = vmatpush1.msra.mxu0 0.0
  %356 = vmatprep.subr.mxu0 0.0
  %357 = vmatpush1.msra.mxu0 0.0
  %358 = vmatprep.subr.mxu0 0.0
  %359 = vmatpush1.msra.mxu0 0.0
  %360 = vmatprep.subr.mxu0 0.0
  %361 = vmatpush1.msra.mxu0 0.0
  %362 = vmatprep.subr.mxu0 0.0
  %363 = vmatpush1.msra.mxu0 0.0
  %364 = vmatprep.subr.mxu0 0.0
  %365 = vmatpush1.msra.mxu0 0.0
  %366 = vmatprep.subr.mxu0 0.0
  %367 = vmatpush1.msra.mxu0 0.0
  %368 = vmatprep.subr.mxu0 0.0
  %369 = vmatpush1.msra.mxu0 0.0
  %370 = vmatprep.subr.mxu0 0.0
  %371 = vmatpush1.msra.mxu0 0.0
  %372 = vmatprep.subr.mxu0 0.0
  %373 = vmatpush1.msra.mxu0 0.0
  %374 = vmatprep.subr.mxu0 0.0
  %375 = vmatpush1.msra.mxu0 0.0
  %376 = vmatprep.mubr.f32.mxu0 0.0
  %377 = vmatmul.mubr.f32.gmra.mrb[0].mxu0 %v310
  %v378 = vpop.f32.mrb[0].mxu0
  %v379 = vadd.f32 0.0, %v378
  %v380 = vpop.f32.mrb[0].mxu0
  %381 = vdwg.mxu0
  %v382 = vadd.f32 %v309, %v379
  %v383 = vxor.u32 %v382, 2147483648
  %v384 = vmul.f32 %v383, 1.442695
  %v385 = vpow.pop %v384
  %v386 = vadd.f32 %v385, 1.0
  %v387 = vrcp.pop %v386
  %v388 = vmul.f32 1.0, %v387
  %v389 = vtanh.pop %v382
  %v390 = vmul.f32 %v388, %v292
  %392 = vrot.lane.b32.xlu0 %v389, 32
  %v393 = vpop.permute.xlu0 %392
  %v395 = vmul.f32 %v388, %v393
  %397 = vrot.lane.b32.xlu0 %v395, 32
  %v398 = vpop.permute.xlu0 %397
  %v400 = vadd.f32 %v390, %v398
  %v401 = vtanh.pop %v400
  %403 = vrot.lane.b32.xlu0 %v401, 32
  %v404 = vpop.permute.xlu0 %403
  %v406 = vmul.f32 %v388, %v404
  %408 = vrot.lane.b32.xlu0 %v406, 64
  %v409 = vpop.permute.xlu0 %408
  %s411 = scalar_lea.vmem [#allocation3], 8
  %412 = vst.msk [vmem:[%s411] sm:$0xff] %vm303, %v409
  %s413 = scalar_lea.vmem [#allocation3], 48
  %414 = vst.msk [vmem:[%s413] sm:$0xff] %vm306, %v409
  %s415 = scalar_lea.vmem [#allocation2], 16
  %v416 = vld [vmem:[%s415] sm:$0xff]
  %v417 = vsel %vm200, %v409, 0
  %419 = vmatprep.subr.mxu0 0.0
  %420 = vmatpush1.msra.mxu0 %v195
  %421 = vmatprep.subr.mxu0 0.0
  %422 = vmatpush1.msra.mxu0 %v196
  %423 = vmatprep.subr.mxu0 0.0
  %424 = vmatpush1.msra.mxu0 %v197
  %425 = vmatprep.subr.mxu0 0.0
  %426 = vmatpush1.msra.mxu0 %v198
  %427 = vmatprep.subr.mxu0 0.0
  %428 = vmatpush1.msra.mxu0 0.0
  %429 = vmatprep.subr.mxu0 0.0
  %430 = vmatpush1.msra.mxu0 0.0
  %431 = vmatprep.subr.mxu0 0.0
  %432 = vmatpush1.msra.mxu0 0.0
  %433 = vmatprep.subr.mxu0 0.0
  %434 = vmatpush1.msra.mxu0 0.0
  %435 = vmatprep.subr.mxu0 0.0
  %436 = vmatpush1.msra.mxu0 0.0
  %437 = vmatprep.subr.mxu0 0.0
  %438 = vmatpush1.msra.mxu0 0.0
  %439 = vmatprep.subr.mxu0 0.0
  %440 = vmatpush1.msra.mxu0 0.0
  %441 = vmatprep.subr.mxu0 0.0
  %442 = vmatpush1.msra.mxu0 0.0
  %443 = vmatprep.subr.mxu0 0.0
  %444 = vmatpush1.msra.mxu0 0.0
  %445 = vmatprep.subr.mxu0 0.0
  %446 = vmatpush1.msra.mxu0 0.0
  %447 = vmatprep.subr.mxu0 0.0
  %448 = vmatpush1.msra.mxu0 0.0
  %449 = vmatprep.subr.mxu0 0.0
  %450 = vmatpush1.msra.mxu0 0.0
  %451 = vmatprep.subr.mxu0 0.0
  %452 = vmatpush1.msra.mxu0 0.0
  %453 = vmatprep.subr.mxu0 0.0
  %454 = vmatpush1.msra.mxu0 0.0
  %455 = vmatprep.subr.mxu0 0.0
  %456 = vmatpush1.msra.mxu0 0.0
  %457 = vmatprep.subr.mxu0 0.0
  %458 = vmatpush1.msra.mxu0 0.0
  %459 = vmatprep.subr.mxu0 0.0
  %460 = vmatpush1.msra.mxu0 0.0
  %461 = vmatprep.subr.mxu0 0.0
  %462 = vmatpush1.msra.mxu0 0.0
  %463 = vmatprep.subr.mxu0 0.0
  %464 = vmatpush1.msra.mxu0 0.0
  %465 = vmatprep.subr.mxu0 0.0
  %466 = vmatpush1.msra.mxu0 0.0
  %467 = vmatprep.subr.mxu0 0.0
  %468 = vmatpush1.msra.mxu0 0.0
  %469 = vmatprep.subr.mxu0 0.0
  %470 = vmatpush1.msra.mxu0 0.0
  %471 = vmatprep.subr.mxu0 0.0
  %472 = vmatpush1.msra.mxu0 0.0
  %473 = vmatprep.subr.mxu0 0.0
  %474 = vmatpush1.msra.mxu0 0.0
  %475 = vmatprep.subr.mxu0 0.0
  %476 = vmatpush1.msra.mxu0 0.0
  %477 = vmatprep.subr.mxu0 0.0
  %478 = vmatpush1.msra.mxu0 0.0
  %479 = vmatprep.subr.mxu0 0.0
  %480 = vmatpush1.msra.mxu0 0.0
  %481 = vmatprep.subr.mxu0 0.0
  %482 = vmatpush1.msra.mxu0 0.0
  %483 = vmatprep.mubr.f32.mxu0 0.0
  %484 = vmatmul.mubr.f32.gmra.mrb[0].mxu0 %v417
  %v485 = vpop.f32.mrb[0].mxu0
  %v486 = vadd.f32 0.0, %v485
  %v487 = vpop.f32.mrb[0].mxu0
  %488 = vdwg.mxu0
  %v489 = vadd.f32 %v416, %v486
  %v490 = vxor.u32 %v489, 2147483648
  %v491 = vmul.f32 %v490, 1.442695
  %v492 = vpow.pop %v491
  %v493 = vadd.f32 %v492, 1.0
  %v494 = vrcp.pop %v493
  %v495 = vmul.f32 1.0, %v494
  %v496 = vtanh.pop %v489
  %v497 = vmul.f32 %v495, %v400
  %499 = vrot.lane.b32.xlu0 %v496, 32
  %v500 = vpop.permute.xlu0 %499
  %v502 = vmul.f32 %v495, %v500
  %504 = vrot.lane.b32.xlu0 %v502, 32
  %v505 = vpop.permute.xlu0 %504
  %v507 = vadd.f32 %v497, %v505
  %v508 = vtanh.pop %v507
  %510 = vrot.lane.b32.xlu0 %v508, 32
  %v511 = vpop.permute.xlu0 %510
  %v513 = vmul.f32 %v495, %v511
  %515 = vrot.lane.b32.xlu0 %v513, 64
  %v516 = vpop.permute.xlu0 %515
  %s518 = scalar_lea.vmem [#allocation3], 16
  %519 = vst.msk [vmem:[%s518] sm:$0xff] %vm303, %v516
  %s520 = scalar_lea.vmem [#allocation3], 40
  %521 = vst.msk [vmem:[%s520] sm:$0xff] %vm306, %v516
  %s522 = scalar_lea.vmem [#allocation2], 24
  %v523 = vld [vmem:[%s522] sm:$0xff]
  %v524 = vsel %vm200, %v516, 0
  %526 = vmatprep.subr.mxu0 0.0
  %527 = vmatpush1.msra.mxu0 %v195
  %528 = vmatprep.subr.mxu0 0.0
  %529 = vmatpush1.msra.mxu0 %v196
  %530 = vmatprep.subr.mxu0 0.0
  %531 = vmatpush1.msra.mxu0 %v197
  %532 = vmatprep.subr.mxu0 0.0
  %533 = vmatpush1.msra.mxu0 %v198
  %534 = vmatprep.subr.mxu0 0.0
  %535 = vmatpush1.msra.mxu0 0.0
  %536 = vmatprep.subr.mxu0 0.0
  %537 = vmatpush1.msra.mxu0 0.0
  %538 = vmatprep.subr.mxu0 0.0
  %539 = vmatpush1.msra.mxu0 0.0
  %540 = vmatprep.subr.mxu0 0.0
  %541 = vmatpush1.msra.mxu0 0.0
  %542 = vmatprep.subr.mxu0 0.0
  %543 = vmatpush1.msra.mxu0 0.0
  %544 = vmatprep.subr.mxu0 0.0
  %545 = vmatpush1.msra.mxu0 0.0
  %546 = vmatprep.subr.mxu0 0.0
  %547 = vmatpush1.msra.mxu0 0.0
  %548 = vmatprep.subr.mxu0 0.0
  %549 = vmatpush1.msra.mxu0 0.0
  %550 = vmatprep.subr.mxu0 0.0
  %551 = vmatpush1.msra.mxu0 0.0
  %552 = vmatprep.subr.mxu0 0.0
  %553 = vmatpush1.msra.mxu0 0.0
  %554 = vmatprep.subr.mxu0 0.0
  %555 = vmatpush1.msra.mxu0 0.0
  %556 = vmatprep.subr.mxu0 0.0
  %557 = vmatpush1.msra.mxu0 0.0
  %558 = vmatprep.subr.mxu0 0.0
  %559 = vmatpush1.msra.mxu0 0.0
  %560 = vmatprep.subr.mxu0 0.0
  %561 = vmatpush1.msra.mxu0 0.0
  %562 = vmatprep.subr.mxu0 0.0
  %563 = vmatpush1.msra.mxu0 0.0
  %564 = vmatprep.subr.mxu0 0.0
  %565 = vmatpush1.msra.mxu0 0.0
  %566 = vmatprep.subr.mxu0 0.0
  %567 = vmatpush1.msra.mxu0 0.0
  %568 = vmatprep.subr.mxu0 0.0
  %569 = vmatpush1.msra.mxu0 0.0
  %570 = vmatprep.subr.mxu0 0.0
  %571 = vmatpush1.msra.mxu0 0.0
  %572 = vmatprep.subr.mxu0 0.0
  %573 = vmatpush1.msra.mxu0 0.0
  %574 = vmatprep.subr.mxu0 0.0
  %575 = vmatpush1.msra.mxu0 0.0
  %576 = vmatprep.subr.mxu0 0.0
  %577 = vmatpush1.msra.mxu0 0.0
  %578 = vmatprep.subr.mxu0 0.0
  %579 = vmatpush1.msra.mxu0 0.0
  %580 = vmatprep.subr.mxu0 0.0
  %581 = vmatpush1.msra.mxu0 0.0
  %582 = vmatprep.subr.mxu0 0.0
  %583 = vmatpush1.msra.mxu0 0.0
  %584 = vmatprep.subr.mxu0 0.0
  %585 = vmatpush1.msra.mxu0 0.0
  %586 = vmatprep.subr.mxu0 0.0
  %587 = vmatpush1.msra.mxu0 0.0
  %588 = vmatprep.subr.mxu0 0.0
  %589 = vmatpush1.msra.mxu0 0.0
  %590 = vmatprep.mubr.f32.mxu0 0.0
  %591 = vmatmul.mubr.f32.gmra.mrb[0].mxu0 %v524
  %v592 = vpop.f32.mrb[0].mxu0
  %v593 = vadd.f32 0.0, %v592
  %v594 = vpop.f32.mrb[0].mxu0
  %595 = vdwg.mxu0
  %v596 = vadd.f32 %v523, %v593
  %v597 = vxor.u32 %v596, 2147483648
  %v598 = vmul.f32 %v597, 1.442695
  %v599 = vpow.pop %v598
  %v600 = vadd.f32 %v599, 1.0
  %v601 = vrcp.pop %v600
  %v602 = vmul.f32 1.0, %v601
  %v603 = vtanh.pop %v596
  %v604 = vmul.f32 %v602, %v507
  %606 = vrot.lane.b32.xlu0 %v603, 32
  %v607 = vpop.permute.xlu0 %606
  %v609 = vmul.f32 %v602, %v607
  %611 = vrot.lane.b32.xlu0 %v609, 32
  %v612 = vpop.permute.xlu0 %611
  %v614 = vadd.f32 %v604, %v612
  %v615 = vtanh.pop %v614
  %617 = vrot.lane.b32.xlu0 %v615, 32
  %v618 = vpop.permute.xlu0 %617
  %v620 = vmul.f32 %v602, %v618
  %622 = vrot.lane.b32.xlu0 %v620, 64
  %v623 = vpop.permute.xlu0 %622
  %s625 = scalar_lea.vmem [#allocation3], 24
  %626 = vst.msk [vmem:[%s625] sm:$0xff] %vm303, %v623
  %s627 = scalar_lea.vmem [#allocation3], 32
  %628 = vst.msk [vmem:[%s627] sm:$0xff] %vm306, %v623
  %s629 = scalar_lea.vmem [#allocation2], 32
  %v630 = vld [vmem:[%s629] sm:$0xff]
  %v631 = vsel %vm200, %v623, 0
  %633 = vmatprep.subr.mxu0 0.0
  %634 = vmatpush1.msra.mxu0 %v195
  %635 = vmatprep.subr.mxu0 0.0
  %636 = vmatpush1.msra.mxu0 %v196
  %637 = vmatprep.subr.mxu0 0.0
  %638 = vmatpush1.msra.mxu0 %v197
  %639 = vmatprep.subr.mxu0 0.0
  %640 = vmatpush1.msra.mxu0 %v198
  %641 = vmatprep.subr.mxu0 0.0
  %642 = vmatpush1.msra.mxu0 0.0
  %643 = vmatprep.subr.mxu0 0.0
  %644 = vmatpush1.msra.mxu0 0.0
  %645 = vmatprep.subr.mxu0 0.0
  %646 = vmatpush1.msra.mxu0 0.0
  %647 = vmatprep.subr.mxu0 0.0
  %648 = vmatpush1.msra.mxu0 0.0
  %649 = vmatprep.subr.mxu0 0.0
  %650 = vmatpush1.msra.mxu0 0.0
  %651 = vmatprep.subr.mxu0 0.0
  %652 = vmatpush1.msra.mxu0 0.0
  %653 = vmatprep.subr.mxu0 0.0
  %654 = vmatpush1.msra.mxu0 0.0
  %655 = vmatprep.subr.mxu0 0.0
  %656 = vmatpush1.msra.mxu0 0.0
  %657 = vmatprep.subr.mxu0 0.0
  %658 = vmatpush1.msra.mxu0 0.0
  %659 = vmatprep.subr.mxu0 0.0
  %660 = vmatpush1.msra.mxu0 0.0
  %661 = vmatprep.subr.mxu0 0.0
  %662 = vmatpush1.msra.mxu0 0.0
  %663 = vmatprep.subr.mxu0 0.0
  %664 = vmatpush1.msra.mxu0 0.0
  %665 = vmatprep.subr.mxu0 0.0
  %666 = vmatpush1.msra.mxu0 0.0
  %667 = vmatprep.subr.mxu0 0.0
  %668 = vmatpush1.msra.mxu0 0.0
  %669 = vmatprep.subr.mxu0 0.0
  %670 = vmatpush1.msra.mxu0 0.0
  %671 = vmatprep.subr.mxu0 0.0
  %672 = vmatpush1.msra.mxu0 0.0
  %673 = vmatprep.subr.mxu0 0.0
  %674 = vmatpush1.msra.mxu0 0.0
  %675 = vmatprep.subr.mxu0 0.0
  %676 = vmatpush1.msra.mxu0 0.0
  %677 = vmatprep.subr.mxu0 0.0
  %678 = vmatpush1.msra.mxu0 0.0
  %679 = vmatprep.subr.mxu0 0.0
  %680 = vmatpush1.msra.mxu0 0.0
  %681 = vmatprep.subr.mxu0 0.0
  %682 = vmatpush1.msra.mxu0 0.0
  %683 = vmatprep.subr.mxu0 0.0
  %684 = vmatpush1.msra.mxu0 0.0
  %685 = vmatprep.subr.mxu0 0.0
  %686 = vmatpush1.msra.mxu0 0.0
  %687 = vmatprep.subr.mxu0 0.0
  %688 = vmatpush1.msra.mxu0 0.0
  %689 = vmatprep.subr.mxu0 0.0
  %690 = vmatpush1.msra.mxu0 0.0
  %691 = vmatprep.subr.mxu0 0.0
  %692 = vmatpush1.msra.mxu0 0.0
  %693 = vmatprep.subr.mxu0 0.0
  %694 = vmatpush1.msra.mxu0 0.0
  %695 = vmatprep.subr.mxu0 0.0
  %696 = vmatpush1.msra.mxu0 0.0
  %697 = vmatprep.mubr.f32.mxu0 0.0
  %698 = vmatmul.mubr.f32.gmra.mrb[0].mxu0 %v631
  %v699 = vpop.f32.mrb[0].mxu0
  %v700 = vadd.f32 0.0, %v699
  %v701 = vpop.f32.mrb[0].mxu0
  %702 = vdwg.mxu0
  %v703 = vadd.f32 %v630, %v700
  %v704 = vxor.u32 %v703, 2147483648
  %v705 = vmul.f32 %v704, 1.442695
  %v706 = vpow.pop %v705
  %v707 = vadd.f32 %v706, 1.0
  %v708 = vrcp.pop %v707
  %v709 = vmul.f32 1.0, %v708
  %v710 = vtanh.pop %v703
  %v711 = vmul.f32 %v709, %v614
  %713 = vrot.lane.b32.xlu0 %v710, 32
  %v714 = vpop.permute.xlu0 %713
  %v716 = vmul.f32 %v709, %v714
  %718 = vrot.lane.b32.xlu0 %v716, 32
  %v719 = vpop.permute.xlu0 %718
  %v721 = vadd.f32 %v711, %v719
  %v722 = vtanh.pop %v721
  %724 = vrot.lane.b32.xlu0 %v722, 32
  %v725 = vpop.permute.xlu0 %724
  %v727 = vmul.f32 %v709, %v725
  %729 = vrot.lane.b32.xlu0 %v727, 64
  %v730 = vpop.permute.xlu0 %729
  %732 = vst.msk [vmem:[%s627] sm:$0xff] %vm303, %v730
  %733 = vst.msk [vmem:[%s625] sm:$0xff] %vm306, %v730
  %s734 = scalar_lea.vmem [#allocation2], 40
  %v735 = vld [vmem:[%s734] sm:$0xff]
  %v736 = vsel %vm200, %v730, 0
  %738 = vmatprep.subr.mxu0 0.0
  %739 = vmatpush1.msra.mxu0 %v195
  %740 = vmatprep.subr.mxu0 0.0
  %741 = vmatpush1.msra.mxu0 %v196
  %742 = vmatprep.subr.mxu0 0.0
  %743 = vmatpush1.msra.mxu0 %v197
  %744 = vmatprep.subr.mxu0 0.0
  %745 = vmatpush1.msra.mxu0 %v198
  %746 = vmatprep.subr.mxu0 0.0
  %747 = vmatpush1.msra.mxu0 0.0
  %748 = vmatprep.subr.mxu0 0.0
  %749 = vmatpush1.msra.mxu0 0.0
  %750 = vmatprep.subr.mxu0 0.0
  %751 = vmatpush1.msra.mxu0 0.0
  %752 = vmatprep.subr.mxu0 0.0
  %753 = vmatpush1.msra.mxu0 0.0
  %754 = vmatprep.subr.mxu0 0.0
  %755 = vmatpush1.msra.mxu0 0.0
  %756 = vmatprep.subr.mxu0 0.0
  %757 = vmatpush1.msra.mxu0 0.0
  %758 = vmatprep.subr.mxu0 0.0
  %759 = vmatpush1.msra.mxu0 0.0
  %760 = vmatprep.subr.mxu0 0.0
  %761 = vmatpush1.msra.mxu0 0.0
  %762 = vmatprep.subr.mxu0 0.0
  %763 = vmatpush1.msra.mxu0 0.0
  %764 = vmatprep.subr.mxu0 0.0
  %765 = vmatpush1.msra.mxu0 0.0
  %766 = vmatprep.subr.mxu0 0.0
  %767 = vmatpush1.msra.mxu0 0.0
  %768 = vmatprep.subr.mxu0 0.0
  %769 = vmatpush1.msra.mxu0 0.0
  %770 = vmatprep.subr.mxu0 0.0
  %771 = vmatpush1.msra.mxu0 0.0
  %772 = vmatprep.subr.mxu0 0.0
  %773 = vmatpush1.msra.mxu0 0.0
  %774 = vmatprep.subr.mxu0 0.0
  %775 = vmatpush1.msra.mxu0 0.0
  %776 = vmatprep.subr.mxu0 0.0
  %777 = vmatpush1.msra.mxu0 0.0
  %778 = vmatprep.subr.mxu0 0.0
  %779 = vmatpush1.msra.mxu0 0.0
  %780 = vmatprep.subr.mxu0 0.0
  %781 = vmatpush1.msra.mxu0 0.0
  %782 = vmatprep.subr.mxu0 0.0
  %783 = vmatpush1.msra.mxu0 0.0
  %784 = vmatprep.subr.mxu0 0.0
  %785 = vmatpush1.msra.mxu0 0.0
  %786 = vmatprep.subr.mxu0 0.0
  %787 = vmatpush1.msra.mxu0 0.0
  %788 = vmatprep.subr.mxu0 0.0
  %789 = vmatpush1.msra.mxu0 0.0
  %790 = vmatprep.subr.mxu0 0.0
  %791 = vmatpush1.msra.mxu0 0.0
  %792 = vmatprep.subr.mxu0 0.0
  %793 = vmatpush1.msra.mxu0 0.0
  %794 = vmatprep.subr.mxu0 0.0
  %795 = vmatpush1.msra.mxu0 0.0
  %796 = vmatprep.subr.mxu0 0.0
  %797 = vmatpush1.msra.mxu0 0.0
  %798 = vmatprep.subr.mxu0 0.0
  %799 = vmatpush1.msra.mxu0 0.0
  %800 = vmatprep.subr.mxu0 0.0
  %801 = vmatpush1.msra.mxu0 0.0
  %802 = vmatprep.mubr.f32.mxu0 0.0
  %803 = vmatmul.mubr.f32.gmra.mrb[0].mxu0 %v736
  %v804 = vpop.f32.mrb[0].mxu0
  %v805 = vadd.f32 0.0, %v804
  %v806 = vpop.f32.mrb[0].mxu0
  %807 = vdwg.mxu0
  %v808 = vadd.f32 %v735, %v805
  %v809 = vxor.u32 %v808, 2147483648
  %v810 = vmul.f32 %v809, 1.442695
  %v811 = vpow.pop %v810
  %v812 = vadd.f32 %v811, 1.0
  %v813 = vrcp.pop %v812
  %v814 = vmul.f32 1.0, %v813
  %v815 = vtanh.pop %v808
  %v816 = vmul.f32 %v814, %v721
  %818 = vrot.lane.b32.xlu0 %v815, 32
  %v819 = vpop.permute.xlu0 %818
  %v821 = vmul.f32 %v814, %v819
  %823 = vrot.lane.b32.xlu0 %v821, 32
  %v824 = vpop.permute.xlu0 %823
  %v826 = vadd.f32 %v816, %v824
  %v827 = vtanh.pop %v826
  %829 = vrot.lane.b32.xlu0 %v827, 32
  %v830 = vpop.permute.xlu0 %829
  %v832 = vmul.f32 %v814, %v830
  %834 = vrot.lane.b32.xlu0 %v832, 64
  %v835 = vpop.permute.xlu0 %834
  %837 = vst.msk [vmem:[%s520] sm:$0xff] %vm303, %v835
  %838 = vst.msk [vmem:[%s518] sm:$0xff] %vm306, %v835
  %s839 = scalar_lea.vmem [#allocation2], 48
  %v840 = vld [vmem:[%s839] sm:$0xff]
  %v841 = vsel %vm200, %v835, 0
  %843 = vmatprep.subr.mxu0 0.0
  %844 = vmatpush1.msra.mxu0 %v195
  %845 = vmatprep.subr.mxu0 0.0
  %846 = vmatpush1.msra.mxu0 %v196
  %847 = vmatprep.subr.mxu0 0.0
  %848 = vmatpush1.msra.mxu0 %v197
  %849 = vmatprep.subr.mxu0 0.0
  %850 = vmatpush1.msra.mxu0 %v198
  %851 = vmatprep.subr.mxu0 0.0
  %852 = vmatpush1.msra.mxu0 0.0
  %853 = vmatprep.subr.mxu0 0.0
  %854 = vmatpush1.msra.mxu0 0.0
  %855 = vmatprep.subr.mxu0 0.0
  %856 = vmatpush1.msra.mxu0 0.0
  %857 = vmatprep.subr.mxu0 0.0
  %858 = vmatpush1.msra.mxu0 0.0
  %859 = vmatprep.subr.mxu0 0.0
  %860 = vmatpush1.msra.mxu0 0.0
  %861 = vmatprep.subr.mxu0 0.0
  %862 = vmatpush1.msra.mxu0 0.0
  %863 = vmatprep.subr.mxu0 0.0
  %864 = vmatpush1.msra.mxu0 0.0
  %865 = vmatprep.subr.mxu0 0.0
  %866 = vmatpush1.msra.mxu0 0.0
  %867 = vmatprep.subr.mxu0 0.0
  %868 = vmatpush1.msra.mxu0 0.0
  %869 = vmatprep.subr.mxu0 0.0
  %870 = vmatpush1.msra.mxu0 0.0
  %871 = vmatprep.subr.mxu0 0.0
  %872 = vmatpush1.msra.mxu0 0.0
  %873 = vmatprep.subr.mxu0 0.0
  %874 = vmatpush1.msra.mxu0 0.0
  %875 = vmatprep.subr.mxu0 0.0
  %876 = vmatpush1.msra.mxu0 0.0
  %877 = vmatprep.subr.mxu0 0.0
  %878 = vmatpush1.msra.mxu0 0.0
  %879 = vmatprep.subr.mxu0 0.0
  %880 = vmatpush1.msra.mxu0 0.0
  %881 = vmatprep.subr.mxu0 0.0
  %882 = vmatpush1.msra.mxu0 0.0
  %883 = vmatprep.subr.mxu0 0.0
  %884 = vmatpush1.msra.mxu0 0.0
  %885 = vmatprep.subr.mxu0 0.0
  %886 = vmatpush1.msra.mxu0 0.0
  %887 = vmatprep.subr.mxu0 0.0
  %888 = vmatpush1.msra.mxu0 0.0
  %889 = vmatprep.subr.mxu0 0.0
  %890 = vmatpush1.msra.mxu0 0.0
  %891 = vmatprep.subr.mxu0 0.0
  %892 = vmatpush1.msra.mxu0 0.0
  %893 = vmatprep.subr.mxu0 0.0
  %894 = vmatpush1.msra.mxu0 0.0
  %895 = vmatprep.subr.mxu0 0.0
  %896 = vmatpush1.msra.mxu0 0.0
  %897 = vmatprep.subr.mxu0 0.0
  %898 = vmatpush1.msra.mxu0 0.0
  %899 = vmatprep.subr.mxu0 0.0
  %900 = vmatpush1.msra.mxu0 0.0
  %901 = vmatprep.subr.mxu0 0.0
  %902 = vmatpush1.msra.mxu0 0.0
  %903 = vmatprep.subr.mxu0 0.0
  %904 = vmatpush1.msra.mxu0 0.0
  %905 = vmatprep.subr.mxu0 0.0
  %906 = vmatpush1.msra.mxu0 0.0
  %907 = vmatprep.mubr.f32.mxu0 0.0
  %908 = vmatmul.mubr.f32.gmra.mrb[0].mxu0 %v841
  %v909 = vpop.f32.mrb[0].mxu0
  %v910 = vadd.f32 0.0, %v909
  %v911 = vpop.f32.mrb[0].mxu0
  %912 = vdwg.mxu0
  %v913 = vadd.f32 %v840, %v910
  %v914 = vxor.u32 %v913, 2147483648
  %v915 = vmul.f32 %v914, 1.442695
  %v916 = vpow.pop %v915
  %v917 = vadd.f32 %v916, 1.0
  %v918 = vrcp.pop %v917
  %v919 = vmul.f32 1.0, %v918
  %v920 = vtanh.pop %v913
  %v921 = vmul.f32 %v919, %v826
  %923 = vrot.lane.b32.xlu0 %v920, 32
  %v924 = vpop.permute.xlu0 %923
  %v926 = vmul.f32 %v919, %v924
  %928 = vrot.lane.b32.xlu0 %v926, 32
  %v929 = vpop.permute.xlu0 %928
  %v931 = vadd.f32 %v921, %v929
  %v932 = vtanh.pop %v931
  %934 = vrot.lane.b32.xlu0 %v932, 32
  %v935 = vpop.permute.xlu0 %934
  %v937 = vmul.f32 %v919, %v935
  %939 = vrot.lane.b32.xlu0 %v937, 64
  %v940 = vpop.permute.xlu0 %939
  %942 = vst.msk [vmem:[%s413] sm:$0xff] %vm303, %v940
  %943 = vst.msk [vmem:[%s411] sm:$0xff] %vm306, %v940
  %s944 = scalar_lea.vmem [#allocation2], 56
  %v945 = vld [vmem:[%s944] sm:$0xff]
  %v946 = vsel %vm200, %v940, 0
  %948 = vmatprep.subr.mxu0 0.0
  %949 = vmatpush1.msra.mxu0 %v195
  %950 = vmatprep.subr.mxu0 0.0
  %951 = vmatpush1.msra.mxu0 %v196
  %952 = vmatprep.subr.mxu0 0.0
  %953 = vmatpush1.msra.mxu0 %v197
  %954 = vmatprep.subr.mxu0 0.0
  %955 = vmatpush1.msra.mxu0 %v198
  %956 = vmatprep.subr.mxu0 0.0
  %957 = vmatpush1.msra.mxu0 0.0
  %958 = vmatprep.subr.mxu0 0.0
  %959 = vmatpush1.msra.mxu0 0.0
  %960 = vmatprep.subr.mxu0 0.0
  %961 = vmatpush1.msra.mxu0 0.0
  %962 = vmatprep.subr.mxu0 0.0
  %963 = vmatpush1.msra.mxu0 0.0
  %964 = vmatprep.subr.mxu0 0.0
  %965 = vmatpush1.msra.mxu0 0.0
  %966 = vmatprep.subr.mxu0 0.0
  %967 = vmatpush1.msra.mxu0 0.0
  %968 = vmatprep.subr.mxu0 0.0
  %969 = vmatpush1.msra.mxu0 0.0
  %970 = vmatprep.subr.mxu0 0.0
  %971 = vmatpush1.msra.mxu0 0.0
  %972 = vmatprep.subr.mxu0 0.0
  %973 = vmatpush1.msra.mxu0 0.0
  %974 = vmatprep.subr.mxu0 0.0
  %975 = vmatpush1.msra.mxu0 0.0
  %976 = vmatprep.subr.mxu0 0.0
  %977 = vmatpush1.msra.mxu0 0.0
  %978 = vmatprep.subr.mxu0 0.0
  %979 = vmatpush1.msra.mxu0 0.0
  %980 = vmatprep.subr.mxu0 0.0
  %981 = vmatpush1.msra.mxu0 0.0
  %982 = vmatprep.subr.mxu0 0.0
  %983 = vmatpush1.msra.mxu0 0.0
  %984 = vmatprep.subr.mxu0 0.0
  %985 = vmatpush1.msra.mxu0 0.0
  %986 = vmatprep.subr.mxu0 0.0
  %987 = vmatpush1.msra.mxu0 0.0
  %988 = vmatprep.subr.mxu0 0.0
  %989 = vmatpush1.msra.mxu0 0.0
  %990 = vmatprep.subr.mxu0 0.0
  %991 = vmatpush1.msra.mxu0 0.0
  %992 = vmatprep.subr.mxu0 0.0
  %993 = vmatpush1.msra.mxu0 0.0
  %994 = vmatprep.subr.mxu0 0.0
  %995 = vmatpush1.msra.mxu0 0.0
  %996 = vmatprep.subr.mxu0 0.0
  %997 = vmatpush1.msra.mxu0 0.0
  %998 = vmatprep.subr.mxu0 0.0
  %999 = vmatpush1.msra.mxu0 0.0
  %1000 = vmatprep.subr.mxu0 0.0
  %1001 = vmatpush1.msra.mxu0 0.0
  %1002 = vmatprep.subr.mxu0 0.0
  %1003 = vmatpush1.msra.mxu0 0.0
  %1004 = vmatprep.subr.mxu0 0.0
  %1005 = vmatpush1.msra.mxu0 0.0
  %1006 = vmatprep.subr.mxu0 0.0
  %1007 = vmatpush1.msra.mxu0 0.0
  %1008 = vmatprep.subr.mxu0 0.0
  %1009 = vmatpush1.msra.mxu0 0.0
  %1010 = vmatprep.subr.mxu0 0.0
  %1011 = vmatpush1.msra.mxu0 0.0
  %1012 = vmatprep.mubr.f32.mxu0 0.0
  %1013 = vmatmul.mubr.f32.gmra.mrb[0].mxu0 %v946
  %v1014 = vpop.f32.mrb[0].mxu0
  %v1015 = vadd.f32 0.0, %v1014
  %v1016 = vpop.f32.mrb[0].mxu0
  %1017 = vdwg.mxu0
  %v1018 = vadd.f32 %v945, %v1015
  %v1019 = vxor.u32 %v1018, 2147483648
  %v1020 = vmul.f32 %v1019, 1.442695
  %v1021 = vpow.pop %v1020
  %v1022 = vadd.f32 %v1021, 1.0
  %v1023 = vrcp.pop %v1022
  %v1024 = vmul.f32 1.0, %v1023
  %v1025 = vtanh.pop %v1018
  %v1026 = vmul.f32 %v1024, %v931
  %1028 = vrot.lane.b32.xlu0 %v1025, 32
  %v1029 = vpop.permute.xlu0 %1028
  %v1031 = vmul.f32 %v1024, %v1029
  %1033 = vrot.lane.b32.xlu0 %v1031, 32
  %v1034 = vpop.permute.xlu0 %1033
  %v1036 = vadd.f32 %v1026, %v1034
  %v1037 = vtanh.pop %v1036
  %1039 = vrot.lane.b32.xlu0 %v1037, 32
  %v1040 = vpop.permute.xlu0 %1039
  %v1042 = vmul.f32 %v1024, %v1040
  %1044 = vrot.lane.b32.xlu0 %v1042, 64
  %v1045 = vpop.permute.xlu0 %1044
  %1047 = vst.msk [vmem:[%s305] sm:$0xff] %vm303, %v1045
  %1048 = vst.msk [vmem:[#allocation3] sm:$0xff] %vm306, %v1045
  %v1049 = vld [vmem:[#allocation3] sm:$0xff]
  %v1050 = vld [vmem:[#allocation3 + $0x8] sm:$0xff]
  %v1051 = vld [vmem:[#allocation3 + $0x10] sm:$0xff]
  %v1052 = vld [vmem:[#allocation3 + $0x18] sm:$0xff]
  %v1053 = vld [vmem:[#allocation3 + $0x20] sm:$0xff]
  %v1054 = vld [vmem:[#allocation3 + $0x28] sm:$0xff]
  %v1055 = vld [vmem:[#allocation3 + $0x30] sm:$0xff]
  %v1056 = vld [vmem:[#allocation3 + $0x38] sm:$0xff]
  %v1057 = vld [vmem:[%s4] sm:$0xff]
  %v1058 = vld [vmem:[%s4 + $0x8] sm:$0xff]
  %v1059 = vld [vmem:[%s4 + $0x10] sm:$0xff]
  %v1060 = vld [vmem:[%s4 + $0x18] sm:$0xff]
  %v1061 = vld [vmem:[%s5] sm:$0x1]
  %v1063 = vlaneseq
  %v1064 = vshrl.u32 %v1063, 7
  %v1065 = vsub.s32 0, %v1064
  %v1066 = vrot.slane %v1061, %v1065
  %v1069 = vsel %vm200, %v1049, 0
  %v1072 = vsel %vm200, %v1050, 0
  %v1075 = vsel %vm200, %v1051, 0
  %v1078 = vsel %vm200, %v1052, 0
  %v1081 = vsel %vm200, %v1053, 0
  %v1084 = vsel %vm200, %v1054, 0
  %v1087 = vsel %vm200, %v1055, 0
  %v1090 = vsel %vm200, %v1056, 0
  %1092 = vmatprep.subr.mxu0 0.0
  %1093 = vmatpush1.msra.mxu0 %v1057
  %1094 = vmatprep.subr.mxu0 0.0
  %1095 = vmatpush1.msra.mxu0 %v1058
  %1096 = vmatprep.subr.mxu0 0.0
  %1097 = vmatpush1.msra.mxu0 %v1059
  %1098 = vmatprep.subr.mxu0 0.0
  %1099 = vmatpush1.msra.mxu0 %v1060
  %1100 = vmatprep.subr.mxu0 0.0
  %1101 = vmatpush1.msra.mxu0 0.0
  %1102 = vmatprep.subr.mxu0 0.0
  %1103 = vmatpush1.msra.mxu0 0.0
  %1104 = vmatprep.subr.mxu0 0.0
  %1105 = vmatpush1.msra.mxu0 0.0
  %1106 = vmatprep.subr.mxu0 0.0
  %1107 = vmatpush1.msra.mxu0 0.0
  %1108 = vmatprep.subr.mxu0 0.0
  %1109 = vmatpush1.msra.mxu0 0.0
  %1110 = vmatprep.subr.mxu0 0.0
  %1111 = vmatpush1.msra.mxu0 0.0
  %1112 = vmatprep.subr.mxu0 0.0
  %1113 = vmatpush1.msra.mxu0 0.0
  %1114 = vmatprep.subr.mxu0 0.0
  %1115 = vmatpush1.msra.mxu0 0.0
  %1116 = vmatprep.subr.mxu0 0.0
  %1117 = vmatpush1.msra.mxu0 0.0
  %1118 = vmatprep.subr.mxu0 0.0
  %1119 = vmatpush1.msra.mxu0 0.0
  %1120 = vmatprep.subr.mxu0 0.0
  %1121 = vmatpush1.msra.mxu0 0.0
  %1122 = vmatprep.subr.mxu0 0.0
  %1123 = vmatpush1.msra.mxu0 0.0
  %1124 = vmatprep.subr.mxu0 0.0
  %1125 = vmatpush1.msra.mxu0 0.0
  %1126 = vmatprep.subr.mxu0 0.0
  %1127 = vmatpush1.msra.mxu0 0.0
  %1128 = vmatprep.subr.mxu0 0.0
  %1129 = vmatpush1.msra.mxu0 0.0
  %1130 = vmatprep.subr.mxu0 0.0
  %1131 = vmatpush1.msra.mxu0 0.0
  %1132 = vmatprep.subr.mxu0 0.0
  %1133 = vmatpush1.msra.mxu0 0.0
  %1134 = vmatprep.subr.mxu0 0.0
  %1135 = vmatpush1.msra.mxu0 0.0
  %1136 = vmatprep.subr.mxu0 0.0
  %1137 = vmatpush1.msra.mxu0 0.0
  %1138 = vmatprep.subr.mxu0 0.0
  %1139 = vmatpush1.msra.mxu0 0.0
  %1140 = vmatprep.subr.mxu0 0.0
  %1141 = vmatpush1.msra.mxu0 0.0
  %1142 = vmatprep.subr.mxu0 0.0
  %1143 = vmatpush1.msra.mxu0 0.0
  %1144 = vmatprep.subr.mxu0 0.0
  %1145 = vmatpush1.msra.mxu0 0.0
  %1146 = vmatprep.subr.mxu0 0.0
  %1147 = vmatpush1.msra.mxu0 0.0
  %1148 = vmatprep.subr.mxu0 0.0
  %1149 = vmatpush1.msra.mxu0 0.0
  %1150 = vmatprep.subr.mxu0 0.0
  %1151 = vmatpush1.msra.mxu0 0.0
  %1152 = vmatprep.subr.mxu0 0.0
  %1153 = vmatpush1.msra.mxu0 0.0
  %1154 = vmatprep.subr.mxu0 0.0
  %1155 = vmatpush1.msra.mxu0 0.0
  %1156 = vmatprep.mubr.f32.mxu0 0.0
  %1157 = vmatmul.mubr.f32.gmra.mrb[0].mxu0 %v1069
  %v1158 = vpop.f32.mrb[0].mxu0
  %v1159 = vadd.f32 %v1066, %v1158
  %v1160 = vpop.f32.mrb[0].mxu0
  %1161 = vmatprep.mubr.f32.mxu0 0.0
  %1162 = vmatmul.mubr.f32.gmra.mrb[0].mxu0 %v1072
  %v1163 = vpop.f32.mrb[0].mxu0
  %v1164 = vadd.f32 %v1066, %v1163
  %v1165 = vpop.f32.mrb[0].mxu0
  %1166 = vmatprep.mubr.f32.mxu0 0.0
  %1167 = vmatmul.mubr.f32.gmra.mrb[0].mxu0 %v1075
  %v1168 = vpop.f32.mrb[0].mxu0
  %v1169 = vadd.f32 %v1066, %v1168
  %v1170 = vpop.f32.mrb[0].mxu0
  %1171 = vmatprep.mubr.f32.mxu0 0.0
  %1172 = vmatmul.mubr.f32.gmra.mrb[0].mxu0 %v1078
  %v1173 = vpop.f32.mrb[0].mxu0
  %v1174 = vadd.f32 %v1066, %v1173
  %v1175 = vpop.f32.mrb[0].mxu0
  %1176 = vmatprep.mubr.f32.mxu0 0.0
  %1177 = vmatmul.mubr.f32.gmra.mrb[0].mxu0 %v1081
  %v1178 = vpop.f32.mrb[0].mxu0
  %v1179 = vadd.f32 %v1066, %v1178
  %v1180 = vpop.f32.mrb[0].mxu0
  %1181 = vmatprep.mubr.f32.mxu0 0.0
  %1182 = vmatmul.mubr.f32.gmra.mrb[0].mxu0 %v1084
  %v1183 = vpop.f32.mrb[0].mxu0
  %v1184 = vadd.f32 %v1066, %v1183
  %v1185 = vpop.f32.mrb[0].mxu0
  %1186 = vmatprep.mubr.f32.mxu0 0.0
  %1187 = vmatmul.mubr.f32.gmra.mrb[0].mxu0 %v1087
  %v1188 = vpop.f32.mrb[0].mxu0
  %v1189 = vadd.f32 %v1066, %v1188
  %v1190 = vpop.f32.mrb[0].mxu0
  %1191 = vmatprep.mubr.f32.mxu0 0.0
  %1192 = vmatmul.mubr.f32.gmra.mrb[0].mxu0 %v1090
  %v1193 = vpop.f32.mrb[0].mxu0
  %v1194 = vadd.f32 %v1066, %v1193
  %v1195 = vpop.f32.mrb[0].mxu0
  %1196 = vdwg.mxu0
  %vm1197 = vcmask 39936
  %1198 = vst.msk [vmem:[#allocation4] sm:$0xff] %vm1197, %v1159
  %1199 = vst.msk [vmem:[#allocation4 + $0x8] sm:$0xff] %vm1197, %v1164
  %1200 = vst.msk [vmem:[#allocation4 + $0x10] sm:$0xff] %vm1197, %v1169
  %1201 = vst.msk [vmem:[#allocation4 + $0x18] sm:$0xff] %vm1197, %v1174
  %1202 = vst.msk [vmem:[#allocation4 + $0x20] sm:$0xff] %vm1197, %v1179
  %1203 = vst.msk [vmem:[#allocation4 + $0x28] sm:$0xff] %vm1197, %v1184
  %1204 = vst.msk [vmem:[#allocation4 + $0x30] sm:$0xff] %vm1197, %v1189
  %1205 = vst.msk [vmem:[#allocation4 + $0x38] sm:$0xff] %vm1197, %v1194
  %v1206 = vld [vmem:[%s6] sm:$0x1f]
  %v1207 = vlaneseq
  %v1208 = vshrl.u32 %v1207, 7
  %v1209 = vlaneseq
  %v1210 = vand.u32 %v1209, 127
  %v1211 = vld [vmem:[%s7] sm:$0x1]
  %v1212 = vld [vmem:[#allocation4] sm:$0xff]
  %v1214 = vlaneseq
  %v1215 = vshrl.u32 %v1214, 7
  %v1216 = vsub.s32 0, %v1215
  %v1217 = vrot.slane %v1211, %v1216
  %v1219 = vadd.f32 %v1217, %v1212
  %v1220 = vlaneseq
  %v1221 = vshrl.u32 %v1220, 7
  %v1222 = vsub.s32 0, %v1221
  %v1223 = vrot.slane %v1219, %v1222
  %1225 = vbcast.lane.b32.xlu0 %v1223, 256
  %v1226 = vpop.permute.xlu0 %1225
  %v1227 = vlaneseq
  %v1228 = vshrl.u32 %v1227, 7
  %v1229 = vsub.s32 1, %v1228
  %v1230 = vrot.slane %v1219, %v1229
  %1232 = vbcast.lane.b32.xlu0 %v1230, 256
  %v1233 = vpop.permute.xlu0 %1232
  %v1234 = vlaneseq
  %v1235 = vshrl.u32 %v1234, 7
  %v1236 = vsub.s32 2, %v1235
  %v1237 = vrot.slane %v1219, %v1236
  %1239 = vbcast.lane.b32.xlu0 %v1237, 256
  %v1240 = vpop.permute.xlu0 %1239
  %v1241 = vlaneseq
  %v1242 = vshrl.u32 %v1241, 7
  %v1243 = vsub.s32 3, %v1242
  %v1244 = vrot.slane %v1219, %v1243
  %1246 = vbcast.lane.b32.xlu0 %v1244, 256
  %v1247 = vpop.permute.xlu0 %1246
  %v1248 = vlaneseq
  %v1249 = vshrl.u32 %v1248, 7
  %v1250 = vsub.s32 4, %v1249
  %v1251 = vrot.slane %v1219, %v1250
  %1253 = vbcast.lane.b32.xlu0 %v1251, 256
  %v1254 = vpop.permute.xlu0 %1253
  %v1255 = vlaneseq
  %v1256 = vshrl.u32 %v1255, 7
  %v1257 = vsub.s32 5, %v1256
  %v1258 = vrot.slane %v1219, %v1257
  %1260 = vbcast.lane.b32.xlu0 %v1258, 256
  %v1261 = vpop.permute.xlu0 %1260
  %v1262 = vlaneseq
  %v1263 = vshrl.u32 %v1262, 7
  %v1264 = vsub.s32 6, %v1263
  %v1265 = vrot.slane %v1219, %v1264
  %1267 = vbcast.lane.b32.xlu0 %v1265, 256
  %v1268 = vpop.permute.xlu0 %1267
  %v1269 = vlaneseq
  %v1270 = vshrl.u32 %v1269, 7
  %v1271 = vsub.s32 7, %v1270
  %v1272 = vrot.slane %v1219, %v1271
  %1274 = vbcast.lane.b32.xlu0 %v1272, 256
  %v1275 = vpop.permute.xlu0 %1274
  %v1276 = vadd.f32 %v1226, %v1206
  %v1277 = vadd.f32 %v1233, %v1206
  %v1278 = vadd.f32 %v1240, %v1206
  %v1279 = vadd.f32 %v1247, %v1206
  %v1280 = vadd.f32 %v1254, %v1206
  %v1281 = vadd.f32 %v1261, %v1206
  %v1282 = vadd.f32 %v1268, %v1206
  %v1283 = vadd.f32 %v1275, %v1206
  %vm1284 = vcmask 36864
  %v1285 = vsel %vm1284, %v1276, -inf
  %v1286 = vrot.slane %v1285, 4
  %v1287 = vmax.f32 %v1285, %v1286
  %v1288 = vrot.slane %v1287, 2
  %v1289 = vmax.f32 %v1287, %v1288
  %v1290 = vrot.slane %v1289, 1
  %v1291 = vmax.f32 %v1289, %v1290
  %v1292 = vsel %vm1284, %v1277, -inf
  %v1293 = vrot.slane %v1292, 4
  %v1294 = vmax.f32 %v1292, %v1293
  %v1295 = vrot.slane %v1294, 2
  %v1296 = vmax.f32 %v1294, %v1295
  %v1297 = vrot.slane %v1296, 1
  %v1298 = vmax.f32 %v1296, %v1297
  %v1299 = vsel %vm1284, %v1278, -inf
  %v1300 = vrot.slane %v1299, 4
  %v1301 = vmax.f32 %v1299, %v1300
  %v1302 = vrot.slane %v1301, 2
  %v1303 = vmax.f32 %v1301, %v1302
  %v1304 = vrot.slane %v1303, 1
  %v1305 = vmax.f32 %v1303, %v1304
  %v1306 = vsel %vm1284, %v1279, -inf
  %v1307 = vrot.slane %v1306, 4
  %v1308 = vmax.f32 %v1306, %v1307
  %v1309 = vrot.slane %v1308, 2
  %v1310 = vmax.f32 %v1308, %v1309
  %v1311 = vrot.slane %v1310, 1
  %v1312 = vmax.f32 %v1310, %v1311
  %v1313 = vsel %vm1284, %v1280, -inf
  %v1314 = vrot.slane %v1313, 4
  %v1315 = vmax.f32 %v1313, %v1314
  %v1316 = vrot.slane %v1315, 2
  %v1317 = vmax.f32 %v1315, %v1316
  %v1318 = vrot.slane %v1317, 1
  %v1319 = vmax.f32 %v1317, %v1318
  %v1320 = vsel %vm1284, %v1281, -inf
  %v1321 = vrot.slane %v1320, 4
  %v1322 = vmax.f32 %v1320, %v1321
  %v1323 = vrot.slane %v1322, 2
  %v1324 = vmax.f32 %v1322, %v1323
  %v1325 = vrot.slane %v1324, 1
  %v1326 = vmax.f32 %v1324, %v1325
  %v1327 = vsel %vm1284, %v1282, -inf
  %v1328 = vrot.slane %v1327, 4
  %v1329 = vmax.f32 %v1327, %v1328
  %v1330 = vrot.slane %v1329, 2
  %v1331 = vmax.f32 %v1329, %v1330
  %v1332 = vrot.slane %v1331, 1
  %v1333 = vmax.f32 %v1331, %v1332
  %v1334 = vsel %vm1284, %v1283, -inf
  %v1335 = vrot.slane %v1334, 4
  %v1336 = vmax.f32 %v1334, %v1335
  %v1337 = vrot.slane %v1336, 2
  %v1338 = vmax.f32 %v1336, %v1337
  %v1339 = vrot.slane %v1338, 1
  %v1340 = vmax.f32 %v1338, %v1339
  %vm1341 = vcmp.eq.f32.partialorder %v1276, %v1291
  %vm1342 = vcmp.eq.f32.partialorder %v1277, %v1298
  %vm1343 = vcmp.eq.f32.partialorder %v1278, %v1305
  %vm1344 = vcmp.eq.f32.partialorder %v1279, %v1312
  %vm1345 = vcmp.eq.f32.partialorder %v1280, %v1319
  %vm1346 = vcmp.eq.f32.partialorder %v1281, %v1326
  %vm1347 = vcmp.eq.f32.partialorder %v1282, %v1333
  %vm1348 = vcmp.eq.f32.partialorder %v1283, %v1340
  %v1349 = vsel %vm1341, %v1208, 5
  %v1350 = vsel %vm1342, %v1208, 5
  %v1351 = vsel %vm1343, %v1208, 5
  %v1352 = vsel %vm1344, %v1208, 5
  %v1353 = vsel %vm1345, %v1208, 5
  %v1354 = vsel %vm1346, %v1208, 5
  %v1355 = vsel %vm1347, %v1208, 5
  %v1356 = vsel %vm1348, %v1208, 5
  %v1357 = vsel %vm1284, %v1349, 2147483647
  %v1358 = vrot.slane %v1357, 4
  %vm1359 = vcmp.lt.s32.totalorder %v1357, %v1358
  %v1360 = vsel %vm1359, %v1357, %v1358
  %v1361 = vrot.slane %v1360, 2
  %vm1362 = vcmp.lt.s32.totalorder %v1360, %v1361
  %v1363 = vsel %vm1362, %v1360, %v1361
  %v1364 = vrot.slane %v1363, 1
  %vm1365 = vcmp.lt.s32.totalorder %v1363, %v1364
  %v1366 = vsel %vm1365, %v1363, %v1364
  %v1367 = vsel %vm1284, %v1350, 2147483647
  %v1368 = vrot.slane %v1367, 4
  %vm1369 = vcmp.lt.s32.totalorder %v1367, %v1368
  %v1370 = vsel %vm1369, %v1367, %v1368
  %v1371 = vrot.slane %v1370, 2
  %vm1372 = vcmp.lt.s32.totalorder %v1370, %v1371
  %v1373 = vsel %vm1372, %v1370, %v1371
  %v1374 = vrot.slane %v1373, 1
  %vm1375 = vcmp.lt.s32.totalorder %v1373, %v1374
  %v1376 = vsel %vm1375, %v1373, %v1374
  %v1377 = vsel %vm1284, %v1351, 2147483647
  %v1378 = vrot.slane %v1377, 4
  %vm1379 = vcmp.lt.s32.totalorder %v1377, %v1378
  %v1380 = vsel %vm1379, %v1377, %v1378
  %v1381 = vrot.slane %v1380, 2
  %vm1382 = vcmp.lt.s32.totalorder %v1380, %v1381
  %v1383 = vsel %vm1382, %v1380, %v1381
  %v1384 = vrot.slane %v1383, 1
  %vm1385 = vcmp.lt.s32.totalorder %v1383, %v1384
  %v1386 = vsel %vm1385, %v1383, %v1384
  %v1387 = vsel %vm1284, %v1352, 2147483647
  %v1388 = vrot.slane %v1387, 4
  %vm1389 = vcmp.lt.s32.totalorder %v1387, %v1388
  %v1390 = vsel %vm1389, %v1387, %v1388
  %v1391 = vrot.slane %v1390, 2
  %vm1392 = vcmp.lt.s32.totalorder %v1390, %v1391
  %v1393 = vsel %vm1392, %v1390, %v1391
  %v1394 = vrot.slane %v1393, 1
  %vm1395 = vcmp.lt.s32.totalorder %v1393, %v1394
  %v1396 = vsel %vm1395, %v1393, %v1394
  %v1397 = vsel %vm1284, %v1353, 2147483647
  %v1398 = vrot.slane %v1397, 4
  %vm1399 = vcmp.lt.s32.totalorder %v1397, %v1398
  %v1400 = vsel %vm1399, %v1397, %v1398
  %v1401 = vrot.slane %v1400, 2
  %vm1402 = vcmp.lt.s32.totalorder %v1400, %v1401
  %v1403 = vsel %vm1402, %v1400, %v1401
  %v1404 = vrot.slane %v1403, 1
  %vm1405 = vcmp.lt.s32.totalorder %v1403, %v1404
  %v1406 = vsel %vm1405, %v1403, %v1404
  %v1407 = vsel %vm1284, %v1354, 2147483647
  %v1408 = vrot.slane %v1407, 4
  %vm1409 = vcmp.lt.s32.totalorder %v1407, %v1408
  %v1410 = vsel %vm1409, %v1407, %v1408
  %v1411 = vrot.slane %v1410, 2
  %vm1412 = vcmp.lt.s32.totalorder %v1410, %v1411
  %v1413 = vsel %vm1412, %v1410, %v1411
  %v1414 = vrot.slane %v1413, 1
  %vm1415 = vcmp.lt.s32.totalorder %v1413, %v1414
  %v1416 = vsel %vm1415, %v1413, %v1414
  %v1417 = vsel %vm1284, %v1355, 2147483647
  %v1418 = vrot.slane %v1417, 4
  %vm1419 = vcmp.lt.s32.totalorder %v1417, %v1418
  %v1420 = vsel %vm1419, %v1417, %v1418
  %v1421 = vrot.slane %v1420, 2
  %vm1422 = vcmp.lt.s32.totalorder %v1420, %v1421
  %v1423 = vsel %vm1422, %v1420, %v1421
  %v1424 = vrot.slane %v1423, 1
  %vm1425 = vcmp.lt.s32.totalorder %v1423, %v1424
  %v1426 = vsel %vm1425, %v1423, %v1424
  %v1427 = vsel %vm1284, %v1356, 2147483647
  %v1428 = vrot.slane %v1427, 4
  %vm1429 = vcmp.lt.s32.totalorder %v1427, %v1428
  %v1430 = vsel %vm1429, %v1427, %v1428
  %v1431 = vrot.slane %v1430, 2
  %vm1432 = vcmp.lt.s32.totalorder %v1430, %v1431
  %v1433 = vsel %vm1432, %v1430, %v1431
  %v1434 = vrot.slane %v1433, 1
  %vm1435 = vcmp.lt.s32.totalorder %v1433, %v1434
  %v1436 = vsel %vm1435, %v1433, %v1434
  %vm1437 = vcmask 1041409
  %v1438 = vsel %vm1437, %v1376, %v1366
  %vm1439 = vcmask 1042434
  %v1440 = vsel %vm1439, %v1386, %v1438
  %vm1441 = vcmask 1043459
  %v1442 = vsel %vm1441, %v1396, %v1440
  %vm1443 = vcmask 1044484
  %v1444 = vsel %vm1443, %v1406, %v1442
  %vm1445 = vcmask 1045509
  %v1446 = vsel %vm1445, %v1416, %v1444
  %vm1447 = vcmask 1046534
  %v1448 = vsel %vm1447, %v1426, %v1446
  %vm1449 = vcmask 1047559
  %v1450 = vsel %vm1449, %v1436, %v1448
  %s1451 = scalar_lea.vmem [#allocation5], 8
  %1452 = vst.msk [vmem:[%s1451] sm:$0xff] %vm1197, %v1450
  %s1453 = scalar_lea.vmem [#allocation4], 8
  %v1454 = vld [vmem:[%s1453] sm:$0xff]
  %v1463 = vsel %vm1437, %v1298, %v1291
  %v1464 = vsel %vm1439, %v1305, %v1463
  %v1465 = vsel %vm1441, %v1312, %v1464
  %v1466 = vsel %vm1443, %v1319, %v1465
  %v1467 = vsel %vm1445, %v1326, %v1466
  %v1468 = vsel %vm1447, %v1333, %v1467
  %v1469 = vsel %vm1449, %v1340, %v1468
  %v1471 = vadd.f32 %v1454, %v1469
  %v1472 = vlaneseq
  %v1473 = vshrl.u32 %v1472, 7
  %v1474 = vsub.s32 0, %v1473
  %v1475 = vrot.slane %v1471, %v1474
  %1477 = vbcast.lane.b32.xlu0 %v1475, 256
  %v1478 = vpop.permute.xlu0 %1477
  %v1479 = vlaneseq
  %v1480 = vshrl.u32 %v1479, 7
  %v1481 = vsub.s32 1, %v1480
  %v1482 = vrot.slane %v1471, %v1481
  %1484 = vbcast.lane.b32.xlu0 %v1482, 256
  %v1485 = vpop.permute.xlu0 %1484
  %v1486 = vlaneseq
  %v1487 = vshrl.u32 %v1486, 7
  %v1488 = vsub.s32 2, %v1487
  %v1489 = vrot.slane %v1471, %v1488
  %1491 = vbcast.lane.b32.xlu0 %v1489, 256
  %v1492 = vpop.permute.xlu0 %1491
  %v1493 = vlaneseq
  %v1494 = vshrl.u32 %v1493, 7
  %v1495 = vsub.s32 3, %v1494
  %v1496 = vrot.slane %v1471, %v1495
  %1498 = vbcast.lane.b32.xlu0 %v1496, 256
  %v1499 = vpop.permute.xlu0 %1498
  %v1500 = vlaneseq
  %v1501 = vshrl.u32 %v1500, 7
  %v1502 = vsub.s32 4, %v1501
  %v1503 = vrot.slane %v1471, %v1502
  %1505 = vbcast.lane.b32.xlu0 %v1503, 256
  %v1506 = vpop.permute.xlu0 %1505
  %v1507 = vlaneseq
  %v1508 = vshrl.u32 %v1507, 7
  %v1509 = vsub.s32 5, %v1508
  %v1510 = vrot.slane %v1471, %v1509
  %1512 = vbcast.lane.b32.xlu0 %v1510, 256
  %v1513 = vpop.permute.xlu0 %1512
  %v1514 = vlaneseq
  %v1515 = vshrl.u32 %v1514, 7
  %v1516 = vsub.s32 6, %v1515
  %v1517 = vrot.slane %v1471, %v1516
  %1519 = vbcast.lane.b32.xlu0 %v1517, 256
  %v1520 = vpop.permute.xlu0 %1519
  %v1521 = vlaneseq
  %v1522 = vshrl.u32 %v1521, 7
  %v1523 = vsub.s32 7, %v1522
  %v1524 = vrot.slane %v1471, %v1523
  %1526 = vbcast.lane.b32.xlu0 %v1524, 256
  %v1527 = vpop.permute.xlu0 %1526
  %v1528 = vadd.f32 %v1478, %v1206
  %v1529 = vadd.f32 %v1485, %v1206
  %v1530 = vadd.f32 %v1492, %v1206
  %v1531 = vadd.f32 %v1499, %v1206
  %v1532 = vadd.f32 %v1506, %v1206
  %v1533 = vadd.f32 %v1513, %v1206
  %v1534 = vadd.f32 %v1520, %v1206
  %v1535 = vadd.f32 %v1527, %v1206
  %v1536 = vsel %vm1284, %v1528, -inf
  %v1537 = vrot.slane %v1536, 4
  %v1538 = vmax.f32 %v1536, %v1537
  %v1539 = vrot.slane %v1538, 2
  %v1540 = vmax.f32 %v1538, %v1539
  %v1541 = vrot.slane %v1540, 1
  %v1542 = vmax.f32 %v1540, %v1541
  %v1543 = vsel %vm1284, %v1529, -inf
  %v1544 = vrot.slane %v1543, 4
  %v1545 = vmax.f32 %v1543, %v1544
  %v1546 = vrot.slane %v1545, 2
  %v1547 = vmax.f32 %v1545, %v1546
  %v1548 = vrot.slane %v1547, 1
  %v1549 = vmax.f32 %v1547, %v1548
  %v1550 = vsel %vm1284, %v1530, -inf
  %v1551 = vrot.slane %v1550, 4
  %v1552 = vmax.f32 %v1550, %v1551
  %v1553 = vrot.slane %v1552, 2
  %v1554 = vmax.f32 %v1552, %v1553
  %v1555 = vrot.slane %v1554, 1
  %v1556 = vmax.f32 %v1554, %v1555
  %v1557 = vsel %vm1284, %v1531, -inf
  %v1558 = vrot.slane %v1557, 4
  %v1559 = vmax.f32 %v1557, %v1558
  %v1560 = vrot.slane %v1559, 2
  %v1561 = vmax.f32 %v1559, %v1560
  %v1562 = vrot.slane %v1561, 1
  %v1563 = vmax.f32 %v1561, %v1562
  %v1564 = vsel %vm1284, %v1532, -inf
  %v1565 = vrot.slane %v1564, 4
  %v1566 = vmax.f32 %v1564, %v1565
  %v1567 = vrot.slane %v1566, 2
  %v1568 = vmax.f32 %v1566, %v1567
  %v1569 = vrot.slane %v1568, 1
  %v1570 = vmax.f32 %v1568, %v1569
  %v1571 = vsel %vm1284, %v1533, -inf
  %v1572 = vrot.slane %v1571, 4
  %v1573 = vmax.f32 %v1571, %v1572
  %v1574 = vrot.slane %v1573, 2
  %v1575 = vmax.f32 %v1573, %v1574
  %v1576 = vrot.slane %v1575, 1
  %v1577 = vmax.f32 %v1575, %v1576
  %v1578 = vsel %vm1284, %v1534, -inf
  %v1579 = vrot.slane %v1578, 4
  %v1580 = vmax.f32 %v1578, %v1579
  %v1581 = vrot.slane %v1580, 2
  %v1582 = vmax.f32 %v1580, %v1581
  %v1583 = vrot.slane %v1582, 1
  %v1584 = vmax.f32 %v1582, %v1583
  %v1585 = vsel %vm1284, %v1535, -inf
  %v1586 = vrot.slane %v1585, 4
  %v1587 = vmax.f32 %v1585, %v1586
  %v1588 = vrot.slane %v1587, 2
  %v1589 = vmax.f32 %v1587, %v1588
  %v1590 = vrot.slane %v1589, 1
  %v1591 = vmax.f32 %v1589, %v1590
  %vm1592 = vcmp.eq.f32.partialorder %v1528, %v1542
  %vm1593 = vcmp.eq.f32.partialorder %v1529, %v1549
  %vm1594 = vcmp.eq.f32.partialorder %v1530, %v1556
  %vm1595 = vcmp.eq.f32.partialorder %v1531, %v1563
  %vm1596 = vcmp.eq.f32.partialorder %v1532, %v1570
  %vm1597 = vcmp.eq.f32.partialorder %v1533, %v1577
  %vm1598 = vcmp.eq.f32.partialorder %v1534, %v1584
  %vm1599 = vcmp.eq.f32.partialorder %v1535, %v1591
  %v1600 = vsel %vm1592, %v1208, 5
  %v1601 = vsel %vm1593, %v1208, 5
  %v1602 = vsel %vm1594, %v1208, 5
  %v1603 = vsel %vm1595, %v1208, 5
  %v1604 = vsel %vm1596, %v1208, 5
  %v1605 = vsel %vm1597, %v1208, 5
  %v1606 = vsel %vm1598, %v1208, 5
  %v1607 = vsel %vm1599, %v1208, 5
  %v1608 = vsel %vm1284, %v1600, 2147483647
  %v1609 = vrot.slane %v1608, 4
  %vm1610 = vcmp.lt.s32.totalorder %v1608, %v1609
  %v1611 = vsel %vm1610, %v1608, %v1609
  %v1612 = vrot.slane %v1611, 2
  %vm1613 = vcmp.lt.s32.totalorder %v1611, %v1612
  %v1614 = vsel %vm1613, %v1611, %v1612
  %v1615 = vrot.slane %v1614, 1
  %vm1616 = vcmp.lt.s32.totalorder %v1614, %v1615
  %v1617 = vsel %vm1616, %v1614, %v1615
  %v1618 = vsel %vm1284, %v1601, 2147483647
  %v1619 = vrot.slane %v1618, 4
  %vm1620 = vcmp.lt.s32.totalorder %v1618, %v1619
  %v1621 = vsel %vm1620, %v1618, %v1619
  %v1622 = vrot.slane %v1621, 2
  %vm1623 = vcmp.lt.s32.totalorder %v1621, %v1622
  %v1624 = vsel %vm1623, %v1621, %v1622
  %v1625 = vrot.slane %v1624, 1
  %vm1626 = vcmp.lt.s32.totalorder %v1624, %v1625
  %v1627 = vsel %vm1626, %v1624, %v1625
  %v1628 = vsel %vm1284, %v1602, 2147483647
  %v1629 = vrot.slane %v1628, 4
  %vm1630 = vcmp.lt.s32.totalorder %v1628, %v1629
  %v1631 = vsel %vm1630, %v1628, %v1629
  %v1632 = vrot.slane %v1631, 2
  %vm1633 = vcmp.lt.s32.totalorder %v1631, %v1632
  %v1634 = vsel %vm1633, %v1631, %v1632
  %v1635 = vrot.slane %v1634, 1
  %vm1636 = vcmp.lt.s32.totalorder %v1634, %v1635
  %v1637 = vsel %vm1636, %v1634, %v1635
  %v1638 = vsel %vm1284, %v1603, 2147483647
  %v1639 = vrot.slane %v1638, 4
  %vm1640 = vcmp.lt.s32.totalorder %v1638, %v1639
  %v1641 = vsel %vm1640, %v1638, %v1639
  %v1642 = vrot.slane %v1641, 2
  %vm1643 = vcmp.lt.s32.totalorder %v1641, %v1642
  %v1644 = vsel %vm1643, %v1641, %v1642
  %v1645 = vrot.slane %v1644, 1
  %vm1646 = vcmp.lt.s32.totalorder %v1644, %v1645
  %v1647 = vsel %vm1646, %v1644, %v1645
  %v1648 = vsel %vm1284, %v1604, 2147483647
  %v1649 = vrot.slane %v1648, 4
  %vm1650 = vcmp.lt.s32.totalorder %v1648, %v1649
  %v1651 = vsel %vm1650, %v1648, %v1649
  %v1652 = vrot.slane %v1651, 2
  %vm1653 = vcmp.lt.s32.totalorder %v1651, %v1652
  %v1654 = vsel %vm1653, %v1651, %v1652
  %v1655 = vrot.slane %v1654, 1
  %vm1656 = vcmp.lt.s32.totalorder %v1654, %v1655
  %v1657 = vsel %vm1656, %v1654, %v1655
  %v1658 = vsel %vm1284, %v1605, 2147483647
  %v1659 = vrot.slane %v1658, 4
  %vm1660 = vcmp.lt.s32.totalorder %v1658, %v1659
  %v1661 = vsel %vm1660, %v1658, %v1659
  %v1662 = vrot.slane %v1661, 2
  %vm1663 = vcmp.lt.s32.totalorder %v1661, %v1662
  %v1664 = vsel %vm1663, %v1661, %v1662
  %v1665 = vrot.slane %v1664, 1
  %vm1666 = vcmp.lt.s32.totalorder %v1664, %v1665
  %v1667 = vsel %vm1666, %v1664, %v1665
  %v1668 = vsel %vm1284, %v1606, 2147483647
  %v1669 = vrot.slane %v1668, 4
  %vm1670 = vcmp.lt.s32.totalorder %v1668, %v1669
  %v1671 = vsel %vm1670, %v1668, %v1669
  %v1672 = vrot.slane %v1671, 2
  %vm1673 = vcmp.lt.s32.totalorder %v1671, %v1672
  %v1674 = vsel %vm1673, %v1671, %v1672
  %v1675 = vrot.slane %v1674, 1
  %vm1676 = vcmp.lt.s32.totalorder %v1674, %v1675
  %v1677 = vsel %vm1676, %v1674, %v1675
  %v1678 = vsel %vm1284, %v1607, 2147483647
  %v1679 = vrot.slane %v1678, 4
  %vm1680 = vcmp.lt.s32.totalorder %v1678, %v1679
  %v1681 = vsel %vm1680, %v1678, %v1679
  %v1682 = vrot.slane %v1681, 2
  %vm1683 = vcmp.lt.s32.totalorder %v1681, %v1682
  %v1684 = vsel %vm1683, %v1681, %v1682
  %v1685 = vrot.slane %v1684, 1
  %vm1686 = vcmp.lt.s32.totalorder %v1684, %v1685
  %v1687 = vsel %vm1686, %v1684, %v1685
  %v1688 = vsel %vm1437, %v1627, %v1617
  %v1689 = vsel %vm1439, %v1637, %v1688
  %v1690 = vsel %vm1441, %v1647, %v1689
  %v1691 = vsel %vm1443, %v1657, %v1690
  %v1692 = vsel %vm1445, %v1667, %v1691
  %v1693 = vsel %vm1447, %v1677, %v1692
  %v1694 = vsel %vm1449, %v1687, %v1693
  %s1695 = scalar_lea.vmem [#allocation5], 16
  %1696 = vst.msk [vmem:[%s1695] sm:$0xff] %vm1197, %v1694
  %s1697 = scalar_lea.vmem [#allocation4], 16
  %v1698 = vld [vmem:[%s1697] sm:$0xff]
  %v1707 = vsel %vm1437, %v1549, %v1542
  %v1708 = vsel %vm1439, %v1556, %v1707
  %v1709 = vsel %vm1441, %v1563, %v1708
  %v1710 = vsel %vm1443, %v1570, %v1709
  %v1711 = vsel %vm1445, %v1577, %v1710
  %v1712 = vsel %vm1447, %v1584, %v1711
  %v1713 = vsel %vm1449, %v1591, %v1712
  %v1715 = vadd.f32 %v1698, %v1713
  %v1716 = vlaneseq
  %v1717 = vshrl.u32 %v1716, 7
  %v1718 = vsub.s32 0, %v1717
  %v1719 = vrot.slane %v1715, %v1718
  %1721 = vbcast.lane.b32.xlu0 %v1719, 256
  %v1722 = vpop.permute.xlu0 %1721
  %v1723 = vlaneseq
  %v1724 = vshrl.u32 %v1723, 7
  %v1725 = vsub.s32 1, %v1724
  %v1726 = vrot.slane %v1715, %v1725
  %1728 = vbcast.lane.b32.xlu0 %v1726, 256
  %v1729 = vpop.permute.xlu0 %1728
  %v1730 = vlaneseq
  %v1731 = vshrl.u32 %v1730, 7
  %v1732 = vsub.s32 2, %v1731
  %v1733 = vrot.slane %v1715, %v1732
  %1735 = vbcast.lane.b32.xlu0 %v1733, 256
  %v1736 = vpop.permute.xlu0 %1735
  %v1737 = vlaneseq
  %v1738 = vshrl.u32 %v1737, 7
  %v1739 = vsub.s32 3, %v1738
  %v1740 = vrot.slane %v1715, %v1739
  %1742 = vbcast.lane.b32.xlu0 %v1740, 256
  %v1743 = vpop.permute.xlu0 %1742
  %v1744 = vlaneseq
  %v1745 = vshrl.u32 %v1744, 7
  %v1746 = vsub.s32 4, %v1745
  %v1747 = vrot.slane %v1715, %v1746
  %1749 = vbcast.lane.b32.xlu0 %v1747, 256
  %v1750 = vpop.permute.xlu0 %1749
  %v1751 = vlaneseq
  %v1752 = vshrl.u32 %v1751, 7
  %v1753 = vsub.s32 5, %v1752
  %v1754 = vrot.slane %v1715, %v1753
  %1756 = vbcast.lane.b32.xlu0 %v1754, 256
  %v1757 = vpop.permute.xlu0 %1756
  %v1758 = vlaneseq
  %v1759 = vshrl.u32 %v1758, 7
  %v1760 = vsub.s32 6, %v1759
  %v1761 = vrot.slane %v1715, %v1760
  %1763 = vbcast.lane.b32.xlu0 %v1761, 256
  %v1764 = vpop.permute.xlu0 %1763
  %v1765 = vlaneseq
  %v1766 = vshrl.u32 %v1765, 7
  %v1767 = vsub.s32 7, %v1766
  %v1768 = vrot.slane %v1715, %v1767
  %1770 = vbcast.lane.b32.xlu0 %v1768, 256
  %v1771 = vpop.permute.xlu0 %1770
  %v1772 = vadd.f32 %v1722, %v1206
  %v1773 = vadd.f32 %v1729, %v1206
  %v1774 = vadd.f32 %v1736, %v1206
  %v1775 = vadd.f32 %v1743, %v1206
  %v1776 = vadd.f32 %v1750, %v1206
  %v1777 = vadd.f32 %v1757, %v1206
  %v1778 = vadd.f32 %v1764, %v1206
  %v1779 = vadd.f32 %v1771, %v1206
  %v1780 = vsel %vm1284, %v1772, -inf
  %v1781 = vrot.slane %v1780, 4
  %v1782 = vmax.f32 %v1780, %v1781
  %v1783 = vrot.slane %v1782, 2
  %v1784 = vmax.f32 %v1782, %v1783
  %v1785 = vrot.slane %v1784, 1
  %v1786 = vmax.f32 %v1784, %v1785
  %v1787 = vsel %vm1284, %v1773, -inf
  %v1788 = vrot.slane %v1787, 4
  %v1789 = vmax.f32 %v1787, %v1788
  %v1790 = vrot.slane %v1789, 2
  %v1791 = vmax.f32 %v1789, %v1790
  %v1792 = vrot.slane %v1791, 1
  %v1793 = vmax.f32 %v1791, %v1792
  %v1794 = vsel %vm1284, %v1774, -inf
  %v1795 = vrot.slane %v1794, 4
  %v1796 = vmax.f32 %v1794, %v1795
  %v1797 = vrot.slane %v1796, 2
  %v1798 = vmax.f32 %v1796, %v1797
  %v1799 = vrot.slane %v1798, 1
  %v1800 = vmax.f32 %v1798, %v1799
  %v1801 = vsel %vm1284, %v1775, -inf
  %v1802 = vrot.slane %v1801, 4
  %v1803 = vmax.f32 %v1801, %v1802
  %v1804 = vrot.slane %v1803, 2
  %v1805 = vmax.f32 %v1803, %v1804
  %v1806 = vrot.slane %v1805, 1
  %v1807 = vmax.f32 %v1805, %v1806
  %v1808 = vsel %vm1284, %v1776, -inf
  %v1809 = vrot.slane %v1808, 4
  %v1810 = vmax.f32 %v1808, %v1809
  %v1811 = vrot.slane %v1810, 2
  %v1812 = vmax.f32 %v1810, %v1811
  %v1813 = vrot.slane %v1812, 1
  %v1814 = vmax.f32 %v1812, %v1813
  %v1815 = vsel %vm1284, %v1777, -inf
  %v1816 = vrot.slane %v1815, 4
  %v1817 = vmax.f32 %v1815, %v1816
  %v1818 = vrot.slane %v1817, 2
  %v1819 = vmax.f32 %v1817, %v1818
  %v1820 = vrot.slane %v1819, 1
  %v1821 = vmax.f32 %v1819, %v1820
  %v1822 = vsel %vm1284, %v1778, -inf
  %v1823 = vrot.slane %v1822, 4
  %v1824 = vmax.f32 %v1822, %v1823
  %v1825 = vrot.slane %v1824, 2
  %v1826 = vmax.f32 %v1824, %v1825
  %v1827 = vrot.slane %v1826, 1
  %v1828 = vmax.f32 %v1826, %v1827
  %v1829 = vsel %vm1284, %v1779, -inf
  %v1830 = vrot.slane %v1829, 4
  %v1831 = vmax.f32 %v1829, %v1830
  %v1832 = vrot.slane %v1831, 2
  %v1833 = vmax.f32 %v1831, %v1832
  %v1834 = vrot.slane %v1833, 1
  %v1835 = vmax.f32 %v1833, %v1834
  %vm1836 = vcmp.eq.f32.partialorder %v1772, %v1786
  %vm1837 = vcmp.eq.f32.partialorder %v1773, %v1793
  %vm1838 = vcmp.eq.f32.partialorder %v1774, %v1800
  %vm1839 = vcmp.eq.f32.partialorder %v1775, %v1807
  %vm1840 = vcmp.eq.f32.partialorder %v1776, %v1814
  %vm1841 = vcmp.eq.f32.partialorder %v1777, %v1821
  %vm1842 = vcmp.eq.f32.partialorder %v1778, %v1828
  %vm1843 = vcmp.eq.f32.partialorder %v1779, %v1835
  %v1844 = vsel %vm1836, %v1208, 5
  %v1845 = vsel %vm1837, %v1208, 5
  %v1846 = vsel %vm1838, %v1208, 5
  %v1847 = vsel %vm1839, %v1208, 5
  %v1848 = vsel %vm1840, %v1208, 5
  %v1849 = vsel %vm1841, %v1208, 5
  %v1850 = vsel %vm1842, %v1208, 5
  %v1851 = vsel %vm1843, %v1208, 5
  %v1852 = vsel %vm1284, %v1844, 2147483647
  %v1853 = vrot.slane %v1852, 4
  %vm1854 = vcmp.lt.s32.totalorder %v1852, %v1853
  %v1855 = vsel %vm1854, %v1852, %v1853
  %v1856 = vrot.slane %v1855, 2
  %vm1857 = vcmp.lt.s32.totalorder %v1855, %v1856
  %v1858 = vsel %vm1857, %v1855, %v1856
  %v1859 = vrot.slane %v1858, 1
  %vm1860 = vcmp.lt.s32.totalorder %v1858, %v1859
  %v1861 = vsel %vm1860, %v1858, %v1859
  %v1862 = vsel %vm1284, %v1845, 2147483647
  %v1863 = vrot.slane %v1862, 4
  %vm1864 = vcmp.lt.s32.totalorder %v1862, %v1863
  %v1865 = vsel %vm1864, %v1862, %v1863
  %v1866 = vrot.slane %v1865, 2
  %vm1867 = vcmp.lt.s32.totalorder %v1865, %v1866
  %v1868 = vsel %vm1867, %v1865, %v1866
  %v1869 = vrot.slane %v1868, 1
  %vm1870 = vcmp.lt.s32.totalorder %v1868, %v1869
  %v1871 = vsel %vm1870, %v1868, %v1869
  %v1872 = vsel %vm1284, %v1846, 2147483647
  %v1873 = vrot.slane %v1872, 4
  %vm1874 = vcmp.lt.s32.totalorder %v1872, %v1873
  %v1875 = vsel %vm1874, %v1872, %v1873
  %v1876 = vrot.slane %v1875, 2
  %vm1877 = vcmp.lt.s32.totalorder %v1875, %v1876
  %v1878 = vsel %vm1877, %v1875, %v1876
  %v1879 = vrot.slane %v1878, 1
  %vm1880 = vcmp.lt.s32.totalorder %v1878, %v1879
  %v1881 = vsel %vm1880, %v1878, %v1879
  %v1882 = vsel %vm1284, %v1847, 2147483647
  %v1883 = vrot.slane %v1882, 4
  %vm1884 = vcmp.lt.s32.totalorder %v1882, %v1883
  %v1885 = vsel %vm1884, %v1882, %v1883
  %v1886 = vrot.slane %v1885, 2
  %vm1887 = vcmp.lt.s32.totalorder %v1885, %v1886
  %v1888 = vsel %vm1887, %v1885, %v1886
  %v1889 = vrot.slane %v1888, 1
  %vm1890 = vcmp.lt.s32.totalorder %v1888, %v1889
  %v1891 = vsel %vm1890, %v1888, %v1889
  %v1892 = vsel %vm1284, %v1848, 2147483647
  %v1893 = vrot.slane %v1892, 4
  %vm1894 = vcmp.lt.s32.totalorder %v1892, %v1893
  %v1895 = vsel %vm1894, %v1892, %v1893
  %v1896 = vrot.slane %v1895, 2
  %vm1897 = vcmp.lt.s32.totalorder %v1895, %v1896
  %v1898 = vsel %vm1897, %v1895, %v1896
  %v1899 = vrot.slane %v1898, 1
  %vm1900 = vcmp.lt.s32.totalorder %v1898, %v1899
  %v1901 = vsel %vm1900, %v1898, %v1899
  %v1902 = vsel %vm1284, %v1849, 2147483647
  %v1903 = vrot.slane %v1902, 4
  %vm1904 = vcmp.lt.s32.totalorder %v1902, %v1903
  %v1905 = vsel %vm1904, %v1902, %v1903
  %v1906 = vrot.slane %v1905, 2
  %vm1907 = vcmp.lt.s32.totalorder %v1905, %v1906
  %v1908 = vsel %vm1907, %v1905, %v1906
  %v1909 = vrot.slane %v1908, 1
  %vm1910 = vcmp.lt.s32.totalorder %v1908, %v1909
  %v1911 = vsel %vm1910, %v1908, %v1909
  %v1912 = vsel %vm1284, %v1850, 2147483647
  %v1913 = vrot.slane %v1912, 4
  %vm1914 = vcmp.lt.s32.totalorder %v1912, %v1913
  %v1915 = vsel %vm1914, %v1912, %v1913
  %v1916 = vrot.slane %v1915, 2
  %vm1917 = vcmp.lt.s32.totalorder %v1915, %v1916
  %v1918 = vsel %vm1917, %v1915, %v1916
  %v1919 = vrot.slane %v1918, 1
  %vm1920 = vcmp.lt.s32.totalorder %v1918, %v1919
  %v1921 = vsel %vm1920, %v1918, %v1919
  %v1922 = vsel %vm1284, %v1851, 2147483647
  %v1923 = vrot.slane %v1922, 4
  %vm1924 = vcmp.lt.s32.totalorder %v1922, %v1923
  %v1925 = vsel %vm1924, %v1922, %v1923
  %v1926 = vrot.slane %v1925, 2
  %vm1927 = vcmp.lt.s32.totalorder %v1925, %v1926
  %v1928 = vsel %vm1927, %v1925, %v1926
  %v1929 = vrot.slane %v1928, 1
  %vm1930 = vcmp.lt.s32.totalorder %v1928, %v1929
  %v1931 = vsel %vm1930, %v1928, %v1929
  %v1932 = vsel %vm1437, %v1871, %v1861
  %v1933 = vsel %vm1439, %v1881, %v1932
  %v1934 = vsel %vm1441, %v1891, %v1933
  %v1935 = vsel %vm1443, %v1901, %v1934
  %v1936 = vsel %vm1445, %v1911, %v1935
  %v1937 = vsel %vm1447, %v1921, %v1936
  %v1938 = vsel %vm1449, %v1931, %v1937
  %s1939 = scalar_lea.vmem [#allocation5], 24
  %1940 = vst.msk [vmem:[%s1939] sm:$0xff] %vm1197, %v1938
  %s1941 = scalar_lea.vmem [#allocation4], 24
  %v1942 = vld [vmem:[%s1941] sm:$0xff]
  %v1951 = vsel %vm1437, %v1793, %v1786
  %v1952 = vsel %vm1439, %v1800, %v1951
  %v1953 = vsel %vm1441, %v1807, %v1952
  %v1954 = vsel %vm1443, %v1814, %v1953
  %v1955 = vsel %vm1445, %v1821, %v1954
  %v1956 = vsel %vm1447, %v1828, %v1955
  %v1957 = vsel %vm1449, %v1835, %v1956
  %v1959 = vadd.f32 %v1942, %v1957
  %v1960 = vlaneseq
  %v1961 = vshrl.u32 %v1960, 7
  %v1962 = vsub.s32 0, %v1961
  %v1963 = vrot.slane %v1959, %v1962
  %1965 = vbcast.lane.b32.xlu0 %v1963, 256
  %v1966 = vpop.permute.xlu0 %1965
  %v1967 = vlaneseq
  %v1968 = vshrl.u32 %v1967, 7
  %v1969 = vsub.s32 1, %v1968
  %v1970 = vrot.slane %v1959, %v1969
  %1972 = vbcast.lane.b32.xlu0 %v1970, 256
  %v1973 = vpop.permute.xlu0 %1972
  %v1974 = vlaneseq
  %v1975 = vshrl.u32 %v1974, 7
  %v1976 = vsub.s32 2, %v1975
  %v1977 = vrot.slane %v1959, %v1976
  %1979 = vbcast.lane.b32.xlu0 %v1977, 256
  %v1980 = vpop.permute.xlu0 %1979
  %v1981 = vlaneseq
  %v1982 = vshrl.u32 %v1981, 7
  %v1983 = vsub.s32 3, %v1982
  %v1984 = vrot.slane %v1959, %v1983
  %1986 = vbcast.lane.b32.xlu0 %v1984, 256
  %v1987 = vpop.permute.xlu0 %1986
  %v1988 = vlaneseq
  %v1989 = vshrl.u32 %v1988, 7
  %v1990 = vsub.s32 4, %v1989
  %v1991 = vrot.slane %v1959, %v1990
  %1993 = vbcast.lane.b32.xlu0 %v1991, 256
  %v1994 = vpop.permute.xlu0 %1993
  %v1995 = vlaneseq
  %v1996 = vshrl.u32 %v1995, 7
  %v1997 = vsub.s32 5, %v1996
  %v1998 = vrot.slane %v1959, %v1997
  %2000 = vbcast.lane.b32.xlu0 %v1998, 256
  %v2001 = vpop.permute.xlu0 %2000
  %v2002 = vlaneseq
  %v2003 = vshrl.u32 %v2002, 7
  %v2004 = vsub.s32 6, %v2003
  %v2005 = vrot.slane %v1959, %v2004
  %2007 = vbcast.lane.b32.xlu0 %v2005, 256
  %v2008 = vpop.permute.xlu0 %2007
  %v2009 = vlaneseq
  %v2010 = vshrl.u32 %v2009, 7
  %v2011 = vsub.s32 7, %v2010
  %v2012 = vrot.slane %v1959, %v2011
  %2014 = vbcast.lane.b32.xlu0 %v2012, 256
  %v2015 = vpop.permute.xlu0 %2014
  %v2016 = vadd.f32 %v1966, %v1206
  %v2017 = vadd.f32 %v1973, %v1206
  %v2018 = vadd.f32 %v1980, %v1206
  %v2019 = vadd.f32 %v1987, %v1206
  %v2020 = vadd.f32 %v1994, %v1206
  %v2021 = vadd.f32 %v2001, %v1206
  %v2022 = vadd.f32 %v2008, %v1206
  %v2023 = vadd.f32 %v2015, %v1206
  %v2024 = vsel %vm1284, %v2016, -inf
  %v2025 = vrot.slane %v2024, 4
  %v2026 = vmax.f32 %v2024, %v2025
  %v2027 = vrot.slane %v2026, 2
  %v2028 = vmax.f32 %v2026, %v2027
  %v2029 = vrot.slane %v2028, 1
  %v2030 = vmax.f32 %v2028, %v2029
  %v2031 = vsel %vm1284, %v2017, -inf
  %v2032 = vrot.slane %v2031, 4
  %v2033 = vmax.f32 %v2031, %v2032
  %v2034 = vrot.slane %v2033, 2
  %v2035 = vmax.f32 %v2033, %v2034
  %v2036 = vrot.slane %v2035, 1
  %v2037 = vmax.f32 %v2035, %v2036
  %v2038 = vsel %vm1284, %v2018, -inf
  %v2039 = vrot.slane %v2038, 4
  %v2040 = vmax.f32 %v2038, %v2039
  %v2041 = vrot.slane %v2040, 2
  %v2042 = vmax.f32 %v2040, %v2041
  %v2043 = vrot.slane %v2042, 1
  %v2044 = vmax.f32 %v2042, %v2043
  %v2045 = vsel %vm1284, %v2019, -inf
  %v2046 = vrot.slane %v2045, 4
  %v2047 = vmax.f32 %v2045, %v2046
  %v2048 = vrot.slane %v2047, 2
  %v2049 = vmax.f32 %v2047, %v2048
  %v2050 = vrot.slane %v2049, 1
  %v2051 = vmax.f32 %v2049, %v2050
  %v2052 = vsel %vm1284, %v2020, -inf
  %v2053 = vrot.slane %v2052, 4
  %v2054 = vmax.f32 %v2052, %v2053
  %v2055 = vrot.slane %v2054, 2
  %v2056 = vmax.f32 %v2054, %v2055
  %v2057 = vrot.slane %v2056, 1
  %v2058 = vmax.f32 %v2056, %v2057
  %v2059 = vsel %vm1284, %v2021, -inf
  %v2060 = vrot.slane %v2059, 4
  %v2061 = vmax.f32 %v2059, %v2060
  %v2062 = vrot.slane %v2061, 2
  %v2063 = vmax.f32 %v2061, %v2062
  %v2064 = vrot.slane %v2063, 1
  %v2065 = vmax.f32 %v2063, %v2064
  %v2066 = vsel %vm1284, %v2022, -inf
  %v2067 = vrot.slane %v2066, 4
  %v2068 = vmax.f32 %v2066, %v2067
  %v2069 = vrot.slane %v2068, 2
  %v2070 = vmax.f32 %v2068, %v2069
  %v2071 = vrot.slane %v2070, 1
  %v2072 = vmax.f32 %v2070, %v2071
  %v2073 = vsel %vm1284, %v2023, -inf
  %v2074 = vrot.slane %v2073, 4
  %v2075 = vmax.f32 %v2073, %v2074
  %v2076 = vrot.slane %v2075, 2
  %v2077 = vmax.f32 %v2075, %v2076
  %v2078 = vrot.slane %v2077, 1
  %v2079 = vmax.f32 %v2077, %v2078
  %vm2080 = vcmp.eq.f32.partialorder %v2016, %v2030
  %vm2081 = vcmp.eq.f32.partialorder %v2017, %v2037
  %vm2082 = vcmp.eq.f32.partialorder %v2018, %v2044
  %vm2083 = vcmp.eq.f32.partialorder %v2019, %v2051
  %vm2084 = vcmp.eq.f32.partialorder %v2020, %v2058
  %vm2085 = vcmp.eq.f32.partialorder %v2021, %v2065
  %vm2086 = vcmp.eq.f32.partialorder %v2022, %v2072
  %vm2087 = vcmp.eq.f32.partialorder %v2023, %v2079
  %v2088 = vsel %vm2080, %v1208, 5
  %v2089 = vsel %vm2081, %v1208, 5
  %v2090 = vsel %vm2082, %v1208, 5
  %v2091 = vsel %vm2083, %v1208, 5
  %v2092 = vsel %vm2084, %v1208, 5
  %v2093 = vsel %vm2085, %v1208, 5
  %v2094 = vsel %vm2086, %v1208, 5
  %v2095 = vsel %vm2087, %v1208, 5
  %v2096 = vsel %vm1284, %v2088, 2147483647
  %v2097 = vrot.slane %v2096, 4
  %vm2098 = vcmp.lt.s32.totalorder %v2096, %v2097
  %v2099 = vsel %vm2098, %v2096, %v2097
  %v2100 = vrot.slane %v2099, 2
  %vm2101 = vcmp.lt.s32.totalorder %v2099, %v2100
  %v2102 = vsel %vm2101, %v2099, %v2100
  %v2103 = vrot.slane %v2102, 1
  %vm2104 = vcmp.lt.s32.totalorder %v2102, %v2103
  %v2105 = vsel %vm2104, %v2102, %v2103
  %v2106 = vsel %vm1284, %v2089, 2147483647
  %v2107 = vrot.slane %v2106, 4
  %vm2108 = vcmp.lt.s32.totalorder %v2106, %v2107
  %v2109 = vsel %vm2108, %v2106, %v2107
  %v2110 = vrot.slane %v2109, 2
  %vm2111 = vcmp.lt.s32.totalorder %v2109, %v2110
  %v2112 = vsel %vm2111, %v2109, %v2110
  %v2113 = vrot.slane %v2112, 1
  %vm2114 = vcmp.lt.s32.totalorder %v2112, %v2113
  %v2115 = vsel %vm2114, %v2112, %v2113
  %v2116 = vsel %vm1284, %v2090, 2147483647
  %v2117 = vrot.slane %v2116, 4
  %vm2118 = vcmp.lt.s32.totalorder %v2116, %v2117
  %v2119 = vsel %vm2118, %v2116, %v2117
  %v2120 = vrot.slane %v2119, 2
  %vm2121 = vcmp.lt.s32.totalorder %v2119, %v2120
  %v2122 = vsel %vm2121, %v2119, %v2120
  %v2123 = vrot.slane %v2122, 1
  %vm2124 = vcmp.lt.s32.totalorder %v2122, %v2123
  %v2125 = vsel %vm2124, %v2122, %v2123
  %v2126 = vsel %vm1284, %v2091, 2147483647
  %v2127 = vrot.slane %v2126, 4
  %vm2128 = vcmp.lt.s32.totalorder %v2126, %v2127
  %v2129 = vsel %vm2128, %v2126, %v2127
  %v2130 = vrot.slane %v2129, 2
  %vm2131 = vcmp.lt.s32.totalorder %v2129, %v2130
  %v2132 = vsel %vm2131, %v2129, %v2130
  %v2133 = vrot.slane %v2132, 1
  %vm2134 = vcmp.lt.s32.totalorder %v2132, %v2133
  %v2135 = vsel %vm2134, %v2132, %v2133
  %v2136 = vsel %vm1284, %v2092, 2147483647
  %v2137 = vrot.slane %v2136, 4
  %vm2138 = vcmp.lt.s32.totalorder %v2136, %v2137
  %v2139 = vsel %vm2138, %v2136, %v2137
  %v2140 = vrot.slane %v2139, 2
  %vm2141 = vcmp.lt.s32.totalorder %v2139, %v2140
  %v2142 = vsel %vm2141, %v2139, %v2140
  %v2143 = vrot.slane %v2142, 1
  %vm2144 = vcmp.lt.s32.totalorder %v2142, %v2143
  %v2145 = vsel %vm2144, %v2142, %v2143
  %v2146 = vsel %vm1284, %v2093, 2147483647
  %v2147 = vrot.slane %v2146, 4
  %vm2148 = vcmp.lt.s32.totalorder %v2146, %v2147
  %v2149 = vsel %vm2148, %v2146, %v2147
  %v2150 = vrot.slane %v2149, 2
  %vm2151 = vcmp.lt.s32.totalorder %v2149, %v2150
  %v2152 = vsel %vm2151, %v2149, %v2150
  %v2153 = vrot.slane %v2152, 1
  %vm2154 = vcmp.lt.s32.totalorder %v2152, %v2153
  %v2155 = vsel %vm2154, %v2152, %v2153
  %v2156 = vsel %vm1284, %v2094, 2147483647
  %v2157 = vrot.slane %v2156, 4
  %vm2158 = vcmp.lt.s32.totalorder %v2156, %v2157
  %v2159 = vsel %vm2158, %v2156, %v2157
  %v2160 = vrot.slane %v2159, 2
  %vm2161 = vcmp.lt.s32.totalorder %v2159, %v2160
  %v2162 = vsel %vm2161, %v2159, %v2160
  %v2163 = vrot.slane %v2162, 1
  %vm2164 = vcmp.lt.s32.totalorder %v2162, %v2163
  %v2165 = vsel %vm2164, %v2162, %v2163
  %v2166 = vsel %vm1284, %v2095, 2147483647
  %v2167 = vrot.slane %v2166, 4
  %vm2168 = vcmp.lt.s32.totalorder %v2166, %v2167
  %v2169 = vsel %vm2168, %v2166, %v2167
  %v2170 = vrot.slane %v2169, 2
  %vm2171 = vcmp.lt.s32.totalorder %v2169, %v2170
  %v2172 = vsel %vm2171, %v2169, %v2170
  %v2173 = vrot.slane %v2172, 1
  %vm2174 = vcmp.lt.s32.totalorder %v2172, %v2173
  %v2175 = vsel %vm2174, %v2172, %v2173
  %v2176 = vsel %vm1437, %v2115, %v2105
  %v2177 = vsel %vm1439, %v2125, %v2176
  %v2178 = vsel %vm1441, %v2135, %v2177
  %v2179 = vsel %vm1443, %v2145, %v2178
  %v2180 = vsel %vm1445, %v2155, %v2179
  %v2181 = vsel %vm1447, %v2165, %v2180
  %v2182 = vsel %vm1449, %v2175, %v2181
  %s2183 = scalar_lea.vmem [#allocation5], 32
  %2184 = vst.msk [vmem:[%s2183] sm:$0xff] %vm1197, %v2182
  %s2185 = scalar_lea.vmem [#allocation4], 32
  %v2186 = vld [vmem:[%s2185] sm:$0xff]
  %v2195 = vsel %vm1437, %v2037, %v2030
  %v2196 = vsel %vm1439, %v2044, %v2195
  %v2197 = vsel %vm1441, %v2051, %v2196
  %v2198 = vsel %vm1443, %v2058, %v2197
  %v2199 = vsel %vm1445, %v2065, %v2198
  %v2200 = vsel %vm1447, %v2072, %v2199
  %v2201 = vsel %vm1449, %v2079, %v2200
  %v2203 = vadd.f32 %v2186, %v2201
  %v2204 = vlaneseq
  %v2205 = vshrl.u32 %v2204, 7
  %v2206 = vsub.s32 0, %v2205
  %v2207 = vrot.slane %v2203, %v2206
  %2209 = vbcast.lane.b32.xlu0 %v2207, 256
  %v2210 = vpop.permute.xlu0 %2209
  %v2211 = vlaneseq
  %v2212 = vshrl.u32 %v2211, 7
  %v2213 = vsub.s32 1, %v2212
  %v2214 = vrot.slane %v2203, %v2213
  %2216 = vbcast.lane.b32.xlu0 %v2214, 256
  %v2217 = vpop.permute.xlu0 %2216
  %v2218 = vlaneseq
  %v2219 = vshrl.u32 %v2218, 7
  %v2220 = vsub.s32 2, %v2219
  %v2221 = vrot.slane %v2203, %v2220
  %2223 = vbcast.lane.b32.xlu0 %v2221, 256
  %v2224 = vpop.permute.xlu0 %2223
  %v2225 = vlaneseq
  %v2226 = vshrl.u32 %v2225, 7
  %v2227 = vsub.s32 3, %v2226
  %v2228 = vrot.slane %v2203, %v2227
  %2230 = vbcast.lane.b32.xlu0 %v2228, 256
  %v2231 = vpop.permute.xlu0 %2230
  %v2232 = vlaneseq
  %v2233 = vshrl.u32 %v2232, 7
  %v2234 = vsub.s32 4, %v2233
  %v2235 = vrot.slane %v2203, %v2234
  %2237 = vbcast.lane.b32.xlu0 %v2235, 256
  %v2238 = vpop.permute.xlu0 %2237
  %v2239 = vlaneseq
  %v2240 = vshrl.u32 %v2239, 7
  %v2241 = vsub.s32 5, %v2240
  %v2242 = vrot.slane %v2203, %v2241
  %2244 = vbcast.lane.b32.xlu0 %v2242, 256
  %v2245 = vpop.permute.xlu0 %2244
  %v2246 = vlaneseq
  %v2247 = vshrl.u32 %v2246, 7
  %v2248 = vsub.s32 6, %v2247
  %v2249 = vrot.slane %v2203, %v2248
  %2251 = vbcast.lane.b32.xlu0 %v2249, 256
  %v2252 = vpop.permute.xlu0 %2251
  %v2253 = vlaneseq
  %v2254 = vshrl.u32 %v2253, 7
  %v2255 = vsub.s32 7, %v2254
  %v2256 = vrot.slane %v2203, %v2255
  %2258 = vbcast.lane.b32.xlu0 %v2256, 256
  %v2259 = vpop.permute.xlu0 %2258
  %v2260 = vadd.f32 %v2210, %v1206
  %v2261 = vadd.f32 %v2217, %v1206
  %v2262 = vadd.f32 %v2224, %v1206
  %v2263 = vadd.f32 %v2231, %v1206
  %v2264 = vadd.f32 %v2238, %v1206
  %v2265 = vadd.f32 %v2245, %v1206
  %v2266 = vadd.f32 %v2252, %v1206
  %v2267 = vadd.f32 %v2259, %v1206
  %v2268 = vsel %vm1284, %v2260, -inf
  %v2269 = vrot.slane %v2268, 4
  %v2270 = vmax.f32 %v2268, %v2269
  %v2271 = vrot.slane %v2270, 2
  %v2272 = vmax.f32 %v2270, %v2271
  %v2273 = vrot.slane %v2272, 1
  %v2274 = vmax.f32 %v2272, %v2273
  %v2275 = vsel %vm1284, %v2261, -inf
  %v2276 = vrot.slane %v2275, 4
  %v2277 = vmax.f32 %v2275, %v2276
  %v2278 = vrot.slane %v2277, 2
  %v2279 = vmax.f32 %v2277, %v2278
  %v2280 = vrot.slane %v2279, 1
  %v2281 = vmax.f32 %v2279, %v2280
  %v2282 = vsel %vm1284, %v2262, -inf
  %v2283 = vrot.slane %v2282, 4
  %v2284 = vmax.f32 %v2282, %v2283
  %v2285 = vrot.slane %v2284, 2
  %v2286 = vmax.f32 %v2284, %v2285
  %v2287 = vrot.slane %v2286, 1
  %v2288 = vmax.f32 %v2286, %v2287
  %v2289 = vsel %vm1284, %v2263, -inf
  %v2290 = vrot.slane %v2289, 4
  %v2291 = vmax.f32 %v2289, %v2290
  %v2292 = vrot.slane %v2291, 2
  %v2293 = vmax.f32 %v2291, %v2292
  %v2294 = vrot.slane %v2293, 1
  %v2295 = vmax.f32 %v2293, %v2294
  %v2296 = vsel %vm1284, %v2264, -inf
  %v2297 = vrot.slane %v2296, 4
  %v2298 = vmax.f32 %v2296, %v2297
  %v2299 = vrot.slane %v2298, 2
  %v2300 = vmax.f32 %v2298, %v2299
  %v2301 = vrot.slane %v2300, 1
  %v2302 = vmax.f32 %v2300, %v2301
  %v2303 = vsel %vm1284, %v2265, -inf
  %v2304 = vrot.slane %v2303, 4
  %v2305 = vmax.f32 %v2303, %v2304
  %v2306 = vrot.slane %v2305, 2
  %v2307 = vmax.f32 %v2305, %v2306
  %v2308 = vrot.slane %v2307, 1
  %v2309 = vmax.f32 %v2307, %v2308
  %v2310 = vsel %vm1284, %v2266, -inf
  %v2311 = vrot.slane %v2310, 4
  %v2312 = vmax.f32 %v2310, %v2311
  %v2313 = vrot.slane %v2312, 2
  %v2314 = vmax.f32 %v2312, %v2313
  %v2315 = vrot.slane %v2314, 1
  %v2316 = vmax.f32 %v2314, %v2315
  %v2317 = vsel %vm1284, %v2267, -inf
  %v2318 = vrot.slane %v2317, 4
  %v2319 = vmax.f32 %v2317, %v2318
  %v2320 = vrot.slane %v2319, 2
  %v2321 = vmax.f32 %v2319, %v2320
  %v2322 = vrot.slane %v2321, 1
  %v2323 = vmax.f32 %v2321, %v2322
  %vm2324 = vcmp.eq.f32.partialorder %v2260, %v2274
  %vm2325 = vcmp.eq.f32.partialorder %v2261, %v2281
  %vm2326 = vcmp.eq.f32.partialorder %v2262, %v2288
  %vm2327 = vcmp.eq.f32.partialorder %v2263, %v2295
  %vm2328 = vcmp.eq.f32.partialorder %v2264, %v2302
  %vm2329 = vcmp.eq.f32.partialorder %v2265, %v2309
  %vm2330 = vcmp.eq.f32.partialorder %v2266, %v2316
  %vm2331 = vcmp.eq.f32.partialorder %v2267, %v2323
  %v2332 = vsel %vm2324, %v1208, 5
  %v2333 = vsel %vm2325, %v1208, 5
  %v2334 = vsel %vm2326, %v1208, 5
  %v2335 = vsel %vm2327, %v1208, 5
  %v2336 = vsel %vm2328, %v1208, 5
  %v2337 = vsel %vm2329, %v1208, 5
  %v2338 = vsel %vm2330, %v1208, 5
  %v2339 = vsel %vm2331, %v1208, 5
  %v2340 = vsel %vm1284, %v2332, 2147483647
  %v2341 = vrot.slane %v2340, 4
  %vm2342 = vcmp.lt.s32.totalorder %v2340, %v2341
  %v2343 = vsel %vm2342, %v2340, %v2341
  %v2344 = vrot.slane %v2343, 2
  %vm2345 = vcmp.lt.s32.totalorder %v2343, %v2344
  %v2346 = vsel %vm2345, %v2343, %v2344
  %v2347 = vrot.slane %v2346, 1
  %vm2348 = vcmp.lt.s32.totalorder %v2346, %v2347
  %v2349 = vsel %vm2348, %v2346, %v2347
  %v2350 = vsel %vm1284, %v2333, 2147483647
  %v2351 = vrot.slane %v2350, 4
  %vm2352 = vcmp.lt.s32.totalorder %v2350, %v2351
  %v2353 = vsel %vm2352, %v2350, %v2351
  %v2354 = vrot.slane %v2353, 2
  %vm2355 = vcmp.lt.s32.totalorder %v2353, %v2354
  %v2356 = vsel %vm2355, %v2353, %v2354
  %v2357 = vrot.slane %v2356, 1
  %vm2358 = vcmp.lt.s32.totalorder %v2356, %v2357
  %v2359 = vsel %vm2358, %v2356, %v2357
  %v2360 = vsel %vm1284, %v2334, 2147483647
  %v2361 = vrot.slane %v2360, 4
  %vm2362 = vcmp.lt.s32.totalorder %v2360, %v2361
  %v2363 = vsel %vm2362, %v2360, %v2361
  %v2364 = vrot.slane %v2363, 2
  %vm2365 = vcmp.lt.s32.totalorder %v2363, %v2364
  %v2366 = vsel %vm2365, %v2363, %v2364
  %v2367 = vrot.slane %v2366, 1
  %vm2368 = vcmp.lt.s32.totalorder %v2366, %v2367
  %v2369 = vsel %vm2368, %v2366, %v2367
  %v2370 = vsel %vm1284, %v2335, 2147483647
  %v2371 = vrot.slane %v2370, 4
  %vm2372 = vcmp.lt.s32.totalorder %v2370, %v2371
  %v2373 = vsel %vm2372, %v2370, %v2371
  %v2374 = vrot.slane %v2373, 2
  %vm2375 = vcmp.lt.s32.totalorder %v2373, %v2374
  %v2376 = vsel %vm2375, %v2373, %v2374
  %v2377 = vrot.slane %v2376, 1
  %vm2378 = vcmp.lt.s32.totalorder %v2376, %v2377
  %v2379 = vsel %vm2378, %v2376, %v2377
  %v2380 = vsel %vm1284, %v2336, 2147483647
  %v2381 = vrot.slane %v2380, 4
  %vm2382 = vcmp.lt.s32.totalorder %v2380, %v2381
  %v2383 = vsel %vm2382, %v2380, %v2381
  %v2384 = vrot.slane %v2383, 2
  %vm2385 = vcmp.lt.s32.totalorder %v2383, %v2384
  %v2386 = vsel %vm2385, %v2383, %v2384
  %v2387 = vrot.slane %v2386, 1
  %vm2388 = vcmp.lt.s32.totalorder %v2386, %v2387
  %v2389 = vsel %vm2388, %v2386, %v2387
  %v2390 = vsel %vm1284, %v2337, 2147483647
  %v2391 = vrot.slane %v2390, 4
  %vm2392 = vcmp.lt.s32.totalorder %v2390, %v2391
  %v2393 = vsel %vm2392, %v2390, %v2391
  %v2394 = vrot.slane %v2393, 2
  %vm2395 = vcmp.lt.s32.totalorder %v2393, %v2394
  %v2396 = vsel %vm2395, %v2393, %v2394
  %v2397 = vrot.slane %v2396, 1
  %vm2398 = vcmp.lt.s32.totalorder %v2396, %v2397
  %v2399 = vsel %vm2398, %v2396, %v2397
  %v2400 = vsel %vm1284, %v2338, 2147483647
  %v2401 = vrot.slane %v2400, 4
  %vm2402 = vcmp.lt.s32.totalorder %v2400, %v2401
  %v2403 = vsel %vm2402, %v2400, %v2401
  %v2404 = vrot.slane %v2403, 2
  %vm2405 = vcmp.lt.s32.totalorder %v2403, %v2404
  %v2406 = vsel %vm2405, %v2403, %v2404
  %v2407 = vrot.slane %v2406, 1
  %vm2408 = vcmp.lt.s32.totalorder %v2406, %v2407
  %v2409 = vsel %vm2408, %v2406, %v2407
  %v2410 = vsel %vm1284, %v2339, 2147483647
  %v2411 = vrot.slane %v2410, 4
  %vm2412 = vcmp.lt.s32.totalorder %v2410, %v2411
  %v2413 = vsel %vm2412, %v2410, %v2411
  %v2414 = vrot.slane %v2413, 2
  %vm2415 = vcmp.lt.s32.totalorder %v2413, %v2414
  %v2416 = vsel %vm2415, %v2413, %v2414
  %v2417 = vrot.slane %v2416, 1
  %vm2418 = vcmp.lt.s32.totalorder %v2416, %v2417
  %v2419 = vsel %vm2418, %v2416, %v2417
  %v2420 = vsel %vm1437, %v2359, %v2349
  %v2421 = vsel %vm1439, %v2369, %v2420
  %v2422 = vsel %vm1441, %v2379, %v2421
  %v2423 = vsel %vm1443, %v2389, %v2422
  %v2424 = vsel %vm1445, %v2399, %v2423
  %v2425 = vsel %vm1447, %v2409, %v2424
  %v2426 = vsel %vm1449, %v2419, %v2425
  %s2427 = scalar_lea.vmem [#allocation5], 40
  %2428 = vst.msk [vmem:[%s2427] sm:$0xff] %vm1197, %v2426
  %s2429 = scalar_lea.vmem [#allocation4], 40
  %v2430 = vld [vmem:[%s2429] sm:$0xff]
  %v2439 = vsel %vm1437, %v2281, %v2274
  %v2440 = vsel %vm1439, %v2288, %v2439
  %v2441 = vsel %vm1441, %v2295, %v2440
  %v2442 = vsel %vm1443, %v2302, %v2441
  %v2443 = vsel %vm1445, %v2309, %v2442
  %v2444 = vsel %vm1447, %v2316, %v2443
  %v2445 = vsel %vm1449, %v2323, %v2444
  %v2447 = vadd.f32 %v2430, %v2445
  %v2448 = vlaneseq
  %v2449 = vshrl.u32 %v2448, 7
  %v2450 = vsub.s32 0, %v2449
  %v2451 = vrot.slane %v2447, %v2450
  %2453 = vbcast.lane.b32.xlu0 %v2451, 256
  %v2454 = vpop.permute.xlu0 %2453
  %v2455 = vlaneseq
  %v2456 = vshrl.u32 %v2455, 7
  %v2457 = vsub.s32 1, %v2456
  %v2458 = vrot.slane %v2447, %v2457
  %2460 = vbcast.lane.b32.xlu0 %v2458, 256
  %v2461 = vpop.permute.xlu0 %2460
  %v2462 = vlaneseq
  %v2463 = vshrl.u32 %v2462, 7
  %v2464 = vsub.s32 2, %v2463
  %v2465 = vrot.slane %v2447, %v2464
  %2467 = vbcast.lane.b32.xlu0 %v2465, 256
  %v2468 = vpop.permute.xlu0 %2467
  %v2469 = vlaneseq
  %v2470 = vshrl.u32 %v2469, 7
  %v2471 = vsub.s32 3, %v2470
  %v2472 = vrot.slane %v2447, %v2471
  %2474 = vbcast.lane.b32.xlu0 %v2472, 256
  %v2475 = vpop.permute.xlu0 %2474
  %v2476 = vlaneseq
  %v2477 = vshrl.u32 %v2476, 7
  %v2478 = vsub.s32 4, %v2477
  %v2479 = vrot.slane %v2447, %v2478
  %2481 = vbcast.lane.b32.xlu0 %v2479, 256
  %v2482 = vpop.permute.xlu0 %2481
  %v2483 = vlaneseq
  %v2484 = vshrl.u32 %v2483, 7
  %v2485 = vsub.s32 5, %v2484
  %v2486 = vrot.slane %v2447, %v2485
  %2488 = vbcast.lane.b32.xlu0 %v2486, 256
  %v2489 = vpop.permute.xlu0 %2488
  %v2490 = vlaneseq
  %v2491 = vshrl.u32 %v2490, 7
  %v2492 = vsub.s32 6, %v2491
  %v2493 = vrot.slane %v2447, %v2492
  %2495 = vbcast.lane.b32.xlu0 %v2493, 256
  %v2496 = vpop.permute.xlu0 %2495
  %v2497 = vlaneseq
  %v2498 = vshrl.u32 %v2497, 7
  %v2499 = vsub.s32 7, %v2498
  %v2500 = vrot.slane %v2447, %v2499
  %2502 = vbcast.lane.b32.xlu0 %v2500, 256
  %v2503 = vpop.permute.xlu0 %2502
  %v2504 = vadd.f32 %v2454, %v1206
  %v2505 = vadd.f32 %v2461, %v1206
  %v2506 = vadd.f32 %v2468, %v1206
  %v2507 = vadd.f32 %v2475, %v1206
  %v2508 = vadd.f32 %v2482, %v1206
  %v2509 = vadd.f32 %v2489, %v1206
  %v2510 = vadd.f32 %v2496, %v1206
  %v2511 = vadd.f32 %v2503, %v1206
  %v2512 = vsel %vm1284, %v2504, -inf
  %v2513 = vrot.slane %v2512, 4
  %v2514 = vmax.f32 %v2512, %v2513
  %v2515 = vrot.slane %v2514, 2
  %v2516 = vmax.f32 %v2514, %v2515
  %v2517 = vrot.slane %v2516, 1
  %v2518 = vmax.f32 %v2516, %v2517
  %v2519 = vsel %vm1284, %v2505, -inf
  %v2520 = vrot.slane %v2519, 4
  %v2521 = vmax.f32 %v2519, %v2520
  %v2522 = vrot.slane %v2521, 2
  %v2523 = vmax.f32 %v2521, %v2522
  %v2524 = vrot.slane %v2523, 1
  %v2525 = vmax.f32 %v2523, %v2524
  %v2526 = vsel %vm1284, %v2506, -inf
  %v2527 = vrot.slane %v2526, 4
  %v2528 = vmax.f32 %v2526, %v2527
  %v2529 = vrot.slane %v2528, 2
  %v2530 = vmax.f32 %v2528, %v2529
  %v2531 = vrot.slane %v2530, 1
  %v2532 = vmax.f32 %v2530, %v2531
  %v2533 = vsel %vm1284, %v2507, -inf
  %v2534 = vrot.slane %v2533, 4
  %v2535 = vmax.f32 %v2533, %v2534
  %v2536 = vrot.slane %v2535, 2
  %v2537 = vmax.f32 %v2535, %v2536
  %v2538 = vrot.slane %v2537, 1
  %v2539 = vmax.f32 %v2537, %v2538
  %v2540 = vsel %vm1284, %v2508, -inf
  %v2541 = vrot.slane %v2540, 4
  %v2542 = vmax.f32 %v2540, %v2541
  %v2543 = vrot.slane %v2542, 2
  %v2544 = vmax.f32 %v2542, %v2543
  %v2545 = vrot.slane %v2544, 1
  %v2546 = vmax.f32 %v2544, %v2545
  %v2547 = vsel %vm1284, %v2509, -inf
  %v2548 = vrot.slane %v2547, 4
  %v2549 = vmax.f32 %v2547, %v2548
  %v2550 = vrot.slane %v2549, 2
  %v2551 = vmax.f32 %v2549, %v2550
  %v2552 = vrot.slane %v2551, 1
  %v2553 = vmax.f32 %v2551, %v2552
  %v2554 = vsel %vm1284, %v2510, -inf
  %v2555 = vrot.slane %v2554, 4
  %v2556 = vmax.f32 %v2554, %v2555
  %v2557 = vrot.slane %v2556, 2
  %v2558 = vmax.f32 %v2556, %v2557
  %v2559 = vrot.slane %v2558, 1
  %v2560 = vmax.f32 %v2558, %v2559
  %v2561 = vsel %vm1284, %v2511, -inf
  %v2562 = vrot.slane %v2561, 4
  %v2563 = vmax.f32 %v2561, %v2562
  %v2564 = vrot.slane %v2563, 2
  %v2565 = vmax.f32 %v2563, %v2564
  %v2566 = vrot.slane %v2565, 1
  %v2567 = vmax.f32 %v2565, %v2566
  %vm2568 = vcmp.eq.f32.partialorder %v2504, %v2518
  %vm2569 = vcmp.eq.f32.partialorder %v2505, %v2525
  %vm2570 = vcmp.eq.f32.partialorder %v2506, %v2532
  %vm2571 = vcmp.eq.f32.partialorder %v2507, %v2539
  %vm2572 = vcmp.eq.f32.partialorder %v2508, %v2546
  %vm2573 = vcmp.eq.f32.partialorder %v2509, %v2553
  %vm2574 = vcmp.eq.f32.partialorder %v2510, %v2560
  %vm2575 = vcmp.eq.f32.partialorder %v2511, %v2567
  %v2576 = vsel %vm2568, %v1208, 5
  %v2577 = vsel %vm2569, %v1208, 5
  %v2578 = vsel %vm2570, %v1208, 5
  %v2579 = vsel %vm2571, %v1208, 5
  %v2580 = vsel %vm2572, %v1208, 5
  %v2581 = vsel %vm2573, %v1208, 5
  %v2582 = vsel %vm2574, %v1208, 5
  %v2583 = vsel %vm2575, %v1208, 5
  %v2584 = vsel %vm1284, %v2576, 2147483647
  %v2585 = vrot.slane %v2584, 4
  %vm2586 = vcmp.lt.s32.totalorder %v2584, %v2585
  %v2587 = vsel %vm2586, %v2584, %v2585
  %v2588 = vrot.slane %v2587, 2
  %vm2589 = vcmp.lt.s32.totalorder %v2587, %v2588
  %v2590 = vsel %vm2589, %v2587, %v2588
  %v2591 = vrot.slane %v2590, 1
  %vm2592 = vcmp.lt.s32.totalorder %v2590, %v2591
  %v2593 = vsel %vm2592, %v2590, %v2591
  %v2594 = vsel %vm1284, %v2577, 2147483647
  %v2595 = vrot.slane %v2594, 4
  %vm2596 = vcmp.lt.s32.totalorder %v2594, %v2595
  %v2597 = vsel %vm2596, %v2594, %v2595
  %v2598 = vrot.slane %v2597, 2
  %vm2599 = vcmp.lt.s32.totalorder %v2597, %v2598
  %v2600 = vsel %vm2599, %v2597, %v2598
  %v2601 = vrot.slane %v2600, 1
  %vm2602 = vcmp.lt.s32.totalorder %v2600, %v2601
  %v2603 = vsel %vm2602, %v2600, %v2601
  %v2604 = vsel %vm1284, %v2578, 2147483647
  %v2605 = vrot.slane %v2604, 4
  %vm2606 = vcmp.lt.s32.totalorder %v2604, %v2605
  %v2607 = vsel %vm2606, %v2604, %v2605
  %v2608 = vrot.slane %v2607, 2
  %vm2609 = vcmp.lt.s32.totalorder %v2607, %v2608
  %v2610 = vsel %vm2609, %v2607, %v2608
  %v2611 = vrot.slane %v2610, 1
  %vm2612 = vcmp.lt.s32.totalorder %v2610, %v2611
  %v2613 = vsel %vm2612, %v2610, %v2611
  %v2614 = vsel %vm1284, %v2579, 2147483647
  %v2615 = vrot.slane %v2614, 4
  %vm2616 = vcmp.lt.s32.totalorder %v2614, %v2615
  %v2617 = vsel %vm2616, %v2614, %v2615
  %v2618 = vrot.slane %v2617, 2
  %vm2619 = vcmp.lt.s32.totalorder %v2617, %v2618
  %v2620 = vsel %vm2619, %v2617, %v2618
  %v2621 = vrot.slane %v2620, 1
  %vm2622 = vcmp.lt.s32.totalorder %v2620, %v2621
  %v2623 = vsel %vm2622, %v2620, %v2621
  %v2624 = vsel %vm1284, %v2580, 2147483647
  %v2625 = vrot.slane %v2624, 4
  %vm2626 = vcmp.lt.s32.totalorder %v2624, %v2625
  %v2627 = vsel %vm2626, %v2624, %v2625
  %v2628 = vrot.slane %v2627, 2
  %vm2629 = vcmp.lt.s32.totalorder %v2627, %v2628
  %v2630 = vsel %vm2629, %v2627, %v2628
  %v2631 = vrot.slane %v2630, 1
  %vm2632 = vcmp.lt.s32.totalorder %v2630, %v2631
  %v2633 = vsel %vm2632, %v2630, %v2631
  %v2634 = vsel %vm1284, %v2581, 2147483647
  %v2635 = vrot.slane %v2634, 4
  %vm2636 = vcmp.lt.s32.totalorder %v2634, %v2635
  %v2637 = vsel %vm2636, %v2634, %v2635
  %v2638 = vrot.slane %v2637, 2
  %vm2639 = vcmp.lt.s32.totalorder %v2637, %v2638
  %v2640 = vsel %vm2639, %v2637, %v2638
  %v2641 = vrot.slane %v2640, 1
  %vm2642 = vcmp.lt.s32.totalorder %v2640, %v2641
  %v2643 = vsel %vm2642, %v2640, %v2641
  %v2644 = vsel %vm1284, %v2582, 2147483647
  %v2645 = vrot.slane %v2644, 4
  %vm2646 = vcmp.lt.s32.totalorder %v2644, %v2645
  %v2647 = vsel %vm2646, %v2644, %v2645
  %v2648 = vrot.slane %v2647, 2
  %vm2649 = vcmp.lt.s32.totalorder %v2647, %v2648
  %v2650 = vsel %vm2649, %v2647, %v2648
  %v2651 = vrot.slane %v2650, 1
  %vm2652 = vcmp.lt.s32.totalorder %v2650, %v2651
  %v2653 = vsel %vm2652, %v2650, %v2651
  %v2654 = vsel %vm1284, %v2583, 2147483647
  %v2655 = vrot.slane %v2654, 4
  %vm2656 = vcmp.lt.s32.totalorder %v2654, %v2655
  %v2657 = vsel %vm2656, %v2654, %v2655
  %v2658 = vrot.slane %v2657, 2
  %vm2659 = vcmp.lt.s32.totalorder %v2657, %v2658
  %v2660 = vsel %vm2659, %v2657, %v2658
  %v2661 = vrot.slane %v2660, 1
  %vm2662 = vcmp.lt.s32.totalorder %v2660, %v2661
  %v2663 = vsel %vm2662, %v2660, %v2661
  %v2664 = vsel %vm1437, %v2603, %v2593
  %v2665 = vsel %vm1439, %v2613, %v2664
  %v2666 = vsel %vm1441, %v2623, %v2665
  %v2667 = vsel %vm1443, %v2633, %v2666
  %v2668 = vsel %vm1445, %v2643, %v2667
  %v2669 = vsel %vm1447, %v2653, %v2668
  %v2670 = vsel %vm1449, %v2663, %v2669
  %s2671 = scalar_lea.vmem [#allocation5], 48
  %2672 = vst.msk [vmem:[%s2671] sm:$0xff] %vm1197, %v2670
  %s2673 = scalar_lea.vmem [#allocation4], 48
  %v2674 = vld [vmem:[%s2673] sm:$0xff]
  %v2683 = vsel %vm1437, %v2525, %v2518
  %v2684 = vsel %vm1439, %v2532, %v2683
  %v2685 = vsel %vm1441, %v2539, %v2684
  %v2686 = vsel %vm1443, %v2546, %v2685
  %v2687 = vsel %vm1445, %v2553, %v2686
  %v2688 = vsel %vm1447, %v2560, %v2687
  %v2689 = vsel %vm1449, %v2567, %v2688
  %v2691 = vadd.f32 %v2674, %v2689
  %v2692 = vlaneseq
  %v2693 = vshrl.u32 %v2692, 7
  %v2694 = vsub.s32 0, %v2693
  %v2695 = vrot.slane %v2691, %v2694
  %2697 = vbcast.lane.b32.xlu0 %v2695, 256
  %v2698 = vpop.permute.xlu0 %2697
  %v2699 = vlaneseq
  %v2700 = vshrl.u32 %v2699, 7
  %v2701 = vsub.s32 1, %v2700
  %v2702 = vrot.slane %v2691, %v2701
  %2704 = vbcast.lane.b32.xlu0 %v2702, 256
  %v2705 = vpop.permute.xlu0 %2704
  %v2706 = vlaneseq
  %v2707 = vshrl.u32 %v2706, 7
  %v2708 = vsub.s32 2, %v2707
  %v2709 = vrot.slane %v2691, %v2708
  %2711 = vbcast.lane.b32.xlu0 %v2709, 256
  %v2712 = vpop.permute.xlu0 %2711
  %v2713 = vlaneseq
  %v2714 = vshrl.u32 %v2713, 7
  %v2715 = vsub.s32 3, %v2714
  %v2716 = vrot.slane %v2691, %v2715
  %2718 = vbcast.lane.b32.xlu0 %v2716, 256
  %v2719 = vpop.permute.xlu0 %2718
  %v2720 = vlaneseq
  %v2721 = vshrl.u32 %v2720, 7
  %v2722 = vsub.s32 4, %v2721
  %v2723 = vrot.slane %v2691, %v2722
  %2725 = vbcast.lane.b32.xlu0 %v2723, 256
  %v2726 = vpop.permute.xlu0 %2725
  %v2727 = vlaneseq
  %v2728 = vshrl.u32 %v2727, 7
  %v2729 = vsub.s32 5, %v2728
  %v2730 = vrot.slane %v2691, %v2729
  %2732 = vbcast.lane.b32.xlu0 %v2730, 256
  %v2733 = vpop.permute.xlu0 %2732
  %v2734 = vlaneseq
  %v2735 = vshrl.u32 %v2734, 7
  %v2736 = vsub.s32 6, %v2735
  %v2737 = vrot.slane %v2691, %v2736
  %2739 = vbcast.lane.b32.xlu0 %v2737, 256
  %v2740 = vpop.permute.xlu0 %2739
  %v2741 = vlaneseq
  %v2742 = vshrl.u32 %v2741, 7
  %v2743 = vsub.s32 7, %v2742
  %v2744 = vrot.slane %v2691, %v2743
  %2746 = vbcast.lane.b32.xlu0 %v2744, 256
  %v2747 = vpop.permute.xlu0 %2746
  %v2748 = vadd.f32 %v2698, %v1206
  %v2749 = vadd.f32 %v2705, %v1206
  %v2750 = vadd.f32 %v2712, %v1206
  %v2751 = vadd.f32 %v2719, %v1206
  %v2752 = vadd.f32 %v2726, %v1206
  %v2753 = vadd.f32 %v2733, %v1206
  %v2754 = vadd.f32 %v2740, %v1206
  %v2755 = vadd.f32 %v2747, %v1206
  %v2756 = vsel %vm1284, %v2748, -inf
  %v2757 = vrot.slane %v2756, 4
  %v2758 = vmax.f32 %v2756, %v2757
  %v2759 = vrot.slane %v2758, 2
  %v2760 = vmax.f32 %v2758, %v2759
  %v2761 = vrot.slane %v2760, 1
  %v2762 = vmax.f32 %v2760, %v2761
  %v2763 = vsel %vm1284, %v2749, -inf
  %v2764 = vrot.slane %v2763, 4
  %v2765 = vmax.f32 %v2763, %v2764
  %v2766 = vrot.slane %v2765, 2
  %v2767 = vmax.f32 %v2765, %v2766
  %v2768 = vrot.slane %v2767, 1
  %v2769 = vmax.f32 %v2767, %v2768
  %v2770 = vsel %vm1284, %v2750, -inf
  %v2771 = vrot.slane %v2770, 4
  %v2772 = vmax.f32 %v2770, %v2771
  %v2773 = vrot.slane %v2772, 2
  %v2774 = vmax.f32 %v2772, %v2773
  %v2775 = vrot.slane %v2774, 1
  %v2776 = vmax.f32 %v2774, %v2775
  %v2777 = vsel %vm1284, %v2751, -inf
  %v2778 = vrot.slane %v2777, 4
  %v2779 = vmax.f32 %v2777, %v2778
  %v2780 = vrot.slane %v2779, 2
  %v2781 = vmax.f32 %v2779, %v2780
  %v2782 = vrot.slane %v2781, 1
  %v2783 = vmax.f32 %v2781, %v2782
  %v2784 = vsel %vm1284, %v2752, -inf
  %v2785 = vrot.slane %v2784, 4
  %v2786 = vmax.f32 %v2784, %v2785
  %v2787 = vrot.slane %v2786, 2
  %v2788 = vmax.f32 %v2786, %v2787
  %v2789 = vrot.slane %v2788, 1
  %v2790 = vmax.f32 %v2788, %v2789
  %v2791 = vsel %vm1284, %v2753, -inf
  %v2792 = vrot.slane %v2791, 4
  %v2793 = vmax.f32 %v2791, %v2792
  %v2794 = vrot.slane %v2793, 2
  %v2795 = vmax.f32 %v2793, %v2794
  %v2796 = vrot.slane %v2795, 1
  %v2797 = vmax.f32 %v2795, %v2796
  %v2798 = vsel %vm1284, %v2754, -inf
  %v2799 = vrot.slane %v2798, 4
  %v2800 = vmax.f32 %v2798, %v2799
  %v2801 = vrot.slane %v2800, 2
  %v2802 = vmax.f32 %v2800, %v2801
  %v2803 = vrot.slane %v2802, 1
  %v2804 = vmax.f32 %v2802, %v2803
  %v2805 = vsel %vm1284, %v2755, -inf
  %v2806 = vrot.slane %v2805, 4
  %v2807 = vmax.f32 %v2805, %v2806
  %v2808 = vrot.slane %v2807, 2
  %v2809 = vmax.f32 %v2807, %v2808
  %v2810 = vrot.slane %v2809, 1
  %v2811 = vmax.f32 %v2809, %v2810
  %vm2812 = vcmp.eq.f32.partialorder %v2748, %v2762
  %vm2813 = vcmp.eq.f32.partialorder %v2749, %v2769
  %vm2814 = vcmp.eq.f32.partialorder %v2750, %v2776
  %vm2815 = vcmp.eq.f32.partialorder %v2751, %v2783
  %vm2816 = vcmp.eq.f32.partialorder %v2752, %v2790
  %vm2817 = vcmp.eq.f32.partialorder %v2753, %v2797
  %vm2818 = vcmp.eq.f32.partialorder %v2754, %v2804
  %vm2819 = vcmp.eq.f32.partialorder %v2755, %v2811
  %v2820 = vsel %vm2812, %v1208, 5
  %v2821 = vsel %vm2813, %v1208, 5
  %v2822 = vsel %vm2814, %v1208, 5
  %v2823 = vsel %vm2815, %v1208, 5
  %v2824 = vsel %vm2816, %v1208, 5
  %v2825 = vsel %vm2817, %v1208, 5
  %v2826 = vsel %vm2818, %v1208, 5
  %v2827 = vsel %vm2819, %v1208, 5
  %v2828 = vsel %vm1284, %v2820, 2147483647
  %v2829 = vrot.slane %v2828, 4
  %vm2830 = vcmp.lt.s32.totalorder %v2828, %v2829
  %v2831 = vsel %vm2830, %v2828, %v2829
  %v2832 = vrot.slane %v2831, 2
  %vm2833 = vcmp.lt.s32.totalorder %v2831, %v2832
  %v2834 = vsel %vm2833, %v2831, %v2832
  %v2835 = vrot.slane %v2834, 1
  %vm2836 = vcmp.lt.s32.totalorder %v2834, %v2835
  %v2837 = vsel %vm2836, %v2834, %v2835
  %v2838 = vsel %vm1284, %v2821, 2147483647
  %v2839 = vrot.slane %v2838, 4
  %vm2840 = vcmp.lt.s32.totalorder %v2838, %v2839
  %v2841 = vsel %vm2840, %v2838, %v2839
  %v2842 = vrot.slane %v2841, 2
  %vm2843 = vcmp.lt.s32.totalorder %v2841, %v2842
  %v2844 = vsel %vm2843, %v2841, %v2842
  %v2845 = vrot.slane %v2844, 1
  %vm2846 = vcmp.lt.s32.totalorder %v2844, %v2845
  %v2847 = vsel %vm2846, %v2844, %v2845
  %v2848 = vsel %vm1284, %v2822, 2147483647
  %v2849 = vrot.slane %v2848, 4
  %vm2850 = vcmp.lt.s32.totalorder %v2848, %v2849
  %v2851 = vsel %vm2850, %v2848, %v2849
  %v2852 = vrot.slane %v2851, 2
  %vm2853 = vcmp.lt.s32.totalorder %v2851, %v2852
  %v2854 = vsel %vm2853, %v2851, %v2852
  %v2855 = vrot.slane %v2854, 1
  %vm2856 = vcmp.lt.s32.totalorder %v2854, %v2855
  %v2857 = vsel %vm2856, %v2854, %v2855
  %v2858 = vsel %vm1284, %v2823, 2147483647
  %v2859 = vrot.slane %v2858, 4
  %vm2860 = vcmp.lt.s32.totalorder %v2858, %v2859
  %v2861 = vsel %vm2860, %v2858, %v2859
  %v2862 = vrot.slane %v2861, 2
  %vm2863 = vcmp.lt.s32.totalorder %v2861, %v2862
  %v2864 = vsel %vm2863, %v2861, %v2862
  %v2865 = vrot.slane %v2864, 1
  %vm2866 = vcmp.lt.s32.totalorder %v2864, %v2865
  %v2867 = vsel %vm2866, %v2864, %v2865
  %v2868 = vsel %vm1284, %v2824, 2147483647
  %v2869 = vrot.slane %v2868, 4
  %vm2870 = vcmp.lt.s32.totalorder %v2868, %v2869
  %v2871 = vsel %vm2870, %v2868, %v2869
  %v2872 = vrot.slane %v2871, 2
  %vm2873 = vcmp.lt.s32.totalorder %v2871, %v2872
  %v2874 = vsel %vm2873, %v2871, %v2872
  %v2875 = vrot.slane %v2874, 1
  %vm2876 = vcmp.lt.s32.totalorder %v2874, %v2875
  %v2877 = vsel %vm2876, %v2874, %v2875
  %v2878 = vsel %vm1284, %v2825, 2147483647
  %v2879 = vrot.slane %v2878, 4
  %vm2880 = vcmp.lt.s32.totalorder %v2878, %v2879
  %v2881 = vsel %vm2880, %v2878, %v2879
  %v2882 = vrot.slane %v2881, 2
  %vm2883 = vcmp.lt.s32.totalorder %v2881, %v2882
  %v2884 = vsel %vm2883, %v2881, %v2882
  %v2885 = vrot.slane %v2884, 1
  %vm2886 = vcmp.lt.s32.totalorder %v2884, %v2885
  %v2887 = vsel %vm2886, %v2884, %v2885
  %v2888 = vsel %vm1284, %v2826, 2147483647
  %v2889 = vrot.slane %v2888, 4
  %vm2890 = vcmp.lt.s32.totalorder %v2888, %v2889
  %v2891 = vsel %vm2890, %v2888, %v2889
  %v2892 = vrot.slane %v2891, 2
  %vm2893 = vcmp.lt.s32.totalorder %v2891, %v2892
  %v2894 = vsel %vm2893, %v2891, %v2892
  %v2895 = vrot.slane %v2894, 1
  %vm2896 = vcmp.lt.s32.totalorder %v2894, %v2895
  %v2897 = vsel %vm2896, %v2894, %v2895
  %v2898 = vsel %vm1284, %v2827, 2147483647
  %v2899 = vrot.slane %v2898, 4
  %vm2900 = vcmp.lt.s32.totalorder %v2898, %v2899
  %v2901 = vsel %vm2900, %v2898, %v2899
  %v2902 = vrot.slane %v2901, 2
  %vm2903 = vcmp.lt.s32.totalorder %v2901, %v2902
  %v2904 = vsel %vm2903, %v2901, %v2902
  %v2905 = vrot.slane %v2904, 1
  %vm2906 = vcmp.lt.s32.totalorder %v2904, %v2905
  %v2907 = vsel %vm2906, %v2904, %v2905
  %v2908 = vsel %vm1437, %v2847, %v2837
  %v2909 = vsel %vm1439, %v2857, %v2908
  %v2910 = vsel %vm1441, %v2867, %v2909
  %v2911 = vsel %vm1443, %v2877, %v2910
  %v2912 = vsel %vm1445, %v2887, %v2911
  %v2913 = vsel %vm1447, %v2897, %v2912
  %v2914 = vsel %vm1449, %v2907, %v2913
  %s2915 = scalar_lea.vmem [#allocation5], 56
  %2916 = vst.msk [vmem:[%s2915] sm:$0xff] %vm1197, %v2914
  %s2917 = scalar_lea.vmem [#allocation4], 56
  %v2918 = vld [vmem:[%s2917] sm:$0xff]
  %v2927 = vsel %vm1437, %v2769, %v2762
  %v2928 = vsel %vm1439, %v2776, %v2927
  %v2929 = vsel %vm1441, %v2783, %v2928
  %v2930 = vsel %vm1443, %v2790, %v2929
  %v2931 = vsel %vm1445, %v2797, %v2930
  %v2932 = vsel %vm1447, %v2804, %v2931
  %v2933 = vsel %vm1449, %v2811, %v2932
  %v2935 = vadd.f32 %v2918, %v2933
  %v2936 = vld [vmem:[%s8] sm:$0x1]
  %v2938 = vlaneseq
  %v2939 = vshrl.u32 %v2938, 7
  %v2940 = vsub.s32 0, %v2939
  %v2941 = vrot.slane %v2936, %v2940
  %v2943 = vadd.f32 %v2935, %v2941
  %v2944 = vsel %vm1197, %v2943, -inf
  %2945 = vmax.xlane.f32.xlu0 %v2944
  %v2946 = vpop.xlane.xlu0 %2945
  %vm2947 = vcmp.eq.f32.partialorder %v2943, %v2946
  %v2948 = vsel %vm2947, %v1210, 5
  %v2949 = vsel %vm1197, %v2948, 2147483647
  %v2950 = vand.u32 %v2949, 65535
  %v2951 = vshra.s32 %v2949, 16
  %v2952 = vcvt.s32.f32 %v2950
  %v2953 = vcvt.s32.f32 %v2951
  %2954 = vmin.xlane.f32.xlu0 %v2953
  %v2955 = vpop.xlane.xlu0 %2954
  %vm2956 = vcmp.eq.f32.partialorder %v2953, %v2955
  %v2957 = vsel %vm2956, %v2952, inf
  %2958 = vmin.xlane.f32.xlu0 %v2957
  %v2959 = vpop.xlane.xlu0 %2958
  %v2960 = vcvt.f32.s32 %v2959
  %v2961 = vcvt.f32.s32 %v2955
  %v2962 = vshll.u32 %v2961, 16
  %v2963 = vadd.s32 %v2962, %v2960
  %vm2964 = vcmask 7168
  %2965 = vst.msk [vmem:[%s9] sm:$0xff] %vm2964, %v2946
  %vm2966 = vcmp.eq.s32.totalorder %v1210, 7
  %v2967 = vsel %vm2966, %v2963, 0
  %v2968 = vld [vmem:[%s2915] sm:$0xff]
  %vm2969 = vcmp.eq.s32.totalorder %v1210, %v2963
  %v2970 = vsel %vm2969, %v2968, 0
  %v2971 = vsel %vm1197, %v2970, 0
  %v2972 = vand.u32 %v2971, 65535
  %v2973 = vshrl.u32 %v2971, 16
  %v2974 = vcvt.s32.f32 %v2972
  %v2975 = vcvt.s32.f32 %v2973
  %2976 = vadd.xlane.f32.xlu0 %v2974
  %v2977 = vpop.xlane.xlu0 %2976
  %2978 = vadd.xlane.f32.xlu0 %v2975
  %v2979 = vpop.xlane.xlu0 %2978
  %v2980 = vcvt.f32.s32 %v2977
  %v2981 = vcvt.f32.s32 %v2979
  %v2982 = vshll.u32 %v2981, 16
  %v2983 = vadd.s32 %v2982, %v2980
  %vm2984 = vcmp.eq.s32.totalorder %v1210, 6
  %v2985 = vsel %vm2984, %v2983, %v2967
  %v2986 = vld [vmem:[%s2671] sm:$0xff]
  %vm2987 = vcmp.eq.s32.totalorder %v1210, %v2983
  %v2988 = vsel %vm2987, %v2986, 0
  %v2989 = vsel %vm1197, %v2988, 0
  %v2990 = vand.u32 %v2989, 65535
  %v2991 = vshrl.u32 %v2989, 16
  %v2992 = vcvt.s32.f32 %v2990
  %v2993 = vcvt.s32.f32 %v2991
  %2994 = vadd.xlane.f32.xlu0 %v2992
  %v2995 = vpop.xlane.xlu0 %2994
  %2996 = vadd.xlane.f32.xlu0 %v2993
  %v2997 = vpop.xlane.xlu0 %2996
  %v2998 = vcvt.f32.s32 %v2995
  %v2999 = vcvt.f32.s32 %v2997
  %v3000 = vshll.u32 %v2999, 16
  %v3001 = vadd.s32 %v3000, %v2998
  %vm3002 = vcmp.eq.s32.totalorder %v1210, 5
  %v3003 = vsel %vm3002, %v3001, %v2985
  %v3004 = vld [vmem:[%s2427] sm:$0xff]
  %vm3005 = vcmp.eq.s32.totalorder %v1210, %v3001
  %v3006 = vsel %vm3005, %v3004, 0
  %v3007 = vsel %vm1197, %v3006, 0
  %v3008 = vand.u32 %v3007, 65535
  %v3009 = vshrl.u32 %v3007, 16
  %v3010 = vcvt.s32.f32 %v3008
  %v3011 = vcvt.s32.f32 %v3009
  %3012 = vadd.xlane.f32.xlu0 %v3010
  %v3013 = vpop.xlane.xlu0 %3012
  %3014 = vadd.xlane.f32.xlu0 %v3011
  %v3015 = vpop.xlane.xlu0 %3014
  %v3016 = vcvt.f32.s32 %v3013
  %v3017 = vcvt.f32.s32 %v3015
  %v3018 = vshll.u32 %v3017, 16
  %v3019 = vadd.s32 %v3018, %v3016
  %vm3020 = vcmp.eq.s32.totalorder %v1210, 4
  %v3021 = vsel %vm3020, %v3019, %v3003
  %v3022 = vld [vmem:[%s2183] sm:$0xff]
  %vm3023 = vcmp.eq.s32.totalorder %v1210, %v3019
  %v3024 = vsel %vm3023, %v3022, 0
  %v3025 = vsel %vm1197, %v3024, 0
  %v3026 = vand.u32 %v3025, 65535
  %v3027 = vshrl.u32 %v3025, 16
  %v3028 = vcvt.s32.f32 %v3026
  %v3029 = vcvt.s32.f32 %v3027
  %3030 = vadd.xlane.f32.xlu0 %v3028
  %v3031 = vpop.xlane.xlu0 %3030
  %3032 = vadd.xlane.f32.xlu0 %v3029
  %v3033 = vpop.xlane.xlu0 %3032
  %v3034 = vcvt.f32.s32 %v3031
  %v3035 = vcvt.f32.s32 %v3033
  %v3036 = vshll.u32 %v3035, 16
  %v3037 = vadd.s32 %v3036, %v3034
  %vm3038 = vcmp.eq.s32.totalorder %v1210, 3
  %v3039 = vsel %vm3038, %v3037, %v3021
  %v3040 = vld [vmem:[%s1939] sm:$0xff]
  %vm3041 = vcmp.eq.s32.totalorder %v1210, %v3037
  %v3042 = vsel %vm3041, %v3040, 0
  %v3043 = vsel %vm1197, %v3042, 0
  %v3044 = vand.u32 %v3043, 65535
  %v3045 = vshrl.u32 %v3043, 16
  %v3046 = vcvt.s32.f32 %v3044
  %v3047 = vcvt.s32.f32 %v3045
  %3048 = vadd.xlane.f32.xlu0 %v3046
  %v3049 = vpop.xlane.xlu0 %3048
  %3050 = vadd.xlane.f32.xlu0 %v3047
  %v3051 = vpop.xlane.xlu0 %3050
  %v3052 = vcvt.f32.s32 %v3049
  %v3053 = vcvt.f32.s32 %v3051
  %v3054 = vshll.u32 %v3053, 16
  %v3055 = vadd.s32 %v3054, %v3052
  %vm3056 = vcmp.eq.s32.totalorder %v1210, 2
  %v3057 = vsel %vm3056, %v3055, %v3039
  %v3058 = vld [vmem:[%s1695] sm:$0xff]
  %vm3059 = vcmp.eq.s32.totalorder %v1210, %v3055
  %v3060 = vsel %vm3059, %v3058, 0
  %v3061 = vsel %vm1197, %v3060, 0
  %v3062 = vand.u32 %v3061, 65535
  %v3063 = vshrl.u32 %v3061, 16
  %v3064 = vcvt.s32.f32 %v3062
  %v3065 = vcvt.s32.f32 %v3063
  %3066 = vadd.xlane.f32.xlu0 %v3064
  %v3067 = vpop.xlane.xlu0 %3066
  %3068 = vadd.xlane.f32.xlu0 %v3065
  %v3069 = vpop.xlane.xlu0 %3068
  %v3070 = vcvt.f32.s32 %v3067
  %v3071 = vcvt.f32.s32 %v3069
  %v3072 = vshll.u32 %v3071, 16
  %v3073 = vadd.s32 %v3072, %v3070
  %vm3074 = vcmp.eq.s32.totalorder %v1210, 1
  %v3075 = vsel %vm3074, %v3073, %v3057
  %v3076 = vld [vmem:[%s1451] sm:$0xff]
  %vm3077 = vcmp.eq.s32.totalorder %v1210, %v3073
  %v3078 = vsel %vm3077, %v3076, 0
  %v3079 = vsel %vm1197, %v3078, 0
  %v3080 = vand.u32 %v3079, 65535
  %v3081 = vshrl.u32 %v3079, 16
  %v3082 = vcvt.s32.f32 %v3080
  %v3083 = vcvt.s32.f32 %v3081
  %3084 = vadd.xlane.f32.xlu0 %v3082
  %v3085 = vpop.xlane.xlu0 %3084
  %3086 = vadd.xlane.f32.xlu0 %v3083
  %v3087 = vpop.xlane.xlu0 %3086
  %v3088 = vcvt.f32.s32 %v3085
  %v3089 = vcvt.f32.s32 %v3087
  %v3090 = vshll.u32 %v3089, 16
  %v3091 = vadd.s32 %v3090, %v3088
  %vm3092 = vcmp.eq.s32.totalorder %v1210, 0
  %v3093 = vsel %vm3092, %v3091, %v3075
  %vm3094 = vcmask 64512
  %3095 = vst.msk [vmem:[%s10] sm:$0xff] %vm3094, %v3093
  // Predicated region
  $region38: #{bert_bilstm_crf_forward.1} parent=0 // pred_check
    _
  $region39: #{bert_bilstm_crf_forward.1} parent=0 // pred_check_branch
    %3097 = sbr.rel (0) target = $region41
  $region40: #{bert_bilstm_crf_forward.1} parent=0 // pred_region
    _
  $region41: #{bert_bilstm_crf_forward.1} parent=0 // pred_fallthru
    _
  // Predicated region
  $region42: #{bert_bilstm_crf_forward.1} parent=0 // pred_check
    _
  $region43: #{bert_bilstm_crf_forward.1} parent=0 // pred_check_branch
    %3099 = sbr.rel (0) target = $region45
  $region44: #{bert_bilstm_crf_forward.1} parent=0 // pred_region
    _
  $region45: #{bert_bilstm_crf_forward.1} parent=0 // pred_fallthru
    _
  // Predicated region
  $region46: #{bert_bilstm_crf_forward.1} parent=0 // pred_check
    _
  $region47: #{bert_bilstm_crf_forward.1} parent=0 // pred_check_branch
    %3101 = sbr.rel (0) target = $region49
  $region48: #{bert_bilstm_crf_forward.1} parent=0 // pred_region
    _
  $region49: #{bert_bilstm_crf_forward.1} parent=0 // pred_fallthru
    _
  // Predicated region
  $region50: #{bert_bilstm_crf_forward.1} parent=0 // pred_check
    _
  $region51: #{bert_bilstm_crf_forward.1} parent=0 // pred_check_branch
    %3103 = sbr.rel (0) target = $region53
  $region52: #{bert_bilstm_crf_forward.1} parent=0 // pred_region
    _
  $region53: #{bert_bilstm_crf_forward.1} parent=0 // pred_fallthru
    _

</llo_original>
